<compile_context>
chip_gen: v5e
topology: v5e:2x2
jax: 0.10.0
libtpu: 0.0.40
codegen_flags: <defaults>
</compile_context>

<pallas_src>
import functools
import math

import jax
import jax.numpy as jnp
from jax.experimental import pallas as pl
from jax.experimental.pallas import tpu as pltpu


# ----------------------------------------------------------------------------
# Generation-aware VMEM budget: ~3/4 of physical VMEM (96 MiB on the 128 MiB
# v5e/v6e parts, 48 MiB on the 64 MiB v7x part), capped at 100 MiB.
# ----------------------------------------------------------------------------

@functools.lru_cache(maxsize=None)
def _vmem_limit_bytes():
    cap = 64 * 1024 * 1024
    try:
        info = pltpu.get_tpu_info()
        cap = int(getattr(info, "vmem_capacity_bytes", cap)) or cap
    except Exception:
        pass
    return int(min(cap * 3 // 4, 100 * 1024 * 1024))


# ----------------------------------------------------------------------------
# Tiled linear:  out = act(x @ w + b)
#   grid = (M/bm, N/bn, K/bk), K innermost ("arbitrary") with an f32 VMEM
#   accumulator; bias + activation (+ optional row softmax) fused in the
#   finalize epilogue.  Weights arrive as bf16; x is cast to bf16 if needed;
#   accumulation is f32 on the MXU.
# ----------------------------------------------------------------------------

def _linear_kernel(x_ref, w_ref, b_ref, o_ref, acc_ref, *, act):
    @pl.when(pl.program_id(2) == 0)
    def _init():
        acc_ref[...] = jnp.zeros_like(acc_ref)

    x = x_ref[...]
    if x.dtype != jnp.bfloat16:
        x = x.astype(jnp.bfloat16)
    acc_ref[...] += jnp.dot(x, w_ref[...], preferred_element_type=jnp.float32)

    @pl.when(pl.program_id(2) == pl.num_programs(2) - 1)
    def _finalize():
        y = acc_ref[...] + b_ref[...]
        if act == "relu":
            y = jnp.maximum(y, 0.0)
        elif act == "softmax":
            m = jnp.max(y, axis=-1, keepdims=True)
            e = jnp.exp(y - m)
            y = e / jnp.sum(e, axis=-1, keepdims=True)  # exact row softmax
        o_ref[...] = y.astype(o_ref.dtype)


def _pick_tile(dim, prefs):
    for t in prefs:
        if t <= dim and dim % t == 0:
            return t
    return dim


def linear(x, w, b, act="none", out_dtype=jnp.bfloat16, bm=None, bn=None, bk=None):
    M, K = x.shape
    K2, N = w.shape
    assert K == K2
    if bm is None:
        bm = _pick_tile(M, (256, 128, 64, 32, 16, 8)) if M % 8 == 0 else M
    if bn is None:
        bn = _pick_tile(N, (1024, 512, 256, 128)) if N % 128 == 0 else N
    if bk is None:
        # Large K tiles: 1536 divides the real fc1 K of 47616 -> ~31 K-steps
        # per N-tile with >1 MiB weight DMAs.
        bk = _pick_tile(K, (1536, 1024, 512, 256, 128)) if K % 128 == 0 else K
    if act == "softmax":
        assert bn == N, "softmax epilogue needs the whole row in one block"
    b2 = jnp.asarray(b, jnp.float32).reshape(1, N)
    grid = (M // bm, N // bn, K // bk)
    return pl.pallas_call(
        functools.partial(_linear_kernel, act=act),
        out_shape=jax.ShapeDtypeStruct((M, N), out_dtype),
        grid=grid,
        in_specs=[
            pl.BlockSpec((bm, bk), lambda i, j, k: (i, k)),
            pl.BlockSpec((bk, bn), lambda i, j, k: (k, j)),
            pl.BlockSpec((1, bn), lambda i, j, k: (0, j)),
        ],
        out_specs=pl.BlockSpec((bm, bn), lambda i, j, k: (i, j)),
        scratch_shapes=[pltpu.VMEM((bm, bn), jnp.float32)],
        compiler_params=pltpu.CompilerParams(
            dimension_semantics=("parallel", "parallel", "arbitrary"),
            vmem_limit_bytes=_vmem_limit_bytes(),
        ),
    )(x, w, b2)


# ----------------------------------------------------------------------------
# Fused encoder layer (one pallas_call per layer).
#   grid = (B, L // tq), both "parallel".
#   Per block: wide QKV projections -> per-head scores/softmax/P@V ->
#   concat heads -> single W_O projection -> add&LN1 -> FFN(ReLU) -> add&LN2.
#   All matmuls: bf16 operands, f32 accumulation.  Output is lane-dense (D last).
# ----------------------------------------------------------------------------

def _encoder_layer_kernel(hq_ref, hkv_ref,
                          wq_ref, bq_ref, wk_ref, bk_ref, wv_ref, bv_ref,
                          wo_ref, bo_ref, g1_ref, be1_ref,
                          w1_ref, b1_ref, w2_ref, b2_ref, g2_ref, be2_ref,
                          o_ref, *, n_head, d_head, eps):
    hq = hq_ref[0]     # (tq, D) bf16 -- query rows (also the residual)
    hkv = hkv_ref[0]   # (L,  D) bf16 -- full sequence for K/V

    # Wide projections (bf16 weights; 1/sqrt(d_head) already folded into wq/bq).
    q = jnp.dot(hq, wq_ref[...], preferred_element_type=jnp.float32) + bq_ref[...]
    k = jnp.dot(hkv, wk_ref[...], preferred_element_type=jnp.float32) + bk_ref[...]
    v = jnp.dot(hkv, wv_ref[...], preferred_element_type=jnp.float32) + bv_ref[...]
    qb = q.astype(jnp.bfloat16)
    kb = k.astype(jnp.bfloat16)
    vb = v.astype(jnp.bfloat16)

    # Per-head attention; contexts concatenated for a single output projection.
    ctxs = []
    for hh in range(n_head):
        lo = hh * d_head
        q_h = qb[:, lo:lo + d_head]                   # (tq, Dh)
        k_h = kb[:, lo:lo + d_head]                   # (L,  Dh)
        v_h = vb[:, lo:lo + d_head]                   # (L,  Dh)
        s = jnp.einsum("qd,kd->qk", q_h, k_h,
                       preferred_element_type=jnp.float32)            # (tq, L)
        m = jnp.max(s, axis=-1, keepdims=True)
        p = jnp.exp(s - m)
        denom = jnp.sum(p, axis=-1, keepdims=True)
        ctx = jnp.dot(p.astype(jnp.bfloat16), v_h,
                      preferred_element_type=jnp.float32)              # (tq, Dh)
        ctxs.append(ctx / denom)      # deferred (exact) softmax normalization
    ctx_all = jnp.concatenate(ctxs, axis=-1)                           # (tq, H*Dh)

    attn = (jnp.dot(ctx_all.astype(jnp.bfloat16), wo_ref[...],
                    preferred_element_type=jnp.float32) + bo_ref[...]) # (tq, D)

    # Residual + LayerNorm 1 (post-LN), f32.
    x1 = attn + hq.astype(jnp.float32)
    mu1 = jnp.mean(x1, axis=-1, keepdims=True)
    var1 = jnp.mean(jnp.square(x1 - mu1), axis=-1, keepdims=True)
    h1 = (x1 - mu1) * jax.lax.rsqrt(var1 + eps)
    h1 = h1 * g1_ref[...] + be1_ref[...]

    # Feed-forward (ReLU), bf16 MXU operands, f32 accumulation.
    ff = (jnp.dot(h1.astype(jnp.bfloat16), w1_ref[...],
                  preferred_element_type=jnp.float32) + b1_ref[...])
    ff = jnp.maximum(ff, 0.0)
    y = (jnp.dot(ff.astype(jnp.bfloat16), w2_ref[...],
                 preferred_element_type=jnp.float32) + b2_ref[...])

    # Residual + LayerNorm 2.
    x2 = y + h1
    mu2 = jnp.mean(x2, axis=-1, keepdims=True)
    var2 = jnp.mean(jnp.square(x2 - mu2), axis=-1, keepdims=True)
    h2 = (x2 - mu2) * jax.lax.rsqrt(var2 + eps)
    h2 = h2 * g2_ref[...] + be2_ref[...]

    o_ref[0] = h2.astype(o_ref.dtype)


def _pick_q_tile(L):
    if L % 8 != 0:
        return L
    for t in (512, 256, 128):
        if L % t == 0 and L // t > 1:
            return t
    return L


def encoder_layer(h, p, *, n_head, d_head, eps=1e-5):
    B, L, D = h.shape
    tq = _pick_q_tile(L)
    nqt = L // tq

    weights = [
        p["wq"], p["bq"], p["wk"], p["bk"], p["wv"], p["bv"],
        p["wo"], p["bo"], p["ln1_g"], p["ln1_b"],
        p["w1"], p["b1"], p["w2"], p["b2"], p["ln2_g"], p["ln2_b"],
    ]

    def const_spec(w):
        nd = w.ndim
        return pl.BlockSpec(w.shape, lambda b, qi, _nd=nd: (0,) * _nd)

    return pl.pallas_call(
        functools.partial(_encoder_layer_kernel, n_head=n_head,
                          d_head=d_head, eps=eps),
        out_shape=jax.ShapeDtypeStruct((B, L, D), jnp.bfloat16),
        grid=(B, nqt),
        in_specs=[pl.BlockSpec((1, tq, D), lambda b, qi: (b, qi, 0)),
                  pl.BlockSpec((1, L, D), lambda b, qi: (b, 0, 0))]
                 + [const_spec(w) for w in weights],
        out_specs=pl.BlockSpec((1, tq, D), lambda b, qi: (b, qi, 0)),
        compiler_params=pltpu.CompilerParams(
            dimension_semantics=("parallel", "parallel"),
            vmem_limit_bytes=_vmem_limit_bytes(),
        ),
    )(h, h, *weights)


# ----------------------------------------------------------------------------
# Parameter init (deterministic, synthetic weights) + one-time inference prep.
# ----------------------------------------------------------------------------

def _dense(key, fan_in, fan_out):
    kw, _ = jax.random.split(key)
    w = jax.random.normal(kw, (fan_in, fan_out), jnp.float32) * 0.02
    b = jnp.zeros((fan_out,), jnp.float32)
    return w, b


def init_params(key, *, in_ch, seq, n_layer, d_model, n_head, d_head, d_ff,
                n_classes, fc1_dim, fc2_dim):
    del seq  # fc1 fan-in comes from the caller via fc1's shape
    keys = jax.random.split(key, 4 + n_layer)
    params = {}
    # Embedding: pointwise Conv1d(in_ch -> d_model, kernel_size=1) == linear.
    params["emb_w"], params["emb_b"] = _dense(keys[0], in_ch, d_model)
    layers = []
    for l in range(n_layer):
        lk = jax.random.split(keys[4 + l], 8)
        p = {}
        p["wq"], p["bq"] = _dense(lk[0], d_model, n_head * d_head)
        p["wk"], p["bk"] = _dense(lk[1], d_model, n_head * d_head)
        p["wv"], p["bv"] = _dense(lk[2], d_model, n_head * d_head)
        p["wo"], p["bo"] = _dense(lk[3], n_head * d_head, d_model)
        p["w1"], p["b1"] = _dense(lk[4], d_model, d_ff)
        p["w2"], p["b2"] = _dense(lk[5], d_ff, d_model)
        p["ln1_g"] = jnp.ones((d_model,), jnp.float32)
        p["ln1_b"] = jnp.zeros((d_model,), jnp.float32)
        p["ln2_g"] = jnp.ones((d_model,), jnp.float32)
        p["ln2_b"] = jnp.zeros((d_model,), jnp.float32)
        layers.append(p)
    params["layers"] = layers
    fc1_in = None  # fc1 fan-in = L * d_model, set below by the caller
    params["fc1_w"], params["fc1_b"] = _dense(keys[1], 0 or 1, fc1_dim) if fc1_in else (None, None)
    return params, keys[1:4]


def prepare_params(raw, fc_keys, *, seq, d_model, n_head, d_head,
                   fc1_dim, fc2_dim, n_classes):
    """One-time inference-layout prep: bf16 matmul weights, (1, N) f32 biases /
    LN params, 1/sqrt(d_head) folded into wq/bq.  Hoisted out of the forward."""
    scale = 1.0 / math.sqrt(d_head)
    bf = jnp.bfloat16

    def row(a):
        return jnp.asarray(a, jnp.float32).reshape(1, -1)

    out = {
        "emb_w": raw["emb_w"].astype(bf),
        "emb_b": raw["emb_b"],
    }
    layers = []
    for p in raw["layers"]:
        layers.append({
            "wq": (p["wq"] * scale).astype(bf), "bq": row(p["bq"] * scale),
            "wk": p["wk"].astype(bf), "bk": row(p["bk"]),
            "wv": p["wv"].astype(bf), "bv": row(p["bv"]),
            "wo": p["wo"].astype(bf), "bo": row(p["bo"]),
            "ln1_g": row(p["ln1_g"]), "ln1_b": row(p["ln1_b"]),
            "w1": p["w1"].astype(bf), "b1": row(p["b1"]),
            "w2": p["w2"].astype(bf), "b2": row(p["b2"]),
            "ln2_g": row(p["ln2_g"]), "ln2_b": row(p["ln2_b"]),
        })
    out["layers"] = layers
    # Classifier head (fc1 fan-in = seq * d_model, matching nn.Linear(47616, 4096)).
    fc1_w, fc1_b = _dense(fc_keys[0], seq * d_model, fc1_dim)
    fc2_w, fc2_b = _dense(fc_keys[1], fc1_dim, fc2_dim)
    fc3_w, fc3_b = _dense(fc_keys[2], fc2_dim, n_classes)
    out["fc1_w"], out["fc1_b"] = fc1_w.astype(bf), fc1_b
    out["fc2_w"], out["fc2_b"] = fc2_w.astype(bf), fc2_b
    out["fc3_w"], out["fc3_b"] = fc3_w.astype(bf), fc3_b
    return out


# ----------------------------------------------------------------------------
# Forward pass
# ----------------------------------------------------------------------------

def transformer_forward(params, x, *, n_head, d_head):
    # x: (B, C, L)  -- PyTorch Conv1d NCL layout
    B, C, L = x.shape
    D = params["emb_w"].shape[1]
    # Embedding (pointwise conv) + the PyTorch .transpose(1, 2) => (B, L, d_model).
    xt = jnp.transpose(x, (0, 2, 1)).reshape(B * L, C)
    h = linear(xt, params["emb_w"], params["emb_b"]).reshape(B, L, D)   # bf16
    # Encoder stack: one fused Pallas kernel per layer (bf16 hidden state).
    for p in params["layers"]:
        h = encoder_layer(h, p, n_head=n_head, d_head=d_head)
    # Flatten + classifier head: K-tiled linears with fused bias/ReLU; exact
    # softmax fused into the fc3 epilogue (f32 output).
    flat = h.reshape(B, L * D)
    y = linear(flat, params["fc1_w"], params["fc1_b"], act="relu")
    y = linear(y, params["fc2_w"], params["fc2_b"], act="relu")
    y = linear(y, params["fc3_w"], params["fc3_b"], act="softmax",
               out_dtype=jnp.float32)
    return y


# ----------------------------------------------------------------------------
# Demo
# ----------------------------------------------------------------------------

if __name__ == "__main__":
    # Small, forward-consistent shapes (scaled down from seq*d_model = 47616).
    B, C, L = 2, 4, 8
    n_layer, d_model, n_head, d_head, d_ff, n_classes = 2, 32, 4, 8, 64, 10
    fc1_dim, fc2_dim = 64, 32

    key = jax.random.PRNGKey(0)
    kx, kp = jax.random.split(key)
    x = jax.random.normal(kx, (B, C, L), jnp.float32)

    raw, fc_keys = init_params(kp, in_ch=C, seq=L, n_layer=n_layer,
                               d_model=d_model, n_head=n_head, d_head=d_head,
                               d_ff=d_ff, n_classes=n_classes,
                               fc1_dim=fc1_dim, fc2_dim=fc2_dim)
    params = prepare_params(raw, fc_keys, seq=L, d_model=d_model, n_head=n_head,
                            d_head=d_head, fc1_dim=fc1_dim, fc2_dim=fc2_dim,
                            n_classes=n_classes)

    fwd = jax.jit(functools.partial(transformer_forward,
                                    n_head=n_head, d_head=d_head))
    out = fwd(params, x)
    out = jax.block_until_ready(out)

    assert out.shape == (B, n_classes)
    # Rows are softmax-normalized probabilities.
    assert bool(jnp.allclose(jnp.sum(out, axis=-1), 1.0, atol=1e-3))
    print("KERNEL_OK")
</pallas_src>

<mosaic_0001>
module attributes {stable_mosaic.version = 11 : i64} {
  func.func @_linear_kernel(%arg0: i32, %arg1: i32, %arg2: i32, %arg3: memref<16x4xf32, #tpu.memory_space<vmem>>, %arg4: memref<4x32xbf16, #tpu.memory_space<vmem>>, %arg5: memref<1x32xf32, #tpu.memory_space<vmem>>, %arg6: memref<16x32xbf16, #tpu.memory_space<vmem>>, %arg7: memref<16x32xf32, #tpu.memory_space<vmem>>) attributes {dimension_semantics = [#tpu.dimension_semantics<parallel>, #tpu.dimension_semantics<parallel>, #tpu.dimension_semantics<arbitrary>], iteration_bounds = array<i64: 1, 1, 1>, scalar_prefetch = 0 : i64, scratch_operands = 1 : i64, tpu.core_type = #tpu.core_type<tc>, window_params = [{transform_indices = @transform_0, window_bounds = array<i64: 16, 4>}, {transform_indices = @transform_1, window_bounds = array<i64: 4, 32>}, {transform_indices = @transform_2, window_bounds = array<i64: 1, 32>}, {transform_indices = @transform_3, window_bounds = array<i64: 16, 32>}]} {
    %c0_i32 = arith.constant 0 : i32
    %0 = arith.cmpi eq, %arg2, %c0_i32 : i32
    %1 = arith.extui %0 : i1 to i32
    %c0_i32_0 = arith.constant 0 : i32
    %2 = arith.cmpi ne, %1, %c0_i32_0 : i32
    scf.if %2 {
      %cst_10 = arith.constant 0.000000e+00 : f32
      %13 = vector.broadcast %cst_10 : f32 to vector<16x32xf32>
      %c0_11 = arith.constant 0 : index
      %c0_12 = arith.constant 0 : index
      %14 = vector.load %arg7[%c0_11, %c0_12] : memref<16x32xf32, #tpu.memory_space<vmem>>, vector<16x32xf32>
      tpu.vector_store %arg7[%c0_11, %c0_12], %13 {strides = array<i32>} : memref<16x32xf32, #tpu.memory_space<vmem>>, vector<16x32xf32>,
    } else {
    }
    %c0 = arith.constant 0 : index
    %c0_1 = arith.constant 0 : index
    %3 = vector.load %arg3[%c0, %c0_1] : memref<16x4xf32, #tpu.memory_space<vmem>>, vector<16x4xf32>
    %4 = arith.truncf %3 : vector<16x4xf32> to vector<16x4xbf16>
    %c0_2 = arith.constant 0 : index
    %c0_3 = arith.constant 0 : index
    %5 = vector.load %arg7[%c0_2, %c0_3] : memref<16x32xf32, #tpu.memory_space<vmem>>, vector<16x32xf32>
    %c0_4 = arith.constant 0 : index
    %c0_5 = arith.constant 0 : index
    %6 = vector.load %arg4[%c0_4, %c0_5] : memref<4x32xbf16, #tpu.memory_space<vmem>>, vector<4x32xbf16>
    %cst = arith.constant dense<0.000000e+00> : vector<16x32xf32>
    %7 = tpu.matmul %4, %6, %cst {dimension_numbers = #tpu.dot_dimension_numbers<[1], [0], [0], [1], [0, 0, 1, 1], [], []>} : vector<16x4xbf16>, vector<4x32xbf16>, vector<16x32xf32> -> vector<16x32xf32>
    %8 = arith.addf %5, %7 : vector<16x32xf32>
    %c0_6 = arith.constant 0 : index
    %c0_7 = arith.constant 0 : index
    %9 = vector.load %arg7[%c0_6, %c0_7] : memref<16x32xf32, #tpu.memory_space<vmem>>, vector<16x32xf32>
    tpu.vector_store %arg7[%c0_6, %c0_7], %8 {strides = array<i32>} : memref<16x32xf32, #tpu.memory_space<vmem>>, vector<16x32xf32>,
    %c0_i32_8 = arith.constant 0 : i32
    %10 = arith.cmpi eq, %arg2, %c0_i32_8 : i32
    %11 = arith.extui %10 : i1 to i32
    %c0_i32_9 = arith.constant 0 : i32
    %12 = arith.cmpi ne, %11, %c0_i32_9 : i32
    scf.if %12 {
      %c0_10 = arith.constant 0 : index
      %c0_11 = arith.constant 0 : index
      %13 = vector.load %arg7[%c0_10, %c0_11] : memref<16x32xf32, #tpu.memory_space<vmem>>, vector<16x32xf32>
      %c0_12 = arith.constant 0 : index
      %c0_13 = arith.constant 0 : index
      %14 = vector.load %arg5[%c0_12, %c0_13] : memref<1x32xf32, #tpu.memory_space<vmem>>, vector<1x32xf32>
      %15 = vector.broadcast %14 : vector<1x32xf32> to vector<16x32xf32>
      %16 = arith.addf %13, %15 : vector<16x32xf32>
      %17 = arith.truncf %16 : vector<16x32xf32> to vector<16x32xbf16>
      %c0_14 = arith.constant 0 : index
      %c0_15 = arith.constant 0 : index
      %18 = vector.load %arg6[%c0_14, %c0_15] : memref<16x32xbf16, #tpu.memory_space<vmem>>, vector<16x32xbf16>
      tpu.vector_store %arg6[%c0_14, %c0_15], %17 {strides = array<i32>} : memref<16x32xbf16, #tpu.memory_space<vmem>>, vector<16x32xbf16>,
    } else {
    }
    return
  }
  func.func @transform_0(%arg0: i32, %arg1: i32, %arg2: i32) -> (i32, i32) {
    %c0_i32 = arith.constant 0 : i32
    return %arg0, %arg2 : i32, i32
  }
  func.func @transform_1(%arg0: i32, %arg1: i32, %arg2: i32) -> (i32, i32) {
    %c0_i32 = arith.constant 0 : i32
    return %arg2, %arg1 : i32, i32
  }
  func.func @transform_2(%arg0: i32, %arg1: i32, %arg2: i32) -> (i32, i32) {
    %c0_i32 = arith.constant 0 : i32
    %c0_i32_0 = arith.constant 0 : i32
    return %c0_i32, %arg1 : i32, i32
  }
  func.func @transform_3(%arg0: i32, %arg1: i32, %arg2: i32) -> (i32, i32) {
    %c0_i32 = arith.constant 0 : i32
    return %arg0, %arg1 : i32, i32
  }
}

module attributes {stable_mosaic.version = 11 : i64} {
  func.func @_encoder_layer_kernel(%arg0: i32, %arg1: i32, %arg2: memref<1x8x32xbf16, #tpu.memory_space<vmem>>, %arg3: memref<1x8x32xbf16, #tpu.memory_space<vmem>>, %arg4: memref<32x32xbf16, #tpu.memory_space<vmem>>, %arg5: memref<1x32xf32, #tpu.memory_space<vmem>>, %arg6: memref<32x32xbf16, #tpu.memory_space<vmem>>, %arg7: memref<1x32xf32, #tpu.memory_space<vmem>>, %arg8: memref<32x32xbf16, #tpu.memory_space<vmem>>, %arg9: memref<1x32xf32, #tpu.memory_space<vmem>>, %arg10: memref<32x32xbf16, #tpu.memory_space<vmem>>, %arg11: memref<1x32xf32, #tpu.memory_space<vmem>>, %arg12: memref<1x32xf32, #tpu.memory_space<vmem>>, %arg13: memref<1x32xf32, #tpu.memory_space<vmem>>, %arg14: memref<32x64xbf16, #tpu.memory_space<vmem>>, %arg15: memref<1x64xf32, #tpu.memory_space<vmem>>, %arg16: memref<64x32xbf16, #tpu.memory_space<vmem>>, %arg17: memref<1x32xf32, #tpu.memory_space<vmem>>, %arg18: memref<1x32xf32, #tpu.memory_space<vmem>>, %arg19: memref<1x32xf32, #tpu.memory_space<vmem>>, %arg20: memref<1x8x32xbf16, #tpu.memory_space<vmem>>) attributes {dimension_semantics = [#tpu.dimension_semantics<parallel>, #tpu.dimension_semantics<parallel>], iteration_bounds = array<i64: 2, 1>, scalar_prefetch = 0 : i64, scratch_operands = 0 : i64, tpu.core_type = #tpu.core_type<tc>, window_params = [{transform_indices = @transform_0, window_bounds = array<i64: 1, 8, 32>}, {transform_indices = @transform_1, window_bounds = array<i64: 1, 8, 32>}, {pipeline_mode = #tpu.pipeline_mode<synchronous>, transform_indices = @transform_2, window_bounds = array<i64: 32, 32>}, {pipeline_mode = #tpu.pipeline_mode<synchronous>, transform_indices = @transform_3, window_bounds = array<i64: 1, 32>}, {pipeline_mode = #tpu.pipeline_mode<synchronous>, transform_indices = @transform_4, window_bounds = array<i64: 32, 32>}, {pipeline_mode = #tpu.pipeline_mode<synchronous>, transform_indices = @transform_5, window_bounds = array<i64: 1, 32>}, {pipeline_mode = #tpu.pipeline_mode<synchronous>, transform_indices = @transform_6, window_bounds = array<i64: 32, 32>}, {pipeline_mode = #tpu.pipeline_mode<synchronous>, transform_indices = @transform_7, window_bounds = array<i64: 1, 32>}, {pipeline_mode = #tpu.pipeline_mode<synchronous>, transform_indices = @transform_8, window_bounds = array<i64: 32, 32>}, {pipeline_mode = #tpu.pipeline_mode<synchronous>, transform_indices = @transform_9, window_bounds = array<i64: 1, 32>}, {pipeline_mode = #tpu.pipeline_mode<synchronous>, transform_indices = @transform_10, window_bounds = array<i64: 1, 32>}, {pipeline_mode = #tpu.pipeline_mode<synchronous>, transform_indices = @transform_11, window_bounds = array<i64: 1, 32>}, {pipeline_mode = #tpu.pipeline_mode<synchronous>, transform_indices = @transform_12, window_bounds = array<i64: 32, 64>}, {pipeline_mode = #tpu.pipeline_mode<synchronous>, transform_indices = @transform_13, window_bounds = array<i64: 1, 64>}, {pipeline_mode = #tpu.pipeline_mode<synchronous>, transform_indices = @transform_14, window_bounds = array<i64: 64, 32>}, {pipeline_mode = #tpu.pipeline_mode<synchronous>, transform_indices = @transform_15, window_bounds = array<i64: 1, 32>}, {pipeline_mode = #tpu.pipeline_mode<synchronous>, transform_indices = @transform_16, window_bounds = array<i64: 1, 32>}, {pipeline_mode = #tpu.pipeline_mode<synchronous>, transform_indices = @transform_17, window_bounds = array<i64: 1, 32>}, {transform_indices = @transform_18, window_bounds = array<i64: 1, 8, 32>}]} {
    %c0 = arith.constant 0 : index
    %c0_0 = arith.constant 0 : index
    %c0_1 = arith.constant 0 : index
    %0 = vector.load %arg2[%c0, %c0_0, %c0_1] : memref<1x8x32xbf16, #tpu.memory_space<vmem>>, vector<1x8x32xbf16>
    %1 = vector.shape_cast %0 : vector<1x8x32xbf16> to vector<8x32xbf16>
    %c0_2 = arith.constant 0 : index
    %c0_3 = arith.constant 0 : index
    %c0_4 = arith.constant 0 : index
    %2 = vector.load %arg3[%c0_2, %c0_3, %c0_4] : memref<1x8x32xbf16, #tpu.memory_space<vmem>>, vector<1x8x32xbf16>
    %3 = vector.shape_cast %2 : vector<1x8x32xbf16> to vector<8x32xbf16>
    %c0_5 = arith.constant 0 : index
    %c0_6 = arith.constant 0 : index
    %4 = vector.load %arg4[%c0_5, %c0_6] : memref<32x32xbf16, #tpu.memory_space<vmem>>, vector<32x32xbf16>
    %cst = arith.constant dense<0.000000e+00> : vector<8x32xf32>
    %5 = tpu.matmul %1, %4, %cst {dimension_numbers = #tpu.dot_dimension_numbers<[1], [0], [0], [1], [0, 0, 1, 1], [], []>} : vector<8x32xbf16>, vector<32x32xbf16>, vector<8x32xf32> -> vector<8x32xf32>
    %c0_7 = arith.constant 0 : index
    %c0_8 = arith.constant 0 : index
    %6 = vector.load %arg5[%c0_7, %c0_8] : memref<1x32xf32, #tpu.memory_space<vmem>>, vector<1x32xf32>
    %7 = vector.broadcast %6 : vector<1x32xf32> to vector<8x32xf32>
    %8 = arith.addf %5, %7 : vector<8x32xf32>
    %c0_9 = arith.constant 0 : index
    %c0_10 = arith.constant 0 : index
    %9 = vector.load %arg6[%c0_9, %c0_10] : memref<32x32xbf16, #tpu.memory_space<vmem>>, vector<32x32xbf16>
    %cst_11 = arith.constant dense<0.000000e+00> : vector<8x32xf32>
    %10 = tpu.matmul %3, %9, %cst_11 {dimension_numbers = #tpu.dot_dimension_numbers<[1], [0], [0], [1], [0, 0, 1, 1], [], []>} : vector<8x32xbf16>, vector<32x32xbf16>, vector<8x32xf32> -> vector<8x32xf32>
    %c0_12 = arith.constant 0 : index
    %c0_13 = arith.constant 0 : index
    %11 = vector.load %arg7[%c0_12, %c0_13] : memref<1x32xf32, #tpu.memory_space<vmem>>, vector<1x32xf32>
    %12 = vector.broadcast %11 : vector<1x32xf32> to vector<8x32xf32>
    %13 = arith.addf %10, %12 : vector<8x32xf32>
    %c0_14 = arith.constant 0 : index
    %c0_15 = arith.constant 0 : index
    %14 = vector.load %arg8[%c0_14, %c0_15] : memref<32x32xbf16, #tpu.memory_space<vmem>>, vector<32x32xbf16>
    %cst_16 = arith.constant dense<0.000000e+00> : vector<8x32xf32>
    %15 = tpu.matmul %3, %14, %cst_16 {dimension_numbers = #tpu.dot_dimension_numbers<[1], [0], [0], [1], [0, 0, 1, 1], [], []>} : vector<8x32xbf16>, vector<32x32xbf16>, vector<8x32xf32> -> vector<8x32xf32>
    %c0_17 = arith.constant 0 : index
    %c0_18 = arith.constant 0 : index
    %16 = vector.load %arg9[%c0_17, %c0_18] : memref<1x32xf32, #tpu.memory_space<vmem>>, vector<1x32xf32>
    %17 = vector.broadcast %16 : vector<1x32xf32> to vector<8x32xf32>
    %18 = arith.addf %15, %17 : vector<8x32xf32>
    %19 = arith.truncf %8 : vector<8x32xf32> to vector<8x32xbf16>
    %20 = arith.truncf %13 : vector<8x32xf32> to vector<8x32xbf16>
    %21 = arith.truncf %18 : vector<8x32xf32> to vector<8x32xbf16>
    %22 = vector.extract_strided_slice %19 {offsets = [0, 0], sizes = [8, 8], strides = [1, 1]} : vector<8x32xbf16> to vector<8x8xbf16>
    %23 = vector.extract_strided_slice %20 {offsets = [0, 0], sizes = [8, 8], strides = [1, 1]} : vector<8x32xbf16> to vector<8x8xbf16>
    %24 = vector.extract_strided_slice %21 {offsets = [0, 0], sizes = [8, 8], strides = [1, 1]} : vector<8x32xbf16> to vector<8x8xbf16>
    "tpu.trace_start"() <{level = 10 : i32, message = "qd,kd->qk"}> : () -> ()
    %cst_19 = arith.constant dense<0.000000e+00> : vector<8x8xf32>
    %25 = tpu.matmul %22, %23, %cst_19 {dimension_numbers = #tpu.dot_dimension_numbers<[1], [1], [0], [0], [0, 0, 1, 0], [], []>} : vector<8x8xbf16>, vector<8x8xbf16>, vector<8x8xf32> -> vector<8x8xf32>
    "tpu.trace_stop"() : () -> ()
    %cst_20 = arith.constant dense<0xFF800000> : vector<8xf32>
    %26 = vector.multi_reduction <maximumf>, %25, %cst_20 [1] : vector<8x8xf32> to vector<8xf32>
    %27 = vector.shape_cast %26 : vector<8xf32> to vector<8x1xf32>
    %28 = vector.broadcast %27 : vector<8x1xf32> to vector<8x8xf32>
    %29 = arith.subf %25, %28 : vector<8x8xf32>
    %30 = math.exp %29 : vector<8x8xf32>
    %cst_21 = arith.constant dense<0.000000e+00> : vector<8xf32>
    %31 = vector.multi_reduction <add>, %30, %cst_21 [1] : vector<8x8xf32> to vector<8xf32>
    %32 = vector.shape_cast %31 : vector<8xf32> to vector<8x1xf32>
    %33 = arith.truncf %30 : vector<8x8xf32> to vector<8x8xbf16>
    %cst_22 = arith.constant dense<0.000000e+00> : vector<8x8xf32>
    %34 = tpu.matmul %33, %24, %cst_22 {dimension_numbers = #tpu.dot_dimension_numbers<[1], [0], [0], [1], [0, 0, 1, 1], [], []>} : vector<8x8xbf16>, vector<8x8xbf16>, vector<8x8xf32> -> vector<8x8xf32>
    %35 = vector.broadcast %32 : vector<8x1xf32> to vector<8x8xf32>
    %36 = arith.divf %34, %35 : vector<8x8xf32>
    %37 = vector.extract_strided_slice %19 {offsets = [0, 8], sizes = [8, 8], strides = [1, 1]} : vector<8x32xbf16> to vector<8x8xbf16>
    %38 = vector.extract_strided_slice %20 {offsets = [0, 8], sizes = [8, 8], strides = [1, 1]} : vector<8x32xbf16> to vector<8x8xbf16>
    %39 = vector.extract_strided_slice %21 {offsets = [0, 8], sizes = [8, 8], strides = [1, 1]} : vector<8x32xbf16> to vector<8x8xbf16>
    "tpu.trace_start"() <{level = 10 : i32, message = "qd,kd->qk"}> : () -> ()
    %cst_23 = arith.constant dense<0.000000e+00> : vector<8x8xf32>
    %40 = tpu.matmul %37, %38, %cst_23 {dimension_numbers = #tpu.dot_dimension_numbers<[1], [1], [0], [0], [0, 0, 1, 0], [], []>} : vector<8x8xbf16>, vector<8x8xbf16>, vector<8x8xf32> -> vector<8x8xf32>
    "tpu.trace_stop"() : () -> ()
    %cst_24 = arith.constant dense<0xFF800000> : vector<8xf32>
    %41 = vector.multi_reduction <maximumf>, %40, %cst_24 [1] : vector<8x8xf32> to vector<8xf32>
    %42 = vector.shape_cast %41 : vector<8xf32> to vector<8x1xf32>
    %43 = vector.broadcast %42 : vector<8x1xf32> to vector<8x8xf32>
    %44 = arith.subf %40, %43 : vector<8x8xf32>
    %45 = math.exp %44 : vector<8x8xf32>
    %cst_25 = arith.constant dense<0.000000e+00> : vector<8xf32>
    %46 = vector.multi_reduction <add>, %45, %cst_25 [1] : vector<8x8xf32> to vector<8xf32>
    %47 = vector.shape_cast %46 : vector<8xf32> to vector<8x1xf32>
    %48 = arith.truncf %45 : vector<8x8xf32> to vector<8x8xbf16>
    %cst_26 = arith.constant dense<0.000000e+00> : vector<8x8xf32>
    %49 = tpu.matmul %48, %39, %cst_26 {dimension_numbers = #tpu.dot_dimension_numbers<[1], [0], [0], [1], [0, 0, 1, 1], [], []>} : vector<8x8xbf16>, vector<8x8xbf16>, vector<8x8xf32> -> vector<8x8xf32>
    %50 = vector.broadcast %47 : vector<8x1xf32> to vector<8x8xf32>
    %51 = arith.divf %49, %50 : vector<8x8xf32>
    %52 = vector.extract_strided_slice %19 {offsets = [0, 16], sizes = [8, 8], strides = [1, 1]} : vector<8x32xbf16> to vector<8x8xbf16>
    %53 = vector.extract_strided_slice %20 {offsets = [0, 16], sizes = [8, 8], strides = [1, 1]} : vector<8x32xbf16> to vector<8x8xbf16>
    %54 = vector.extract_strided_slice %21 {offsets = [0, 16], sizes = [8, 8], strides = [1, 1]} : vector<8x32xbf16> to vector<8x8xbf16>
    "tpu.trace_start"() <{level = 10 : i32, message = "qd,kd->qk"}> : () -> ()
    %cst_27 = arith.constant dense<0.000000e+00> : vector<8x8xf32>
    %55 = tpu.matmul %52, %53, %cst_27 {dimension_numbers = #tpu.dot_dimension_numbers<[1], [1], [0], [0], [0, 0, 1, 0], [], []>} : vector<8x8xbf16>, vector<8x8xbf16>, vector<8x8xf32> -> vector<8x8xf32>
    "tpu.trace_stop"() : () -> ()
    %cst_28 = arith.constant dense<0xFF800000> : vector<8xf32>
    %56 = vector.multi_reduction <maximumf>, %55, %cst_28 [1] : vector<8x8xf32> to vector<8xf32>
    %57 = vector.shape_cast %56 : vector<8xf32> to vector<8x1xf32>
    %58 = vector.broadcast %57 : vector<8x1xf32> to vector<8x8xf32>
    %59 = arith.subf %55, %58 : vector<8x8xf32>
    %60 = math.exp %59 : vector<8x8xf32>
    %cst_29 = arith.constant dense<0.000000e+00> : vector<8xf32>
    %61 = vector.multi_reduction <add>, %60, %cst_29 [1] : vector<8x8xf32> to vector<8xf32>
    %62 = vector.shape_cast %61 : vector<8xf32> to vector<8x1xf32>
    %63 = arith.truncf %60 : vector<8x8xf32> to vector<8x8xbf16>
    %cst_30 = arith.constant dense<0.000000e+00> : vector<8x8xf32>
    %64 = tpu.matmul %63, %54, %cst_30 {dimension_numbers = #tpu.dot_dimension_numbers<[1], [0], [0], [1], [0, 0, 1, 1], [], []>} : vector<8x8xbf16>, vector<8x8xbf16>, vector<8x8xf32> -> vector<8x8xf32>
    %65 = vector.broadcast %62 : vector<8x1xf32> to vector<8x8xf32>
    %66 = arith.divf %64, %65 : vector<8x8xf32>
    %67 = vector.extract_strided_slice %19 {offsets = [0, 24], sizes = [8, 8], strides = [1, 1]} : vector<8x32xbf16> to vector<8x8xbf16>
    %68 = vector.extract_strided_slice %20 {offsets = [0, 24], sizes = [8, 8], strides = [1, 1]} : vector<8x32xbf16> to vector<8x8xbf16>
    %69 = vector.extract_strided_slice %21 {offsets = [0, 24], sizes = [8, 8], strides = [1, 1]} : vector<8x32xbf16> to vector<8x8xbf16>
    "tpu.trace_start"() <{level = 10 : i32, message = "qd,kd->qk"}> : () -> ()
    %cst_31 = arith.constant dense<0.000000e+00> : vector<8x8xf32>
    %70 = tpu.matmul %67, %68, %cst_31 {dimension_numbers = #tpu.dot_dimension_numbers<[1], [1], [0], [0], [0, 0, 1, 0], [], []>} : vector<8x8xbf16>, vector<8x8xbf16>, vector<8x8xf32> -> vector<8x8xf32>
    "tpu.trace_stop"() : () -> ()
    %cst_32 = arith.constant dense<0xFF800000> : vector<8xf32>
    %71 = vector.multi_reduction <maximumf>, %70, %cst_32 [1] : vector<8x8xf32> to vector<8xf32>
    %72 = vector.shape_cast %71 : vector<8xf32> to vector<8x1xf32>
    %73 = vector.broadcast %72 : vector<8x1xf32> to vector<8x8xf32>
    %74 = arith.subf %70, %73 : vector<8x8xf32>
    %75 = math.exp %74 : vector<8x8xf32>
    %cst_33 = arith.constant dense<0.000000e+00> : vector<8xf32>
    %76 = vector.multi_reduction <add>, %75, %cst_33 [1] : vector<8x8xf32> to vector<8xf32>
    %77 = vector.shape_cast %76 : vector<8xf32> to vector<8x1xf32>
    %78 = arith.truncf %75 : vector<8x8xf32> to vector<8x8xbf16>
    %cst_34 = arith.constant dense<0.000000e+00> : vector<8x8xf32>
    %79 = tpu.matmul %78, %69, %cst_34 {dimension_numbers = #tpu.dot_dimension_numbers<[1], [0], [0], [1], [0, 0, 1, 1], [], []>} : vector<8x8xbf16>, vector<8x8xbf16>, vector<8x8xf32> -> vector<8x8xf32>
    %80 = vector.broadcast %77 : vector<8x1xf32> to vector<8x8xf32>
    %81 = arith.divf %79, %80 : vector<8x8xf32>
    %82 = tpu.concatenate %36, %51, %66, %81 in 1 : vector<8x8xf32>, vector<8x8xf32>, vector<8x8xf32>, vector<8x8xf32> -> vector<8x32xf32>
    %83 = arith.truncf %82 : vector<8x32xf32> to vector<8x32xbf16>
    %c0_35 = arith.constant 0 : index
    %c0_36 = arith.constant 0 : index
    %84 = vector.load %arg10[%c0_35, %c0_36] : memref<32x32xbf16, #tpu.memory_space<vmem>>, vector<32x32xbf16>
    %cst_37 = arith.constant dense<0.000000e+00> : vector<8x32xf32>
    %85 = tpu.matmul %83, %84, %cst_37 {dimension_numbers = #tpu.dot_dimension_numbers<[1], [0], [0], [1], [0, 0, 1, 1], [], []>} : vector<8x32xbf16>, vector<32x32xbf16>, vector<8x32xf32> -> vector<8x32xf32>
    %c0_38 = arith.constant 0 : index
    %c0_39 = arith.constant 0 : index
    %86 = vector.load %arg11[%c0_38, %c0_39] : memref<1x32xf32, #tpu.memory_space<vmem>>, vector<1x32xf32>
    %87 = vector.broadcast %86 : vector<1x32xf32> to vector<8x32xf32>
    %88 = arith.addf %85, %87 : vector<8x32xf32>
    %89 = arith.extf %1 : vector<8x32xbf16> to vector<8x32xf32>
    %90 = arith.addf %88, %89 : vector<8x32xf32>
    %cst_40 = arith.constant dense<0.000000e+00> : vector<8xf32>
    %91 = vector.multi_reduction <add>, %90, %cst_40 [1] : vector<8x32xf32> to vector<8xf32>
    %92 = vector.shape_cast %91 : vector<8xf32> to vector<8x1xf32>
    %cst_41 = arith.constant 3.200000e+01 : f32
    %93 = vector.broadcast %cst_41 : f32 to vector<8x1xf32>
    %94 = arith.divf %92, %93 : vector<8x1xf32>
    %95 = vector.broadcast %94 : vector<8x1xf32> to vector<8x32xf32>
    %96 = arith.subf %90, %95 : vector<8x32xf32>
    %97 = arith.mulf %96, %96 : vector<8x32xf32>
    %cst_42 = arith.constant dense<0.000000e+00> : vector<8xf32>
    %98 = vector.multi_reduction <add>, %97, %cst_42 [1] : vector<8x32xf32> to vector<8xf32>
    %99 = vector.shape_cast %98 : vector<8xf32> to vector<8x1xf32>
    %cst_43 = arith.constant 3.200000e+01 : f32
    %100 = vector.broadcast %cst_43 : f32 to vector<8x1xf32>
    %101 = arith.divf %99, %100 : vector<8x1xf32>
    %102 = vector.broadcast %94 : vector<8x1xf32> to vector<8x32xf32>
    %103 = arith.subf %90, %102 : vector<8x32xf32>
    %cst_44 = arith.constant 9.99999974E-6 : f32
    %104 = vector.broadcast %cst_44 : f32 to vector<8x1xf32>
    %105 = arith.addf %101, %104 : vector<8x1xf32>
    %106 = math.rsqrt %105 : vector<8x1xf32>
    %107 = vector.broadcast %106 : vector<8x1xf32> to vector<8x32xf32>
    %108 = arith.mulf %103, %107 : vector<8x32xf32>
    %c0_45 = arith.constant 0 : index
    %c0_46 = arith.constant 0 : index
    %109 = vector.load %arg12[%c0_45, %c0_46] : memref<1x32xf32, #tpu.memory_space<vmem>>, vector<1x32xf32>
    %110 = vector.broadcast %109 : vector<1x32xf32> to vector<8x32xf32>
    %111 = arith.mulf %108, %110 : vector<8x32xf32>
    %c0_47 = arith.constant 0 : index
    %c0_48 = arith.constant 0 : index
    %112 = vector.load %arg13[%c0_47, %c0_48] : memref<1x32xf32, #tpu.memory_space<vmem>>, vector<1x32xf32>
    %113 = vector.broadcast %112 : vector<1x32xf32> to vector<8x32xf32>
    %114 = arith.addf %111, %113 : vector<8x32xf32>
    %115 = arith.truncf %114 : vector<8x32xf32> to vector<8x32xbf16>
    %c0_49 = arith.constant 0 : index
    %c0_50 = arith.constant 0 : index
    %116 = vector.load %arg14[%c0_49, %c0_50] : memref<32x64xbf16, #tpu.memory_space<vmem>>, vector<32x64xbf16>
    %cst_51 = arith.constant dense<0.000000e+00> : vector<8x64xf32>
    %117 = tpu.matmul %115, %116, %cst_51 {dimension_numbers = #tpu.dot_dimension_numbers<[1], [0], [0], [1], [0, 0, 1, 1], [], []>} : vector<8x32xbf16>, vector<32x64xbf16>, vector<8x64xf32> -> vector<8x64xf32>
    %c0_52 = arith.constant 0 : index
    %c0_53 = arith.constant 0 : index
    %118 = vector.load %arg15[%c0_52, %c0_53] : memref<1x64xf32, #tpu.memory_space<vmem>>, vector<1x64xf32>
    %119 = vector.broadcast %118 : vector<1x64xf32> to vector<8x64xf32>
    %120 = arith.addf %117, %119 : vector<8x64xf32>
    %cst_54 = arith.constant 0.000000e+00 : f32
    %121 = vector.broadcast %cst_54 : f32 to vector<8x64xf32>
    %122 = arith.maximumf %120, %121 : vector<8x64xf32>
    %123 = arith.truncf %122 : vector<8x64xf32> to vector<8x64xbf16>
    %c0_55 = arith.constant 0 : index
    %c0_56 = arith.constant 0 : index
    %124 = vector.load %arg16[%c0_55, %c0_56] : memref<64x32xbf16, #tpu.memory_space<vmem>>, vector<64x32xbf16>
    %cst_57 = arith.constant dense<0.000000e+00> : vector<8x32xf32>
    %125 = tpu.matmul %123, %124, %cst_57 {dimension_numbers = #tpu.dot_dimension_numbers<[1], [0], [0], [1], [0, 0, 1, 1], [], []>} : vector<8x64xbf16>, vector<64x32xbf16>, vector<8x32xf32> -> vector<8x32xf32>
    %c0_58 = arith.constant 0 : index
    %c0_59 = arith.constant 0 : index
    %126 = vector.load %arg17[%c0_58, %c0_59] : memref<1x32xf32, #tpu.memory_space<vmem>>, vector<1x32xf32>
    %127 = vector.broadcast %126 : vector<1x32xf32> to vector<8x32xf32>
    %128 = arith.addf %125, %127 : vector<8x32xf32>
    %129 = arith.addf %128, %114 : vector<8x32xf32>
    %cst_60 = arith.constant dense<0.000000e+00> : vector<8xf32>
    %130 = vector.multi_reduction <add>, %129, %cst_60 [1] : vector<8x32xf32> to vector<8xf32>
    %131 = vector.shape_cast %130 : vector<8xf32> to vector<8x1xf32>
    %cst_61 = arith.constant 3.200000e+01 : f32
    %132 = vector.broadcast %cst_61 : f32 to vector<8x1xf32>
    %133 = arith.divf %131, %132 : vector<8x1xf32>
    %134 = vector.broadcast %133 : vector<8x1xf32> to vector<8x32xf32>
    %135 = arith.subf %129, %134 : vector<8x32xf32>
    %136 = arith.mulf %135, %135 : vector<8x32xf32>
    %cst_62 = arith.constant dense<0.000000e+00> : vector<8xf32>
    %137 = vector.multi_reduction <add>, %136, %cst_62 [1] : vector<8x32xf32> to vector<8xf32>
    %138 = vector.shape_cast %137 : vector<8xf32> to vector<8x1xf32>
    %cst_63 = arith.constant 3.200000e+01 : f32
    %139 = vector.broadcast %cst_63 : f32 to vector<8x1xf32>
    %140 = arith.divf %138, %139 : vector<8x1xf32>
    %141 = vector.broadcast %133 : vector<8x1xf32> to vector<8x32xf32>
    %142 = arith.subf %129, %141 : vector<8x32xf32>
    %cst_64 = arith.constant 9.99999974E-6 : f32
    %143 = vector.broadcast %cst_64 : f32 to vector<8x1xf32>
    %144 = arith.addf %140, %143 : vector<8x1xf32>
    %145 = math.rsqrt %144 : vector<8x1xf32>
    %146 = vector.broadcast %145 : vector<8x1xf32> to vector<8x32xf32>
    %147 = arith.mulf %142, %146 : vector<8x32xf32>
    %c0_65 = arith.constant 0 : index
    %c0_66 = arith.constant 0 : index
    %148 = vector.load %arg18[%c0_65, %c0_66] : memref<1x32xf32, #tpu.memory_space<vmem>>, vector<1x32xf32>
    %149 = vector.broadcast %148 : vector<1x32xf32> to vector<8x32xf32>
    %150 = arith.mulf %147, %149 : vector<8x32xf32>
    %c0_67 = arith.constant 0 : index
    %c0_68 = arith.constant 0 : index
    %151 = vector.load %arg19[%c0_67, %c0_68] : memref<1x32xf32, #tpu.memory_space<vmem>>, vector<1x32xf32>
    %152 = vector.broadcast %151 : vector<1x32xf32> to vector<8x32xf32>
    %153 = arith.addf %150, %152 : vector<8x32xf32>
    %154 = arith.truncf %153 : vector<8x32xf32> to vector<8x32xbf16>
    %c0_69 = arith.constant 0 : index
    %c0_70 = arith.constant 0 : index
    %c0_71 = arith.constant 0 : index
    %155 = vector.load %arg20[%c0_69, %c0_70, %c0_71] : memref<1x8x32xbf16, #tpu.memory_space<vmem>>, vector<1x8x32xbf16>
    %156 = vector.shape_cast %155 : vector<1x8x32xbf16> to vector<8x32xbf16>
    %157 = vector.shape_cast %154 : vector<8x32xbf16> to vector<1x8x32xbf16>
    tpu.vector_store %arg20[%c0_69, %c0_70, %c0_71], %157 {strides = array<i32>} : memref<1x8x32xbf16, #tpu.memory_space<vmem>>, vector<1x8x32xbf16>,
    return
  }
  func.func @transform_0(%arg0: i32, %arg1: i32) -> (i32, i32, i32) {
    %c0_i32 = arith.constant 0 : i32
    %c0_i32_0 = arith.constant 0 : i32
    return %arg0, %arg1, %c0_i32 : i32, i32, i32
  }
  func.func @transform_1(%arg0: i32, %arg1: i32) -> (i32, i32, i32) {
    %c0_i32 = arith.constant 0 : i32
    %c0_i32_0 = arith.constant 0 : i32
    %c0_i32_1 = arith.constant 0 : i32
    return %arg0, %c0_i32, %c0_i32_0 : i32, i32, i32
  }
  func.func @transform_2(%arg0: i32, %arg1: i32) -> (i32, i32) {
    %c0_i32 = arith.constant 0 : i32
    %c0_i32_0 = arith.constant 0 : i32
    %c0_i32_1 = arith.constant 0 : i32
    return %c0_i32, %c0_i32_0 : i32, i32
  }
  func.func @transform_3(%arg0: i32, %arg1: i32) -> (i32, i32) {
    %c0_i32 = arith.constant 0 : i32
    %c0_i32_0 = arith.constant 0 : i32
    %c0_i32_1 = arith.constant 0 : i32
    return %c0_i32, %c0_i32_0 : i32, i32
  }
  func.func @transform_4(%arg0: i32, %arg1: i32) -> (i32, i32) {
    %c0_i32 = arith.constant 0 : i32
    %c0_i32_0 = arith.constant 0 : i32
    %c0_i32_1 = arith.constant 0 : i32
    return %c0_i32, %c0_i32_0 : i32, i32
  }
  func.func @transform_5(%arg0: i32, %arg1: i32) -> (i32, i32) {
    %c0_i32 = arith.constant 0 : i32
    %c0_i32_0 = arith.constant 0 : i32
    %c0_i32_1 = arith.constant 0 : i32
    return %c0_i32, %c0_i32_0 : i32, i32
  }
  func.func @transform_6(%arg0: i32, %arg1: i32) -> (i32, i32) {
    %c0_i32 = arith.constant 0 : i32
    %c0_i32_0 = arith.constant 0 : i32
    %c0_i32_1 = arith.constant 0 : i32
    return %c0_i32, %c0_i32_0 : i32, i32
  }
  func.func @transform_7(%arg0: i32, %arg1: i32) -> (i32, i32) {
    %c0_i32 = arith.constant 0 : i32
    %c0_i32_0 = arith.constant 0 : i32
    %c0_i32_1 = arith.constant 0 : i32
    return %c0_i32, %c0_i32_0 : i32, i32
  }
  func.func @transform_8(%arg0: i32, %arg1: i32) -> (i32, i32) {
    %c0_i32 = arith.constant 0 : i32
    %c0_i32_0 = arith.constant 0 : i32
    %c0_i32_1 = arith.constant 0 : i32
    return %c0_i32, %c0_i32_0 : i32, i32
  }
  func.func @transform_9(%arg0: i32, %arg1: i32) -> (i32, i32) {
    %c0_i32 = arith.constant 0 : i32
    %c0_i32_0 = arith.constant 0 : i32
    %c0_i32_1 = arith.constant 0 : i32
    return %c0_i32, %c0_i32_0 : i32, i32
  }
  func.func @transform_10(%arg0: i32, %arg1: i32) -> (i32, i32) {
    %c0_i32 = arith.constant 0 : i32
    %c0_i32_0 = arith.constant 0 : i32
    %c0_i32_1 = arith.constant 0 : i32
    return %c0_i32, %c0_i32_0 : i32, i32
  }
  func.func @transform_11(%arg0: i32, %arg1: i32) -> (i32, i32) {
    %c0_i32 = arith.constant 0 : i32
    %c0_i32_0 = arith.constant 0 : i32
    %c0_i32_1 = arith.constant 0 : i32
    return %c0_i32, %c0_i32_0 : i32, i32
  }
  func.func @transform_12(%arg0: i32, %arg1: i32) -> (i32, i32) {
    %c0_i32 = arith.constant 0 : i32
    %c0_i32_0 = arith.constant 0 : i32
    %c0_i32_1 = arith.constant 0 : i32
    return %c0_i32, %c0_i32_0 : i32, i32
  }
  func.func @transform_13(%arg0: i32, %arg1: i32) -> (i32, i32) {
    %c0_i32 = arith.constant 0 : i32
    %c0_i32_0 = arith.constant 0 : i32
    %c0_i32_1 = arith.constant 0 : i32
    return %c0_i32, %c0_i32_0 : i32, i32
  }
  func.func @transform_14(%arg0: i32, %arg1: i32) -> (i32, i32) {
    %c0_i32 = arith.constant 0 : i32
    %c0_i32_0 = arith.constant 0 : i32
    %c0_i32_1 = arith.constant 0 : i32
    return %c0_i32, %c0_i32_0 : i32, i32
  }
  func.func @transform_15(%arg0: i32, %arg1: i32) -> (i32, i32) {
    %c0_i32 = arith.constant 0 : i32
    %c0_i32_0 = arith.constant 0 : i32
    %c0_i32_1 = arith.constant 0 : i32
    return %c0_i32, %c0_i32_0 : i32, i32
  }
  func.func @transform_16(%arg0: i32, %arg1: i32) -> (i32, i32) {
    %c0_i32 = arith.constant 0 : i32
    %c0_i32_0 = arith.constant 0 : i32
    %c0_i32_1 = arith.constant 0 : i32
    return %c0_i32, %c0_i32_0 : i32, i32
  }
  func.func @transform_17(%arg0: i32, %arg1: i32) -> (i32, i32) {
    %c0_i32 = arith.constant 0 : i32
    %c0_i32_0 = arith.constant 0 : i32
    %c0_i32_1 = arith.constant 0 : i32
    return %c0_i32, %c0_i32_0 : i32, i32
  }
  func.func @transform_18(%arg0: i32, %arg1: i32) -> (i32, i32, i32) {
    %c0_i32 = arith.constant 0 : i32
    %c0_i32_0 = arith.constant 0 : i32
    return %arg0, %arg1, %c0_i32 : i32, i32, i32
  }
}

module attributes {stable_mosaic.version = 11 : i64} {
  func.func @_encoder_layer_kernel(%arg0: i32, %arg1: i32, %arg2: memref<1x8x32xbf16, #tpu.memory_space<vmem>>, %arg3: memref<1x8x32xbf16, #tpu.memory_space<vmem>>, %arg4: memref<32x32xbf16, #tpu.memory_space<vmem>>, %arg5: memref<1x32xf32, #tpu.memory_space<vmem>>, %arg6: memref<32x32xbf16, #tpu.memory_space<vmem>>, %arg7: memref<1x32xf32, #tpu.memory_space<vmem>>, %arg8: memref<32x32xbf16, #tpu.memory_space<vmem>>, %arg9: memref<1x32xf32, #tpu.memory_space<vmem>>, %arg10: memref<32x32xbf16, #tpu.memory_space<vmem>>, %arg11: memref<1x32xf32, #tpu.memory_space<vmem>>, %arg12: memref<1x32xf32, #tpu.memory_space<vmem>>, %arg13: memref<1x32xf32, #tpu.memory_space<vmem>>, %arg14: memref<32x64xbf16, #tpu.memory_space<vmem>>, %arg15: memref<1x64xf32, #tpu.memory_space<vmem>>, %arg16: memref<64x32xbf16, #tpu.memory_space<vmem>>, %arg17: memref<1x32xf32, #tpu.memory_space<vmem>>, %arg18: memref<1x32xf32, #tpu.memory_space<vmem>>, %arg19: memref<1x32xf32, #tpu.memory_space<vmem>>, %arg20: memref<1x8x32xbf16, #tpu.memory_space<vmem>>) attributes {dimension_semantics = [#tpu.dimension_semantics<parallel>, #tpu.dimension_semantics<parallel>], iteration_bounds = array<i64: 2, 1>, scalar_prefetch = 0 : i64, scratch_operands = 0 : i64, tpu.core_type = #tpu.core_type<tc>, window_params = [{transform_indices = @transform_0, window_bounds = array<i64: 1, 8, 32>}, {transform_indices = @transform_1, window_bounds = array<i64: 1, 8, 32>}, {pipeline_mode = #tpu.pipeline_mode<synchronous>, transform_indices = @transform_2, window_bounds = array<i64: 32, 32>}, {pipeline_mode = #tpu.pipeline_mode<synchronous>, transform_indices = @transform_3, window_bounds = array<i64: 1, 32>}, {pipeline_mode = #tpu.pipeline_mode<synchronous>, transform_indices = @transform_4, window_bounds = array<i64: 32, 32>}, {pipeline_mode = #tpu.pipeline_mode<synchronous>, transform_indices = @transform_5, window_bounds = array<i64: 1, 32>}, {pipeline_mode = #tpu.pipeline_mode<synchronous>, transform_indices = @transform_6, window_bounds = array<i64: 32, 32>}, {pipeline_mode = #tpu.pipeline_mode<synchronous>, transform_indices = @transform_7, window_bounds = array<i64: 1, 32>}, {pipeline_mode = #tpu.pipeline_mode<synchronous>, transform_indices = @transform_8, window_bounds = array<i64: 32, 32>}, {pipeline_mode = #tpu.pipeline_mode<synchronous>, transform_indices = @transform_9, window_bounds = array<i64: 1, 32>}, {pipeline_mode = #tpu.pipeline_mode<synchronous>, transform_indices = @transform_10, window_bounds = array<i64: 1, 32>}, {pipeline_mode = #tpu.pipeline_mode<synchronous>, transform_indices = @transform_11, window_bounds = array<i64: 1, 32>}, {pipeline_mode = #tpu.pipeline_mode<synchronous>, transform_indices = @transform_12, window_bounds = array<i64: 32, 64>}, {pipeline_mode = #tpu.pipeline_mode<synchronous>, transform_indices = @transform_13, window_bounds = array<i64: 1, 64>}, {pipeline_mode = #tpu.pipeline_mode<synchronous>, transform_indices = @transform_14, window_bounds = array<i64: 64, 32>}, {pipeline_mode = #tpu.pipeline_mode<synchronous>, transform_indices = @transform_15, window_bounds = array<i64: 1, 32>}, {pipeline_mode = #tpu.pipeline_mode<synchronous>, transform_indices = @transform_16, window_bounds = array<i64: 1, 32>}, {pipeline_mode = #tpu.pipeline_mode<synchronous>, transform_indices = @transform_17, window_bounds = array<i64: 1, 32>}, {transform_indices = @transform_18, window_bounds = array<i64: 1, 8, 32>}]} {
    %c0 = arith.constant 0 : index
    %c0_0 = arith.constant 0 : index
    %c0_1 = arith.constant 0 : index
    %0 = vector.load %arg2[%c0, %c0_0, %c0_1] : memref<1x8x32xbf16, #tpu.memory_space<vmem>>, vector<1x8x32xbf16>
    %1 = vector.shape_cast %0 : vector<1x8x32xbf16> to vector<8x32xbf16>
    %c0_2 = arith.constant 0 : index
    %c0_3 = arith.constant 0 : index
    %c0_4 = arith.constant 0 : index
    %2 = vector.load %arg3[%c0_2, %c0_3, %c0_4] : memref<1x8x32xbf16, #tpu.memory_space<vmem>>, vector<1x8x32xbf16>
    %3 = vector.shape_cast %2 : vector<1x8x32xbf16> to vector<8x32xbf16>
    %c0_5 = arith.constant 0 : index
    %c0_6 = arith.constant 0 : index
    %4 = vector.load %arg4[%c0_5, %c0_6] : memref<32x32xbf16, #tpu.memory_space<vmem>>, vector<32x32xbf16>
    %cst = arith.constant dense<0.000000e+00> : vector<8x32xf32>
    %5 = tpu.matmul %1, %4, %cst {dimension_numbers = #tpu.dot_dimension_numbers<[1], [0], [0], [1], [0, 0, 1, 1], [], []>} : vector<8x32xbf16>, vector<32x32xbf16>, vector<8x32xf32> -> vector<8x32xf32>
    %c0_7 = arith.constant 0 : index
    %c0_8 = arith.constant 0 : index
    %6 = vector.load %arg5[%c0_7, %c0_8] : memref<1x32xf32, #tpu.memory_space<vmem>>, vector<1x32xf32>
    %7 = vector.broadcast %6 : vector<1x32xf32> to vector<8x32xf32>
    %8 = arith.addf %5, %7 : vector<8x32xf32>
    %c0_9 = arith.constant 0 : index
    %c0_10 = arith.constant 0 : index
    %9 = vector.load %arg6[%c0_9, %c0_10] : memref<32x32xbf16, #tpu.memory_space<vmem>>, vector<32x32xbf16>
    %cst_11 = arith.constant dense<0.000000e+00> : vector<8x32xf32>
    %10 = tpu.matmul %3, %9, %cst_11 {dimension_numbers = #tpu.dot_dimension_numbers<[1], [0], [0], [1], [0, 0, 1, 1], [], []>} : vector<8x32xbf16>, vector<32x32xbf16>, vector<8x32xf32> -> vector<8x32xf32>
    %c0_12 = arith.constant 0 : index
    %c0_13 = arith.constant 0 : index
    %11 = vector.load %arg7[%c0_12, %c0_13] : memref<1x32xf32, #tpu.memory_space<vmem>>, vector<1x32xf32>
    %12 = vector.broadcast %11 : vector<1x32xf32> to vector<8x32xf32>
    %13 = arith.addf %10, %12 : vector<8x32xf32>
    %c0_14 = arith.constant 0 : index
    %c0_15 = arith.constant 0 : index
    %14 = vector.load %arg8[%c0_14, %c0_15] : memref<32x32xbf16, #tpu.memory_space<vmem>>, vector<32x32xbf16>
    %cst_16 = arith.constant dense<0.000000e+00> : vector<8x32xf32>
    %15 = tpu.matmul %3, %14, %cst_16 {dimension_numbers = #tpu.dot_dimension_numbers<[1], [0], [0], [1], [0, 0, 1, 1], [], []>} : vector<8x32xbf16>, vector<32x32xbf16>, vector<8x32xf32> -> vector<8x32xf32>
    %c0_17 = arith.constant 0 : index
    %c0_18 = arith.constant 0 : index
    %16 = vector.load %arg9[%c0_17, %c0_18] : memref<1x32xf32, #tpu.memory_space<vmem>>, vector<1x32xf32>
    %17 = vector.broadcast %16 : vector<1x32xf32> to vector<8x32xf32>
    %18 = arith.addf %15, %17 : vector<8x32xf32>
    %19 = arith.truncf %8 : vector<8x32xf32> to vector<8x32xbf16>
    %20 = arith.truncf %13 : vector<8x32xf32> to vector<8x32xbf16>
    %21 = arith.truncf %18 : vector<8x32xf32> to vector<8x32xbf16>
    %22 = vector.extract_strided_slice %19 {offsets = [0, 0], sizes = [8, 8], strides = [1, 1]} : vector<8x32xbf16> to vector<8x8xbf16>
    %23 = vector.extract_strided_slice %20 {offsets = [0, 0], sizes = [8, 8], strides = [1, 1]} : vector<8x32xbf16> to vector<8x8xbf16>
    %24 = vector.extract_strided_slice %21 {offsets = [0, 0], sizes = [8, 8], strides = [1, 1]} : vector<8x32xbf16> to vector<8x8xbf16>
    "tpu.trace_start"() <{level = 10 : i32, message = "qd,kd->qk"}> : () -> ()
    %cst_19 = arith.constant dense<0.000000e+00> : vector<8x8xf32>
    %25 = tpu.matmul %22, %23, %cst_19 {dimension_numbers = #tpu.dot_dimension_numbers<[1], [1], [0], [0], [0, 0, 1, 0], [], []>} : vector<8x8xbf16>, vector<8x8xbf16>, vector<8x8xf32> -> vector<8x8xf32>
    "tpu.trace_stop"() : () -> ()
    %cst_20 = arith.constant dense<0xFF800000> : vector<8xf32>
    %26 = vector.multi_reduction <maximumf>, %25, %cst_20 [1] : vector<8x8xf32> to vector<8xf32>
    %27 = vector.shape_cast %26 : vector<8xf32> to vector<8x1xf32>
    %28 = vector.broadcast %27 : vector<8x1xf32> to vector<8x8xf32>
    %29 = arith.subf %25, %28 : vector<8x8xf32>
    %30 = math.exp %29 : vector<8x8xf32>
    %cst_21 = arith.constant dense<0.000000e+00> : vector<8xf32>
    %31 = vector.multi_reduction <add>, %30, %cst_21 [1] : vector<8x8xf32> to vector<8xf32>
    %32 = vector.shape_cast %31 : vector<8xf32> to vector<8x1xf32>
    %33 = arith.truncf %30 : vector<8x8xf32> to vector<8x8xbf16>
    %cst_22 = arith.constant dense<0.000000e+00> : vector<8x8xf32>
    %34 = tpu.matmul %33, %24, %cst_22 {dimension_numbers = #tpu.dot_dimension_numbers<[1], [0], [0], [1], [0, 0, 1, 1], [], []>} : vector<8x8xbf16>, vector<8x8xbf16>, vector<8x8xf32> -> vector<8x8xf32>
    %35 = vector.broadcast %32 : vector<8x1xf32> to vector<8x8xf32>
    %36 = arith.divf %34, %35 : vector<8x8xf32>
    %37 = vector.extract_strided_slice %19 {offsets = [0, 8], sizes = [8, 8], strides = [1, 1]} : vector<8x32xbf16> to vector<8x8xbf16>
    %38 = vector.extract_strided_slice %20 {offsets = [0, 8], sizes = [8, 8], strides = [1, 1]} : vector<8x32xbf16> to vector<8x8xbf16>
    %39 = vector.extract_strided_slice %21 {offsets = [0, 8], sizes = [8, 8], strides = [1, 1]} : vector<8x32xbf16> to vector<8x8xbf16>
    "tpu.trace_start"() <{level = 10 : i32, message = "qd,kd->qk"}> : () -> ()
    %cst_23 = arith.constant dense<0.000000e+00> : vector<8x8xf32>
    %40 = tpu.matmul %37, %38, %cst_23 {dimension_numbers = #tpu.dot_dimension_numbers<[1], [1], [0], [0], [0, 0, 1, 0], [], []>} : vector<8x8xbf16>, vector<8x8xbf16>, vector<8x8xf32> -> vector<8x8xf32>
    "tpu.trace_stop"() : () -> ()
    %cst_24 = arith.constant dense<0xFF800000> : vector<8xf32>
    %41 = vector.multi_reduction <maximumf>, %40, %cst_24 [1] : vector<8x8xf32> to vector<8xf32>
    %42 = vector.shape_cast %41 : vector<8xf32> to vector<8x1xf32>
    %43 = vector.broadcast %42 : vector<8x1xf32> to vector<8x8xf32>
    %44 = arith.subf %40, %43 : vector<8x8xf32>
    %45 = math.exp %44 : vector<8x8xf32>
    %cst_25 = arith.constant dense<0.000000e+00> : vector<8xf32>
    %46 = vector.multi_reduction <add>, %45, %cst_25 [1] : vector<8x8xf32> to vector<8xf32>
    %47 = vector.shape_cast %46 : vector<8xf32> to vector<8x1xf32>
    %48 = arith.truncf %45 : vector<8x8xf32> to vector<8x8xbf16>
    %cst_26 = arith.constant dense<0.000000e+00> : vector<8x8xf32>
    %49 = tpu.matmul %48, %39, %cst_26 {dimension_numbers = #tpu.dot_dimension_numbers<[1], [0], [0], [1], [0, 0, 1, 1], [], []>} : vector<8x8xbf16>, vector<8x8xbf16>, vector<8x8xf32> -> vector<8x8xf32>
    %50 = vector.broadcast %47 : vector<8x1xf32> to vector<8x8xf32>
    %51 = arith.divf %49, %50 : vector<8x8xf32>
    %52 = vector.extract_strided_slice %19 {offsets = [0, 16], sizes = [8, 8], strides = [1, 1]} : vector<8x32xbf16> to vector<8x8xbf16>
    %53 = vector.extract_strided_slice %20 {offsets = [0, 16], sizes = [8, 8], strides = [1, 1]} : vector<8x32xbf16> to vector<8x8xbf16>
    %54 = vector.extract_strided_slice %21 {offsets = [0, 16], sizes = [8, 8], strides = [1, 1]} : vector<8x32xbf16> to vector<8x8xbf16>
    "tpu.trace_start"() <{level = 10 : i32, message = "qd,kd->qk"}> : () -> ()
    %cst_27 = arith.constant dense<0.000000e+00> : vector<8x8xf32>
    %55 = tpu.matmul %52, %53, %cst_27 {dimension_numbers = #tpu.dot_dimension_numbers<[1], [1], [0], [0], [0, 0, 1, 0], [], []>} : vector<8x8xbf16>, vector<8x8xbf16>, vector<8x8xf32> -> vector<8x8xf32>
    "tpu.trace_stop"() : () -> ()
    %cst_28 = arith.constant dense<0xFF800000> : vector<8xf32>
    %56 = vector.multi_reduction <maximumf>, %55, %cst_28 [1] : vector<8x8xf32> to vector<8xf32>
    %57 = vector.shape_cast %56 : vector<8xf32> to vector<8x1xf32>
    %58 = vector.broadcast %57 : vector<8x1xf32> to vector<8x8xf32>
    %59 = arith.subf %55, %58 : vector<8x8xf32>
    %60 = math.exp %59 : vector<8x8xf32>
    %cst_29 = arith.constant dense<0.000000e+00> : vector<8xf32>
    %61 = vector.multi_reduction <add>, %60, %cst_29 [1] : vector<8x8xf32> to vector<8xf32>
    %62 = vector.shape_cast %61 : vector<8xf32> to vector<8x1xf32>
    %63 = arith.truncf %60 : vector<8x8xf32> to vector<8x8xbf16>
    %cst_30 = arith.constant dense<0.000000e+00> : vector<8x8xf32>
    %64 = tpu.matmul %63, %54, %cst_30 {dimension_numbers = #tpu.dot_dimension_numbers<[1], [0], [0], [1], [0, 0, 1, 1], [], []>} : vector<8x8xbf16>, vector<8x8xbf16>, vector<8x8xf32> -> vector<8x8xf32>
    %65 = vector.broadcast %62 : vector<8x1xf32> to vector<8x8xf32>
    %66 = arith.divf %64, %65 : vector<8x8xf32>
    %67 = vector.extract_strided_slice %19 {offsets = [0, 24], sizes = [8, 8], strides = [1, 1]} : vector<8x32xbf16> to vector<8x8xbf16>
    %68 = vector.extract_strided_slice %20 {offsets = [0, 24], sizes = [8, 8], strides = [1, 1]} : vector<8x32xbf16> to vector<8x8xbf16>
    %69 = vector.extract_strided_slice %21 {offsets = [0, 24], sizes = [8, 8], strides = [1, 1]} : vector<8x32xbf16> to vector<8x8xbf16>
    "tpu.trace_start"() <{level = 10 : i32, message = "qd,kd->qk"}> : () -> ()
    %cst_31 = arith.constant dense<0.000000e+00> : vector<8x8xf32>
    %70 = tpu.matmul %67, %68, %cst_31 {dimension_numbers = #tpu.dot_dimension_numbers<[1], [1], [0], [0], [0, 0, 1, 0], [], []>} : vector<8x8xbf16>, vector<8x8xbf16>, vector<8x8xf32> -> vector<8x8xf32>
    "tpu.trace_stop"() : () -> ()
    %cst_32 = arith.constant dense<0xFF800000> : vector<8xf32>
    %71 = vector.multi_reduction <maximumf>, %70, %cst_32 [1] : vector<8x8xf32> to vector<8xf32>
    %72 = vector.shape_cast %71 : vector<8xf32> to vector<8x1xf32>
    %73 = vector.broadcast %72 : vector<8x1xf32> to vector<8x8xf32>
    %74 = arith.subf %70, %73 : vector<8x8xf32>
    %75 = math.exp %74 : vector<8x8xf32>
    %cst_33 = arith.constant dense<0.000000e+00> : vector<8xf32>
    %76 = vector.multi_reduction <add>, %75, %cst_33 [1] : vector<8x8xf32> to vector<8xf32>
    %77 = vector.shape_cast %76 : vector<8xf32> to vector<8x1xf32>
    %78 = arith.truncf %75 : vector<8x8xf32> to vector<8x8xbf16>
    %cst_34 = arith.constant dense<0.000000e+00> : vector<8x8xf32>
    %79 = tpu.matmul %78, %69, %cst_34 {dimension_numbers = #tpu.dot_dimension_numbers<[1], [0], [0], [1], [0, 0, 1, 1], [], []>} : vector<8x8xbf16>, vector<8x8xbf16>, vector<8x8xf32> -> vector<8x8xf32>
    %80 = vector.broadcast %77 : vector<8x1xf32> to vector<8x8xf32>
    %81 = arith.divf %79, %80 : vector<8x8xf32>
    %82 = tpu.concatenate %36, %51, %66, %81 in 1 : vector<8x8xf32>, vector<8x8xf32>, vector<8x8xf32>, vector<8x8xf32> -> vector<8x32xf32>
    %83 = arith.truncf %82 : vector<8x32xf32> to vector<8x32xbf16>
    %c0_35 = arith.constant 0 : index
    %c0_36 = arith.constant 0 : index
    %84 = vector.load %arg10[%c0_35, %c0_36] : memref<32x32xbf16, #tpu.memory_space<vmem>>, vector<32x32xbf16>
    %cst_37 = arith.constant dense<0.000000e+00> : vector<8x32xf32>
    %85 = tpu.matmul %83, %84, %cst_37 {dimension_numbers = #tpu.dot_dimension_numbers<[1], [0], [0], [1], [0, 0, 1, 1], [], []>} : vector<8x32xbf16>, vector<32x32xbf16>, vector<8x32xf32> -> vector<8x32xf32>
    %c0_38 = arith.constant 0 : index
    %c0_39 = arith.constant 0 : index
    %86 = vector.load %arg11[%c0_38, %c0_39] : memref<1x32xf32, #tpu.memory_space<vmem>>, vector<1x32xf32>
    %87 = vector.broadcast %86 : vector<1x32xf32> to vector<8x32xf32>
    %88 = arith.addf %85, %87 : vector<8x32xf32>
    %89 = arith.extf %1 : vector<8x32xbf16> to vector<8x32xf32>
    %90 = arith.addf %88, %89 : vector<8x32xf32>
    %cst_40 = arith.constant dense<0.000000e+00> : vector<8xf32>
    %91 = vector.multi_reduction <add>, %90, %cst_40 [1] : vector<8x32xf32> to vector<8xf32>
    %92 = vector.shape_cast %91 : vector<8xf32> to vector<8x1xf32>
    %cst_41 = arith.constant 3.200000e+01 : f32
    %93 = vector.broadcast %cst_41 : f32 to vector<8x1xf32>
    %94 = arith.divf %92, %93 : vector<8x1xf32>
    %95 = vector.broadcast %94 : vector<8x1xf32> to vector<8x32xf32>
    %96 = arith.subf %90, %95 : vector<8x32xf32>
    %97 = arith.mulf %96, %96 : vector<8x32xf32>
    %cst_42 = arith.constant dense<0.000000e+00> : vector<8xf32>
    %98 = vector.multi_reduction <add>, %97, %cst_42 [1] : vector<8x32xf32> to vector<8xf32>
    %99 = vector.shape_cast %98 : vector<8xf32> to vector<8x1xf32>
    %cst_43 = arith.constant 3.200000e+01 : f32
    %100 = vector.broadcast %cst_43 : f32 to vector<8x1xf32>
    %101 = arith.divf %99, %100 : vector<8x1xf32>
    %102 = vector.broadcast %94 : vector<8x1xf32> to vector<8x32xf32>
    %103 = arith.subf %90, %102 : vector<8x32xf32>
    %cst_44 = arith.constant 9.99999974E-6 : f32
    %104 = vector.broadcast %cst_44 : f32 to vector<8x1xf32>
    %105 = arith.addf %101, %104 : vector<8x1xf32>
    %106 = math.rsqrt %105 : vector<8x1xf32>
    %107 = vector.broadcast %106 : vector<8x1xf32> to vector<8x32xf32>
    %108 = arith.mulf %103, %107 : vector<8x32xf32>
    %c0_45 = arith.constant 0 : index
    %c0_46 = arith.constant 0 : index
    %109 = vector.load %arg12[%c0_45, %c0_46] : memref<1x32xf32, #tpu.memory_space<vmem>>, vector<1x32xf32>
    %110 = vector.broadcast %109 : vector<1x32xf32> to vector<8x32xf32>
    %111 = arith.mulf %108, %110 : vector<8x32xf32>
    %c0_47 = arith.constant 0 : index
    %c0_48 = arith.constant 0 : index
    %112 = vector.load %arg13[%c0_47, %c0_48] : memref<1x32xf32, #tpu.memory_space<vmem>>, vector<1x32xf32>
    %113 = vector.broadcast %112 : vector<1x32xf32> to vector<8x32xf32>
    %114 = arith.addf %111, %113 : vector<8x32xf32>
    %115 = arith.truncf %114 : vector<8x32xf32> to vector<8x32xbf16>
    %c0_49 = arith.constant 0 : index
    %c0_50 = arith.constant 0 : index
    %116 = vector.load %arg14[%c0_49, %c0_50] : memref<32x64xbf16, #tpu.memory_space<vmem>>, vector<32x64xbf16>
    %cst_51 = arith.constant dense<0.000000e+00> : vector<8x64xf32>
    %117 = tpu.matmul %115, %116, %cst_51 {dimension_numbers = #tpu.dot_dimension_numbers<[1], [0], [0], [1], [0, 0, 1, 1], [], []>} : vector<8x32xbf16>, vector<32x64xbf16>, vector<8x64xf32> -> vector<8x64xf32>
    %c0_52 = arith.constant 0 : index
    %c0_53 = arith.constant 0 : index
    %118 = vector.load %arg15[%c0_52, %c0_53] : memref<1x64xf32, #tpu.memory_space<vmem>>, vector<1x64xf32>
    %119 = vector.broadcast %118 : vector<1x64xf32> to vector<8x64xf32>
    %120 = arith.addf %117, %119 : vector<8x64xf32>
    %cst_54 = arith.constant 0.000000e+00 : f32
    %121 = vector.broadcast %cst_54 : f32 to vector<8x64xf32>
    %122 = arith.maximumf %120, %121 : vector<8x64xf32>
    %123 = arith.truncf %122 : vector<8x64xf32> to vector<8x64xbf16>
    %c0_55 = arith.constant 0 : index
    %c0_56 = arith.constant 0 : index
    %124 = vector.load %arg16[%c0_55, %c0_56] : memref<64x32xbf16, #tpu.memory_space<vmem>>, vector<64x32xbf16>
    %cst_57 = arith.constant dense<0.000000e+00> : vector<8x32xf32>
    %125 = tpu.matmul %123, %124, %cst_57 {dimension_numbers = #tpu.dot_dimension_numbers<[1], [0], [0], [1], [0, 0, 1, 1], [], []>} : vector<8x64xbf16>, vector<64x32xbf16>, vector<8x32xf32> -> vector<8x32xf32>
    %c0_58 = arith.constant 0 : index
    %c0_59 = arith.constant 0 : index
    %126 = vector.load %arg17[%c0_58, %c0_59] : memref<1x32xf32, #tpu.memory_space<vmem>>, vector<1x32xf32>
    %127 = vector.broadcast %126 : vector<1x32xf32> to vector<8x32xf32>
    %128 = arith.addf %125, %127 : vector<8x32xf32>
    %129 = arith.addf %128, %114 : vector<8x32xf32>
    %cst_60 = arith.constant dense<0.000000e+00> : vector<8xf32>
    %130 = vector.multi_reduction <add>, %129, %cst_60 [1] : vector<8x32xf32> to vector<8xf32>
    %131 = vector.shape_cast %130 : vector<8xf32> to vector<8x1xf32>
    %cst_61 = arith.constant 3.200000e+01 : f32
    %132 = vector.broadcast %cst_61 : f32 to vector<8x1xf32>
    %133 = arith.divf %131, %132 : vector<8x1xf32>
    %134 = vector.broadcast %133 : vector<8x1xf32> to vector<8x32xf32>
    %135 = arith.subf %129, %134 : vector<8x32xf32>
    %136 = arith.mulf %135, %135 : vector<8x32xf32>
    %cst_62 = arith.constant dense<0.000000e+00> : vector<8xf32>
    %137 = vector.multi_reduction <add>, %136, %cst_62 [1] : vector<8x32xf32> to vector<8xf32>
    %138 = vector.shape_cast %137 : vector<8xf32> to vector<8x1xf32>
    %cst_63 = arith.constant 3.200000e+01 : f32
    %139 = vector.broadcast %cst_63 : f32 to vector<8x1xf32>
    %140 = arith.divf %138, %139 : vector<8x1xf32>
    %141 = vector.broadcast %133 : vector<8x1xf32> to vector<8x32xf32>
    %142 = arith.subf %129, %141 : vector<8x32xf32>
    %cst_64 = arith.constant 9.99999974E-6 : f32
    %143 = vector.broadcast %cst_64 : f32 to vector<8x1xf32>
    %144 = arith.addf %140, %143 : vector<8x1xf32>
    %145 = math.rsqrt %144 : vector<8x1xf32>
    %146 = vector.broadcast %145 : vector<8x1xf32> to vector<8x32xf32>
    %147 = arith.mulf %142, %146 : vector<8x32xf32>
    %c0_65 = arith.constant 0 : index
    %c0_66 = arith.constant 0 : index
    %148 = vector.load %arg18[%c0_65, %c0_66] : memref<1x32xf32, #tpu.memory_space<vmem>>, vector<1x32xf32>
    %149 = vector.broadcast %148 : vector<1x32xf32> to vector<8x32xf32>
    %150 = arith.mulf %147, %149 : vector<8x32xf32>
    %c0_67 = arith.constant 0 : index
    %c0_68 = arith.constant 0 : index
    %151 = vector.load %arg19[%c0_67, %c0_68] : memref<1x32xf32, #tpu.memory_space<vmem>>, vector<1x32xf32>
    %152 = vector.broadcast %151 : vector<1x32xf32> to vector<8x32xf32>
    %153 = arith.addf %150, %152 : vector<8x32xf32>
    %154 = arith.truncf %153 : vector<8x32xf32> to vector<8x32xbf16>
    %c0_69 = arith.constant 0 : index
    %c0_70 = arith.constant 0 : index
    %c0_71 = arith.constant 0 : index
    %155 = vector.load %arg20[%c0_69, %c0_70, %c0_71] : memref<1x8x32xbf16, #tpu.memory_space<vmem>>, vector<1x8x32xbf16>
    %156 = vector.shape_cast %155 : vector<1x8x32xbf16> to vector<8x32xbf16>
    %157 = vector.shape_cast %154 : vector<8x32xbf16> to vector<1x8x32xbf16>
    tpu.vector_store %arg20[%c0_69, %c0_70, %c0_71], %157 {strides = array<i32>} : memref<1x8x32xbf16, #tpu.memory_space<vmem>>, vector<1x8x32xbf16>,
    return
  }
  func.func @transform_0(%arg0: i32, %arg1: i32) -> (i32, i32, i32) {
    %c0_i32 = arith.constant 0 : i32
    %c0_i32_0 = arith.constant 0 : i32
    return %arg0, %arg1, %c0_i32 : i32, i32, i32
  }
  func.func @transform_1(%arg0: i32, %arg1: i32) -> (i32, i32, i32) {
    %c0_i32 = arith.constant 0 : i32
    %c0_i32_0 = arith.constant 0 : i32
    %c0_i32_1 = arith.constant 0 : i32
    return %arg0, %c0_i32, %c0_i32_0 : i32, i32, i32
  }
  func.func @transform_2(%arg0: i32, %arg1: i32) -> (i32, i32) {
    %c0_i32 = arith.constant 0 : i32
    %c0_i32_0 = arith.constant 0 : i32
    %c0_i32_1 = arith.constant 0 : i32
    return %c0_i32, %c0_i32_0 : i32, i32
  }
  func.func @transform_3(%arg0: i32, %arg1: i32) -> (i32, i32) {
    %c0_i32 = arith.constant 0 : i32
    %c0_i32_0 = arith.constant 0 : i32
    %c0_i32_1 = arith.constant 0 : i32
    return %c0_i32, %c0_i32_0 : i32, i32
  }
  func.func @transform_4(%arg0: i32, %arg1: i32) -> (i32, i32) {
    %c0_i32 = arith.constant 0 : i32
    %c0_i32_0 = arith.constant 0 : i32
    %c0_i32_1 = arith.constant 0 : i32
    return %c0_i32, %c0_i32_0 : i32, i32
  }
  func.func @transform_5(%arg0: i32, %arg1: i32) -> (i32, i32) {
    %c0_i32 = arith.constant 0 : i32
    %c0_i32_0 = arith.constant 0 : i32
    %c0_i32_1 = arith.constant 0 : i32
    return %c0_i32, %c0_i32_0 : i32, i32
  }
  func.func @transform_6(%arg0: i32, %arg1: i32) -> (i32, i32) {
    %c0_i32 = arith.constant 0 : i32
    %c0_i32_0 = arith.constant 0 : i32
    %c0_i32_1 = arith.constant 0 : i32
    return %c0_i32, %c0_i32_0 : i32, i32
  }
  func.func @transform_7(%arg0: i32, %arg1: i32) -> (i32, i32) {
    %c0_i32 = arith.constant 0 : i32
    %c0_i32_0 = arith.constant 0 : i32
    %c0_i32_1 = arith.constant 0 : i32
    return %c0_i32, %c0_i32_0 : i32, i32
  }
  func.func @transform_8(%arg0: i32, %arg1: i32) -> (i32, i32) {
    %c0_i32 = arith.constant 0 : i32
    %c0_i32_0 = arith.constant 0 : i32
    %c0_i32_1 = arith.constant 0 : i32
    return %c0_i32, %c0_i32_0 : i32, i32
  }
  func.func @transform_9(%arg0: i32, %arg1: i32) -> (i32, i32) {
    %c0_i32 = arith.constant 0 : i32
    %c0_i32_0 = arith.constant 0 : i32
    %c0_i32_1 = arith.constant 0 : i32
    return %c0_i32, %c0_i32_0 : i32, i32
  }
  func.func @transform_10(%arg0: i32, %arg1: i32) -> (i32, i32) {
    %c0_i32 = arith.constant 0 : i32
    %c0_i32_0 = arith.constant 0 : i32
    %c0_i32_1 = arith.constant 0 : i32
    return %c0_i32, %c0_i32_0 : i32, i32
  }
  func.func @transform_11(%arg0: i32, %arg1: i32) -> (i32, i32) {
    %c0_i32 = arith.constant 0 : i32
    %c0_i32_0 = arith.constant 0 : i32
    %c0_i32_1 = arith.constant 0 : i32
    return %c0_i32, %c0_i32_0 : i32, i32
  }
  func.func @transform_12(%arg0: i32, %arg1: i32) -> (i32, i32) {
    %c0_i32 = arith.constant 0 : i32
    %c0_i32_0 = arith.constant 0 : i32
    %c0_i32_1 = arith.constant 0 : i32
    return %c0_i32, %c0_i32_0 : i32, i32
  }
  func.func @transform_13(%arg0: i32, %arg1: i32) -> (i32, i32) {
    %c0_i32 = arith.constant 0 : i32
    %c0_i32_0 = arith.constant 0 : i32
    %c0_i32_1 = arith.constant 0 : i32
    return %c0_i32, %c0_i32_0 : i32, i32
  }
  func.func @transform_14(%arg0: i32, %arg1: i32) -> (i32, i32) {
    %c0_i32 = arith.constant 0 : i32
    %c0_i32_0 = arith.constant 0 : i32
    %c0_i32_1 = arith.constant 0 : i32
    return %c0_i32, %c0_i32_0 : i32, i32
  }
  func.func @transform_15(%arg0: i32, %arg1: i32) -> (i32, i32) {
    %c0_i32 = arith.constant 0 : i32
    %c0_i32_0 = arith.constant 0 : i32
    %c0_i32_1 = arith.constant 0 : i32
    return %c0_i32, %c0_i32_0 : i32, i32
  }
  func.func @transform_16(%arg0: i32, %arg1: i32) -> (i32, i32) {
    %c0_i32 = arith.constant 0 : i32
    %c0_i32_0 = arith.constant 0 : i32
    %c0_i32_1 = arith.constant 0 : i32
    return %c0_i32, %c0_i32_0 : i32, i32
  }
  func.func @transform_17(%arg0: i32, %arg1: i32) -> (i32, i32) {
    %c0_i32 = arith.constant 0 : i32
    %c0_i32_0 = arith.constant 0 : i32
    %c0_i32_1 = arith.constant 0 : i32
    return %c0_i32, %c0_i32_0 : i32, i32
  }
  func.func @transform_18(%arg0: i32, %arg1: i32) -> (i32, i32, i32) {
    %c0_i32 = arith.constant 0 : i32
    %c0_i32_0 = arith.constant 0 : i32
    return %arg0, %arg1, %c0_i32 : i32, i32, i32
  }
}

module attributes {stable_mosaic.version = 11 : i64} {
  func.func @_linear_kernel(%arg0: i32, %arg1: i32, %arg2: i32, %arg3: memref<2x256xbf16, #tpu.memory_space<vmem>>, %arg4: memref<256x64xbf16, #tpu.memory_space<vmem>>, %arg5: memref<1x64xf32, #tpu.memory_space<vmem>>, %arg6: memref<2x64xbf16, #tpu.memory_space<vmem>>, %arg7: memref<2x64xf32, #tpu.memory_space<vmem>>) attributes {dimension_semantics = [#tpu.dimension_semantics<parallel>, #tpu.dimension_semantics<parallel>, #tpu.dimension_semantics<arbitrary>], iteration_bounds = array<i64: 1, 1, 1>, scalar_prefetch = 0 : i64, scratch_operands = 1 : i64, tpu.core_type = #tpu.core_type<tc>, window_params = [{transform_indices = @transform_0, window_bounds = array<i64: 2, 256>}, {transform_indices = @transform_1, window_bounds = array<i64: 256, 64>}, {transform_indices = @transform_2, window_bounds = array<i64: 1, 64>}, {transform_indices = @transform_3, window_bounds = array<i64: 2, 64>}]} {
    %c0_i32 = arith.constant 0 : i32
    %0 = arith.cmpi eq, %arg2, %c0_i32 : i32
    %1 = arith.extui %0 : i1 to i32
    %c0_i32_0 = arith.constant 0 : i32
    %2 = arith.cmpi ne, %1, %c0_i32_0 : i32
    scf.if %2 {
      %cst_10 = arith.constant 0.000000e+00 : f32
      %12 = vector.broadcast %cst_10 : f32 to vector<2x64xf32>
      %c0_11 = arith.constant 0 : index
      %c0_12 = arith.constant 0 : index
      %13 = vector.load %arg7[%c0_11, %c0_12] : memref<2x64xf32, #tpu.memory_space<vmem>>, vector<2x64xf32>
      tpu.vector_store %arg7[%c0_11, %c0_12], %12 {strides = array<i32>} : memref<2x64xf32, #tpu.memory_space<vmem>>, vector<2x64xf32>,
    } else {
    }
    %c0 = arith.constant 0 : index
    %c0_1 = arith.constant 0 : index
    %3 = vector.load %arg3[%c0, %c0_1] : memref<2x256xbf16, #tpu.memory_space<vmem>>, vector<2x256xbf16>
    %c0_2 = arith.constant 0 : index
    %c0_3 = arith.constant 0 : index
    %4 = vector.load %arg7[%c0_2, %c0_3] : memref<2x64xf32, #tpu.memory_space<vmem>>, vector<2x64xf32>
    %c0_4 = arith.constant 0 : index
    %c0_5 = arith.constant 0 : index
    %5 = vector.load %arg4[%c0_4, %c0_5] : memref<256x64xbf16, #tpu.memory_space<vmem>>, vector<256x64xbf16>
    %cst = arith.constant dense<0.000000e+00> : vector<2x64xf32>
    %6 = tpu.matmul %3, %5, %cst {dimension_numbers = #tpu.dot_dimension_numbers<[1], [0], [0], [1], [0, 0, 1, 1], [], []>} : vector<2x256xbf16>, vector<256x64xbf16>, vector<2x64xf32> -> vector<2x64xf32>
    %7 = arith.addf %4, %6 : vector<2x64xf32>
    %c0_6 = arith.constant 0 : index
    %c0_7 = arith.constant 0 : index
    %8 = vector.load %arg7[%c0_6, %c0_7] : memref<2x64xf32, #tpu.memory_space<vmem>>, vector<2x64xf32>
    tpu.vector_store %arg7[%c0_6, %c0_7], %7 {strides = array<i32>} : memref<2x64xf32, #tpu.memory_space<vmem>>, vector<2x64xf32>,
    %c0_i32_8 = arith.constant 0 : i32
    %9 = arith.cmpi eq, %arg2, %c0_i32_8 : i32
    %10 = arith.extui %9 : i1 to i32
    %c0_i32_9 = arith.constant 0 : i32
    %11 = arith.cmpi ne, %10, %c0_i32_9 : i32
    scf.if %11 {
      %c0_10 = arith.constant 0 : index
      %c0_11 = arith.constant 0 : index
      %12 = vector.load %arg7[%c0_10, %c0_11] : memref<2x64xf32, #tpu.memory_space<vmem>>, vector<2x64xf32>
      %c0_12 = arith.constant 0 : index
      %c0_13 = arith.constant 0 : index
      %13 = vector.load %arg5[%c0_12, %c0_13] : memref<1x64xf32, #tpu.memory_space<vmem>>, vector<1x64xf32>
      %14 = vector.broadcast %13 : vector<1x64xf32> to vector<2x64xf32>
      %15 = arith.addf %12, %14 : vector<2x64xf32>
      %cst_14 = arith.constant 0.000000e+00 : f32
      %16 = vector.broadcast %cst_14 : f32 to vector<2x64xf32>
      %17 = arith.maximumf %15, %16 : vector<2x64xf32>
      %18 = arith.truncf %17 : vector<2x64xf32> to vector<2x64xbf16>
      %c0_15 = arith.constant 0 : index
      %c0_16 = arith.constant 0 : index
      %19 = vector.load %arg6[%c0_15, %c0_16] : memref<2x64xbf16, #tpu.memory_space<vmem>>, vector<2x64xbf16>
      tpu.vector_store %arg6[%c0_15, %c0_16], %18 {strides = array<i32>} : memref<2x64xbf16, #tpu.memory_space<vmem>>, vector<2x64xbf16>,
    } else {
    }
    return
  }
  func.func @transform_0(%arg0: i32, %arg1: i32, %arg2: i32) -> (i32, i32) {
    %c0_i32 = arith.constant 0 : i32
    return %arg0, %arg2 : i32, i32
  }
  func.func @transform_1(%arg0: i32, %arg1: i32, %arg2: i32) -> (i32, i32) {
    %c0_i32 = arith.constant 0 : i32
    return %arg2, %arg1 : i32, i32
  }
  func.func @transform_2(%arg0: i32, %arg1: i32, %arg2: i32) -> (i32, i32) {
    %c0_i32 = arith.constant 0 : i32
    %c0_i32_0 = arith.constant 0 : i32
    return %c0_i32, %arg1 : i32, i32
  }
  func.func @transform_3(%arg0: i32, %arg1: i32, %arg2: i32) -> (i32, i32) {
    %c0_i32 = arith.constant 0 : i32
    return %arg0, %arg1 : i32, i32
  }
}

module attributes {stable_mosaic.version = 11 : i64} {
  func.func @_linear_kernel(%arg0: i32, %arg1: i32, %arg2: i32, %arg3: memref<2x64xbf16, #tpu.memory_space<vmem>>, %arg4: memref<64x32xbf16, #tpu.memory_space<vmem>>, %arg5: memref<1x32xf32, #tpu.memory_space<vmem>>, %arg6: memref<2x32xbf16, #tpu.memory_space<vmem>>, %arg7: memref<2x32xf32, #tpu.memory_space<vmem>>) attributes {dimension_semantics = [#tpu.dimension_semantics<parallel>, #tpu.dimension_semantics<parallel>, #tpu.dimension_semantics<arbitrary>], iteration_bounds = array<i64: 1, 1, 1>, scalar_prefetch = 0 : i64, scratch_operands = 1 : i64, tpu.core_type = #tpu.core_type<tc>, window_params = [{transform_indices = @transform_0, window_bounds = array<i64: 2, 64>}, {transform_indices = @transform_1, window_bounds = array<i64: 64, 32>}, {transform_indices = @transform_2, window_bounds = array<i64: 1, 32>}, {transform_indices = @transform_3, window_bounds = array<i64: 2, 32>}]} {
    %c0_i32 = arith.constant 0 : i32
    %0 = arith.cmpi eq, %arg2, %c0_i32 : i32
    %1 = arith.extui %0 : i1 to i32
    %c0_i32_0 = arith.constant 0 : i32
    %2 = arith.cmpi ne, %1, %c0_i32_0 : i32
    scf.if %2 {
      %cst_10 = arith.constant 0.000000e+00 : f32
      %12 = vector.broadcast %cst_10 : f32 to vector<2x32xf32>
      %c0_11 = arith.constant 0 : index
      %c0_12 = arith.constant 0 : index
      %13 = vector.load %arg7[%c0_11, %c0_12] : memref<2x32xf32, #tpu.memory_space<vmem>>, vector<2x32xf32>
      tpu.vector_store %arg7[%c0_11, %c0_12], %12 {strides = array<i32>} : memref<2x32xf32, #tpu.memory_space<vmem>>, vector<2x32xf32>,
    } else {
    }
    %c0 = arith.constant 0 : index
    %c0_1 = arith.constant 0 : index
    %3 = vector.load %arg3[%c0, %c0_1] : memref<2x64xbf16, #tpu.memory_space<vmem>>, vector<2x64xbf16>
    %c0_2 = arith.constant 0 : index
    %c0_3 = arith.constant 0 : index
    %4 = vector.load %arg7[%c0_2, %c0_3] : memref<2x32xf32, #tpu.memory_space<vmem>>, vector<2x32xf32>
    %c0_4 = arith.constant 0 : index
    %c0_5 = arith.constant 0 : index
    %5 = vector.load %arg4[%c0_4, %c0_5] : memref<64x32xbf16, #tpu.memory_space<vmem>>, vector<64x32xbf16>
    %cst = arith.constant dense<0.000000e+00> : vector<2x32xf32>
    %6 = tpu.matmul %3, %5, %cst {dimension_numbers = #tpu.dot_dimension_numbers<[1], [0], [0], [1], [0, 0, 1, 1], [], []>} : vector<2x64xbf16>, vector<64x32xbf16>, vector<2x32xf32> -> vector<2x32xf32>
    %7 = arith.addf %4, %6 : vector<2x32xf32>
    %c0_6 = arith.constant 0 : index
    %c0_7 = arith.constant 0 : index
    %8 = vector.load %arg7[%c0_6, %c0_7] : memref<2x32xf32, #tpu.memory_space<vmem>>, vector<2x32xf32>
    tpu.vector_store %arg7[%c0_6, %c0_7], %7 {strides = array<i32>} : memref<2x32xf32, #tpu.memory_space<vmem>>, vector<2x32xf32>,
    %c0_i32_8 = arith.constant 0 : i32
    %9 = arith.cmpi eq, %arg2, %c0_i32_8 : i32
    %10 = arith.extui %9 : i1 to i32
    %c0_i32_9 = arith.constant 0 : i32
    %11 = arith.cmpi ne, %10, %c0_i32_9 : i32
    scf.if %11 {
      %c0_10 = arith.constant 0 : index
      %c0_11 = arith.constant 0 : index
      %12 = vector.load %arg7[%c0_10, %c0_11] : memref<2x32xf32, #tpu.memory_space<vmem>>, vector<2x32xf32>
      %c0_12 = arith.constant 0 : index
      %c0_13 = arith.constant 0 : index
      %13 = vector.load %arg5[%c0_12, %c0_13] : memref<1x32xf32, #tpu.memory_space<vmem>>, vector<1x32xf32>
      %14 = vector.broadcast %13 : vector<1x32xf32> to vector<2x32xf32>
      %15 = arith.addf %12, %14 : vector<2x32xf32>
      %cst_14 = arith.constant 0.000000e+00 : f32
      %16 = vector.broadcast %cst_14 : f32 to vector<2x32xf32>
      %17 = arith.maximumf %15, %16 : vector<2x32xf32>
      %18 = arith.truncf %17 : vector<2x32xf32> to vector<2x32xbf16>
      %c0_15 = arith.constant 0 : index
      %c0_16 = arith.constant 0 : index
      %19 = vector.load %arg6[%c0_15, %c0_16] : memref<2x32xbf16, #tpu.memory_space<vmem>>, vector<2x32xbf16>
      tpu.vector_store %arg6[%c0_15, %c0_16], %18 {strides = array<i32>} : memref<2x32xbf16, #tpu.memory_space<vmem>>, vector<2x32xbf16>,
    } else {
    }
    return
  }
  func.func @transform_0(%arg0: i32, %arg1: i32, %arg2: i32) -> (i32, i32) {
    %c0_i32 = arith.constant 0 : i32
    return %arg0, %arg2 : i32, i32
  }
  func.func @transform_1(%arg0: i32, %arg1: i32, %arg2: i32) -> (i32, i32) {
    %c0_i32 = arith.constant 0 : i32
    return %arg2, %arg1 : i32, i32
  }
  func.func @transform_2(%arg0: i32, %arg1: i32, %arg2: i32) -> (i32, i32) {
    %c0_i32 = arith.constant 0 : i32
    %c0_i32_0 = arith.constant 0 : i32
    return %c0_i32, %arg1 : i32, i32
  }
  func.func @transform_3(%arg0: i32, %arg1: i32, %arg2: i32) -> (i32, i32) {
    %c0_i32 = arith.constant 0 : i32
    return %arg0, %arg1 : i32, i32
  }
}

module attributes {stable_mosaic.version = 11 : i64} {
  func.func @_linear_kernel(%arg0: i32, %arg1: i32, %arg2: i32, %arg3: memref<2x32xbf16, #tpu.memory_space<vmem>>, %arg4: memref<32x10xbf16, #tpu.memory_space<vmem>>, %arg5: memref<1x10xf32, #tpu.memory_space<vmem>>, %arg6: memref<2x10xf32, #tpu.memory_space<vmem>>, %arg7: memref<2x10xf32, #tpu.memory_space<vmem>>) attributes {dimension_semantics = [#tpu.dimension_semantics<parallel>, #tpu.dimension_semantics<parallel>, #tpu.dimension_semantics<arbitrary>], iteration_bounds = array<i64: 1, 1, 1>, scalar_prefetch = 0 : i64, scratch_operands = 1 : i64, tpu.core_type = #tpu.core_type<tc>, window_params = [{transform_indices = @transform_0, window_bounds = array<i64: 2, 32>}, {transform_indices = @transform_1, window_bounds = array<i64: 32, 10>}, {transform_indices = @transform_2, window_bounds = array<i64: 1, 10>}, {transform_indices = @transform_3, window_bounds = array<i64: 2, 10>}]} {
    %c0_i32 = arith.constant 0 : i32
    %0 = arith.cmpi eq, %arg2, %c0_i32 : i32
    %1 = arith.extui %0 : i1 to i32
    %c0_i32_0 = arith.constant 0 : i32
    %2 = arith.cmpi ne, %1, %c0_i32_0 : i32
    scf.if %2 {
      %cst_10 = arith.constant 0.000000e+00 : f32
      %12 = vector.broadcast %cst_10 : f32 to vector<2x10xf32>
      %c0_11 = arith.constant 0 : index
      %c0_12 = arith.constant 0 : index
      %13 = vector.load %arg7[%c0_11, %c0_12] : memref<2x10xf32, #tpu.memory_space<vmem>>, vector<2x10xf32>
      tpu.vector_store %arg7[%c0_11, %c0_12], %12 {strides = array<i32>} : memref<2x10xf32, #tpu.memory_space<vmem>>, vector<2x10xf32>,
    } else {
    }
    %c0 = arith.constant 0 : index
    %c0_1 = arith.constant 0 : index
    %3 = vector.load %arg3[%c0, %c0_1] : memref<2x32xbf16, #tpu.memory_space<vmem>>, vector<2x32xbf16>
    %c0_2 = arith.constant 0 : index
    %c0_3 = arith.constant 0 : index
    %4 = vector.load %arg7[%c0_2, %c0_3] : memref<2x10xf32, #tpu.memory_space<vmem>>, vector<2x10xf32>
    %c0_4 = arith.constant 0 : index
    %c0_5 = arith.constant 0 : index
    %5 = vector.load %arg4[%c0_4, %c0_5] : memref<32x10xbf16, #tpu.memory_space<vmem>>, vector<32x10xbf16>
    %cst = arith.constant dense<0.000000e+00> : vector<2x10xf32>
    %6 = tpu.matmul %3, %5, %cst {dimension_numbers = #tpu.dot_dimension_numbers<[1], [0], [0], [1], [0, 0, 1, 1], [], []>} : vector<2x32xbf16>, vector<32x10xbf16>, vector<2x10xf32> -> vector<2x10xf32>
    %7 = arith.addf %4, %6 : vector<2x10xf32>
    %c0_6 = arith.constant 0 : index
    %c0_7 = arith.constant 0 : index
    %8 = vector.load %arg7[%c0_6, %c0_7] : memref<2x10xf32, #tpu.memory_space<vmem>>, vector<2x10xf32>
    tpu.vector_store %arg7[%c0_6, %c0_7], %7 {strides = array<i32>} : memref<2x10xf32, #tpu.memory_space<vmem>>, vector<2x10xf32>,
    %c0_i32_8 = arith.constant 0 : i32
    %9 = arith.cmpi eq, %arg2, %c0_i32_8 : i32
    %10 = arith.extui %9 : i1 to i32
    %c0_i32_9 = arith.constant 0 : i32
    %11 = arith.cmpi ne, %10, %c0_i32_9 : i32
    scf.if %11 {
      %c0_10 = arith.constant 0 : index
      %c0_11 = arith.constant 0 : index
      %12 = vector.load %arg7[%c0_10, %c0_11] : memref<2x10xf32, #tpu.memory_space<vmem>>, vector<2x10xf32>
      %c0_12 = arith.constant 0 : index
      %c0_13 = arith.constant 0 : index
      %13 = vector.load %arg5[%c0_12, %c0_13] : memref<1x10xf32, #tpu.memory_space<vmem>>, vector<1x10xf32>
      %14 = vector.broadcast %13 : vector<1x10xf32> to vector<2x10xf32>
      %15 = arith.addf %12, %14 : vector<2x10xf32>
      %cst_14 = arith.constant dense<0xFF800000> : vector<2xf32>
      %16 = vector.multi_reduction <maximumf>, %15, %cst_14 [1] : vector<2x10xf32> to vector<2xf32>
      %17 = vector.shape_cast %16 : vector<2xf32> to vector<2x1xf32>
      %18 = vector.broadcast %17 : vector<2x1xf32> to vector<2x10xf32>
      %19 = arith.subf %15, %18 : vector<2x10xf32>
      %20 = math.exp %19 : vector<2x10xf32>
      %cst_15 = arith.constant dense<0.000000e+00> : vector<2xf32>
      %21 = vector.multi_reduction <add>, %20, %cst_15 [1] : vector<2x10xf32> to vector<2xf32>
      %22 = vector.shape_cast %21 : vector<2xf32> to vector<2x1xf32>
      %23 = vector.broadcast %22 : vector<2x1xf32> to vector<2x10xf32>
      %24 = arith.divf %20, %23 : vector<2x10xf32>
      %c0_16 = arith.constant 0 : index
      %c0_17 = arith.constant 0 : index
      %25 = vector.load %arg6[%c0_16, %c0_17] : memref<2x10xf32, #tpu.memory_space<vmem>>, vector<2x10xf32>
      tpu.vector_store %arg6[%c0_16, %c0_17], %24 {strides = array<i32>} : memref<2x10xf32, #tpu.memory_space<vmem>>, vector<2x10xf32>,
    } else {
    }
    return
  }
  func.func @transform_0(%arg0: i32, %arg1: i32, %arg2: i32) -> (i32, i32) {
    %c0_i32 = arith.constant 0 : i32
    return %arg0, %arg2 : i32, i32
  }
  func.func @transform_1(%arg0: i32, %arg1: i32, %arg2: i32) -> (i32, i32) {
    %c0_i32 = arith.constant 0 : i32
    return %arg2, %arg1 : i32, i32
  }
  func.func @transform_2(%arg0: i32, %arg1: i32, %arg2: i32) -> (i32, i32) {
    %c0_i32 = arith.constant 0 : i32
    %c0_i32_0 = arith.constant 0 : i32
    return %c0_i32, %arg1 : i32, i32
  }
  func.func @transform_3(%arg0: i32, %arg1: i32, %arg2: i32) -> (i32, i32) {
    %c0_i32 = arith.constant 0 : i32
    return %arg0, %arg1 : i32, i32
  }
}

</mosaic_0001>

<llo_original>
// kernel: transformer_forward.6
$region0: #{transformer_forward.6}
  #allocation0 [shape = 'u32[]', space=smem, size = 0x4, offset = 0x4, fixed_abs, tag = 'smem constant byte address 0x4 - core index']
  #allocation1 [shape = 'u32[72,128]{1,0:T(1,128)}', space=vmem, size = 0x9000, scoped, tag = 'internal scratch']
  #allocation2 [shape = 'f32[16,32]{1,0:T(8,128)}', space=vmem, size = 0x2000, scoped, tag = 'scratch operand']
  %s0 = inlined_call_operand.vmem [shape: f32[16,4], index: 0, kind: input, shape index: {}]
  %s1 = inlined_call_operand.vmem [shape: bf16[4,32], index: 1, kind: input, shape index: {}]
  %s2 = inlined_call_operand.vmem [shape: f32[1,32], index: 2, kind: input, shape index: {}]
  %s3 = inlined_call_operand.vmem [shape: bf16[16,32], index: 3, kind: output, shape index: {}]
  %s4 = sld [smem:[#allocation0]]
  $region30: #{transformer_forward.6} parent=0
    _
  %s6 = ssub.s32 1, %s4
  %s7 = scalar_select 0, %s6, %s4
  // Predicated region
  $region2: #{transformer_forward.6} parent=0 // pred_check
    _
  $region3: #{transformer_forward.6} parent=0 // pred_check_branch
    %9 = sbr.rel (0) target = $region5
  $region4: #{transformer_forward.6} parent=0 // pred_region
    _
  $region5: #{transformer_forward.6} parent=0 // pred_fallthru
    _
  // Predicated region
  $region6: #{transformer_forward.6} parent=0 // pred_check
    _
  $region7: #{transformer_forward.6} parent=0 // pred_check_branch
    %11 = sbr.rel (0) target = $region9
  $region8: #{transformer_forward.6} parent=0 // pred_region
    _
  $region9: #{transformer_forward.6} parent=0 // pred_fallthru
    _
  // Predicated region
  $region10: #{transformer_forward.6} parent=0 // pred_check
    _
  $region11: #{transformer_forward.6} parent=0 // pred_check_branch
    %13 = sbr.rel (0) target = $region13
  $region12: #{transformer_forward.6} parent=0 // pred_region
    _
  $region13: #{transformer_forward.6} parent=0 // pred_fallthru
    _
  %p15 = scmp.eq.s32.totalorder 0, 0
  // Predicated region
  $region14: #{transformer_forward.6} parent=0 // pred_check
    %p16 = pneg %p15
  $region15: #{transformer_forward.6} parent=0 // pred_check_branch
    %18 = sbr.rel (%p16) target = $region17
  $region16: #{transformer_forward.6} parent=0 // pred_region
    %vm19 = vcmask 261120
    %20 = vst.msk [vmem:[#allocation2] sm:$0xff] %vm19, 0.0
    %21 = vst.msk [vmem:[#allocation2 + $0x8] sm:$0xff] %vm19, 0.0
  $region17: #{transformer_forward.6} parent=0 // pred_fallthru
    _
  %v22 = vld [vmem:[%s0] sm:$0xff]
  %v23 = vld [vmem:[%s0 + $0x8] sm:$0xff]
  %v24 = vpack.c.bf16 %v23, %v22
  %v25 = vld [vmem:[#allocation2] sm:$0xff]
  %v26 = vld [vmem:[#allocation2 + $0x8] sm:$0xff]
  %v27 = vld [vmem:[%s1] sm:$0x3]
  %vm28 = vcmask 31744
  %v30 = vsel %vm28, %v24, 0
  %vm32 = vcmask 1041408
  %v34 = vsel %vm32, %v27, 0
  %36 = vmatpush.bf16.msra.mxu0 0
  %37 = vmatpush.bf16.msra.mxu0 0
  %38 = vmatpush.bf16.msra.mxu0 0
  %39 = vmatpush.bf16.msra.mxu0 0
  %40 = vmatpush.bf16.msra.mxu0 0
  %41 = vmatpush.bf16.msra.mxu0 0
  %42 = vmatpush.bf16.msra.mxu0 0
  %43 = vmatpush.bf16.msra.mxu0 %v34
  %44 = vmatmul.bf16.gmra.mxu0 %v30
  %v45 = vpop.f32.mrf.mxu0
  %v46 = vadd.f32 0.0, %v45
  %v47 = vpop.f32.mrf.mxu0
  %v48 = vadd.f32 0.0, %v47
  %49 = vdwg.mxu0
  %v50 = vadd.f32 %v25, %v46
  %v51 = vadd.f32 %v26, %v48
  %vm52 = vcmask 261120
  %53 = vst.msk [vmem:[#allocation2] sm:$0xff] %vm52, %v50
  %54 = vst.msk [vmem:[#allocation2 + $0x8] sm:$0xff] %vm52, %v51
  // Predicated region
  $region18: #{transformer_forward.6} parent=0 // pred_check
    %p55 = pneg %p15
  $region19: #{transformer_forward.6} parent=0 // pred_check_branch
    %57 = sbr.rel (%p55) target = $region21
  $region20: #{transformer_forward.6} parent=0 // pred_region
    %v58 = vld [vmem:[#allocation2] sm:$0xff]
    %v59 = vld [vmem:[#allocation2 + $0x8] sm:$0xff]
    %v60 = vld [vmem:[%s2] sm:$0x1]
    %v62 = vperm.slane %v60, 0
    %v64 = vadd.f32 %v58, %v62
    %v65 = vadd.f32 %v59, %v62
    %v66 = vpack.c.bf16 %v64, %v64
    %v67 = vpack.c.bf16 %v65, %v65
    %vm68 = vcmask 257024
    %69 = vst.msk [vmem:[%s3] sm:$0xf] %vm68, %v66
    %70 = vst.msk [vmem:[%s3 + $0x4] sm:$0xf] %vm68, %v67
  $region21: #{transformer_forward.6} parent=0 // pred_fallthru
    _
  // Predicated region
  $region22: #{transformer_forward.6} parent=0 // pred_check
    _
  $region23: #{transformer_forward.6} parent=0 // pred_check_branch
    %72 = sbr.rel (0) target = $region25
  $region24: #{transformer_forward.6} parent=0 // pred_region
    _
  $region25: #{transformer_forward.6} parent=0 // pred_fallthru
    _
  // Predicated region
  $region26: #{transformer_forward.6} parent=0 // pred_check
    _
  $region27: #{transformer_forward.6} parent=0 // pred_check_branch
    %74 = sbr.rel (0) target = $region29
  $region28: #{transformer_forward.6} parent=0 // pred_region
    _
  $region29: #{transformer_forward.6} parent=0 // pred_fallthru
    _

// kernel: transformer_forward.7
$region0: #{transformer_forward.7}
  #allocation0 [shape = 'u32[]', space=smem, size = 0x4, offset = 0x4, fixed_abs, tag = 'smem constant byte address 0x4 - core index']
  #allocation1 [shape = 'u32[72,128]{1,0:T(1,128)}', space=vmem, size = 0x9000, scoped, tag = 'internal scratch']
  %s0 = inlined_call_operand.vmem [shape: bf16[2,8,32], index: 0, kind: input, shape index: {}, may-alias: {0,1}]
  %s1 = inlined_call_operand.vmem [shape: bf16[2,8,32], index: 1, kind: input, shape index: {}, may-alias: {0,1}]
  %s2 = inlined_call_operand.vmem [shape: bf16[32,32], index: 2, kind: input, shape index: {}]
  %s3 = inlined_call_operand.vmem [shape: f32[1,32], index: 3, kind: input, shape index: {}]
  %s4 = inlined_call_operand.vmem [shape: bf16[32,32], index: 4, kind: input, shape index: {}]
  %s5 = inlined_call_operand.vmem [shape: f32[1,32], index: 5, kind: input, shape index: {}]
  %s6 = inlined_call_operand.vmem [shape: bf16[32,32], index: 6, kind: input, shape index: {}]
  %s7 = inlined_call_operand.vmem [shape: f32[1,32], index: 7, kind: input, shape index: {}]
  %s8 = inlined_call_operand.hbm [shape: bf16[32,32], index: 8, kind: input, shape index: {}]
  %s9 = inlined_call_operand.vmem [shape: f32[1,32], index: 9, kind: input, shape index: {}]
  %s10 = inlined_call_operand.vmem [shape: f32[1,32], index: 10, kind: input, shape index: {}]
  %s11 = inlined_call_operand.vmem [shape: f32[1,32], index: 11, kind: input, shape index: {}]
  %s12 = inlined_call_operand.hbm [shape: bf16[32,64], index: 12, kind: input, shape index: {}]
  %s13 = inlined_call_operand.hbm [shape: f32[1,64], index: 13, kind: input, shape index: {}]
  %s14 = inlined_call_operand.vmem [shape: bf16[64,32], index: 14, kind: input, shape index: {}]
  %s15 = inlined_call_operand.hbm [shape: f32[1,32], index: 15, kind: input, shape index: {}]
  %s16 = inlined_call_operand.hbm [shape: f32[1,32], index: 16, kind: input, shape index: {}]
  %s17 = inlined_call_operand.hbm [shape: f32[1,32], index: 17, kind: input, shape index: {}]
  %s18 = inlined_call_operand.vmem [shape: bf16[2,8,32], index: 18, kind: output, shape index: {}]
  %s19 = sld [smem:[#allocation0]]
  $region129: #{transformer_forward.7} parent=0
    _
  %s21 = ssub.s32 1, %s19
  %s22 = scalar_select 0, %s21, %s19
  $region1: #{transformer_forward.7} parent=0
    #allocation2 [shape = 'u8[8192]{0}', space=vmem, size = 0x2000, scoped, tag = 'input window, operand 8, single buffered']
    #allocation3 [shape = 's32[2]{0}', space=sflag, size = 0x8, scoped, tag = 'scoped memory for transformer_forward.7']
    #allocation4 [shape = 'u8[8192]{0}', space=vmem, size = 0x2000, scoped, tag = 'input window, operand 12, single buffered']
    #allocation5 [shape = 's32[1]{0}', space=sflag, size = 0x4, scoped, tag = 'scoped memory for transformer_forward.7']
    #allocation6 [shape = 'u8[512]{0}', space=vmem, size = 0x400, scoped, tag = 'input window, operand 13, single buffered']
    #allocation7 [shape = 'u8[512]{0}', space=vmem, size = 0x400, scoped, tag = 'input window, operand 15, single buffered']
    #allocation8 [shape = 's32[1]{0}', space=sflag, size = 0x4, scoped, tag = 'scoped memory for transformer_forward.7']
    #allocation9 [shape = 'u8[512]{0}', space=vmem, size = 0x400, scoped, tag = 'input window, operand 16, single buffered']
    #allocation10 [shape = 'u8[512]{0}', space=vmem, size = 0x400, scoped, tag = 'input window, operand 17, single buffered']
    #allocation11 [shape = 's32[1]{0}', space=sflag, size = 0x4, scoped, tag = 'scoped memory for transformer_forward.7']
    %23 = vsyncpa [#allocation3], 0
    %24 = vsyncpa [#allocation5], 0
    %25 = vsyncpa [#allocation8], 0
    %26 = vsyncpa [#allocation11], 0
    loop: start=0, step=1, limit=4
    $region2: #{transformer_forward.7} parent=1 // loop_pre_header
      _
    $region3: #{transformer_forward.7} parent=1 // loop_header
      %s28 = sphi 0, %s32
      %p29 = scmp.ge.s32.totalorder %s28, 4
      %s35 = sphi 0, %s47
      %s36 = sphi 0, %s43
      %s37 = sphi 0, %s35
      %s38 = sphi 0, %s36
      %s39 = sphi 0, %s37
      %s40 = sphi 0, %s38
      %s52 = sphi 0, %s54
      %s55 = sphi 0, %s52
      %s56 = sphi 0, %s55
      %s72 = sphi 0, %s56
      %s78 = sphi 0, %s80
      %s81 = sphi 0, %s78
      %s82 = sphi 0, %s81
      %s98 = sphi 0, %s82
      %s102 = sphi 0, %s102
      %s104 = sphi 0, %s102
      %s105 = sphi 0, %s104
      %s119 = sphi 0, %s105
      %s123 = sphi 0, %s123
      %s125 = sphi 0, %s123
      %s126 = sphi 0, %s125
      %s140 = sphi 0, %s126
      %s144 = sphi 0, %s144
      %s146 = sphi 0, %s144
      %s147 = sphi 0, %s146
      %s161 = sphi 0, %s147
      %s165 = sphi 0, %s165
      %s167 = sphi 0, %s165
      %s168 = sphi 0, %s167
      %s182 = sphi 0, %s168
      %s186 = sphi 0, %s186
      %s188 = sphi 0, %s186
      %s189 = sphi 0, %s188
      %s203 = sphi 0, %s189
      %s207 = sphi 0, %s207
      %s209 = sphi 0, %s207
      %s210 = sphi 0, %s209
      %s224 = sphi 0, %s210
      %s228 = sphi 0, %s228
      %s230 = sphi 0, %s228
      %s231 = sphi 0, %s230
      %s245 = sphi 0, %s231
      %s249 = sphi 0, %s249
      %s251 = sphi 0, %s249
      %s252 = sphi 0, %s251
      %s266 = sphi 0, %s252
      %s270 = sphi 0, %s270
      %s272 = sphi 0, %s270
      %s273 = sphi 0, %s272
      %s287 = sphi 0, %s273
      %s291 = sphi 0, %s291
      %s293 = sphi 0, %s291
      %s294 = sphi 0, %s293
      %s308 = sphi 0, %s294
      %s312 = sphi 0, %s312
      %s314 = sphi 0, %s312
      %s315 = sphi 0, %s314
      %s329 = sphi 0, %s315
      %s333 = sphi 0, %s333
      %s335 = sphi 0, %s333
      %s336 = sphi 0, %s335
      %s350 = sphi 0, %s336
      %s354 = sphi 0, %s354
      %s356 = sphi 0, %s354
      %s357 = sphi 0, %s356
      %s371 = sphi 0, %s357
      %s375 = sphi 0, %s375
      %s377 = sphi 0, %s375
      %s378 = sphi 0, %s377
      %s392 = sphi 0, %s378
      %s396 = sphi 0, %s396
      %s398 = sphi 0, %s396
      %s399 = sphi 0, %s398
      %s413 = sphi 0, %s399
      %s417 = sphi 0, %s417
      %s419 = sphi 0, %s417
      %s420 = sphi 0, %s419
      %s434 = sphi 0, %s420
      %s442 = sphi 0, %s444
      %s445 = sphi 0, %s442
      %s446 = sphi 0, %s445
      %s462 = sphi 0, %s446
    $region4: #{transformer_forward.7} parent=1 // loop_header_branch
      %31 = sbr.rel (%p29) target = $region8
    $region5: #{transformer_forward.7} parent=1 // loop_body
      %s33 = ssub.s32 %s28, 1
      %s34 = ssub.s32 %s28, 2
      %s41 = sadd.s32 1, %s36
      %p42 = scmp.ge.s32.totalorder %s41, 1
      %s43 = scalar_select %p42, 0, %s41
      %s44 = sadd.s32 1, %s35
      %s45 = scalar_select %p42, %s44, %s35
      %p46 = scmp.ge.s32.totalorder %s45, 2
      %s47 = scalar_select %p46, 0, %s45
      %s48 = ssub.s32 %s35, %s47
      %s49 = ssub.s32 %s36, %s43
      %s50 = sor.u32 %s48, %s49
      %p51 = scmp.eq.s32.totalorder %s50, 0
      %s53 = sadd.s32 %s52, 1
      %s54 = scalar_select %p51, %s52, %s53
      %p57 = pneg %p51
      %p58 = scmp.eq.s32.totalorder %s28, 1
      %p59 = por %p57, %p58
      %p60 = scmp.ne.s32.totalorder %s52, %s55
      %p61 = scmp.eq.s32.totalorder %s28, 0
      %p62 = por %p60, %p61
      %p63 = scmp.ne.s32.totalorder %s52, %s55
      %p64 = scmp.eq.s32.totalorder %s33, 1
      %p65 = por %p63, %p64
      %p66 = scmp.ne.s32.totalorder %s55, %s56
      %p67 = scmp.eq.s32.totalorder %s33, 0
      %p68 = por %p66, %p67
      %p69 = scmp.ne.s32.totalorder %s55, %s56
      %p70 = scmp.eq.s32.totalorder %s34, 1
      %p71 = por %p69, %p70
      %p73 = scmp.ne.s32.totalorder %s56, %s72
      %p74 = scmp.eq.s32.totalorder %s34, 0
      %p75 = por %p73, %p74
      %s76 = ssub.s32 %s35, %s47
      %p77 = scmp.eq.s32.totalorder %s76, 0
      %s79 = sadd.s32 %s78, 1
      %s80 = scalar_select %p77, %s78, %s79
      %p83 = pneg %p77
      %p84 = scmp.eq.s32.totalorder %s28, 1
      %p85 = por %p83, %p84
      %p86 = scmp.ne.s32.totalorder %s78, %s81
      %p87 = scmp.eq.s32.totalorder %s28, 0
      %p88 = por %p86, %p87
      %p89 = scmp.ne.s32.totalorder %s78, %s81
      %p90 = scmp.eq.s32.totalorder %s33, 1
      %p91 = por %p89, %p90
      %p92 = scmp.ne.s32.totalorder %s81, %s82
      %p93 = scmp.eq.s32.totalorder %s33, 0
      %p94 = por %p92, %p93
      %p95 = scmp.ne.s32.totalorder %s81, %s82
      %p96 = scmp.eq.s32.totalorder %s34, 1
      %p97 = por %p95, %p96
      %p99 = scmp.ne.s32.totalorder %s82, %s98
      %p100 = scmp.eq.s32.totalorder %s34, 0
      %p101 = por %p99, %p100
      %s103 = sadd.s32 %s102, 1
      %p106 = scmp.eq.s32.totalorder %s28, 1
      %p107 = scmp.ne.s32.totalorder %s102, %s104
      %p108 = scmp.eq.s32.totalorder %s28, 0
      %p109 = por %p107, %p108
      %p110 = scmp.ne.s32.totalorder %s102, %s104
      %p111 = scmp.eq.s32.totalorder %s33, 1
      %p112 = por %p110, %p111
      %p113 = scmp.ne.s32.totalorder %s104, %s105
      %p114 = scmp.eq.s32.totalorder %s33, 0
      %p115 = por %p113, %p114
      %p116 = scmp.ne.s32.totalorder %s104, %s105
      %p117 = scmp.eq.s32.totalorder %s34, 1
      %p118 = por %p116, %p117
      %p120 = scmp.ne.s32.totalorder %s105, %s119
      %p121 = scmp.eq.s32.totalorder %s34, 0
      %p122 = por %p120, %p121
      %s124 = sadd.s32 %s123, 1
      %p127 = scmp.eq.s32.totalorder %s28, 1
      %p128 = scmp.ne.s32.totalorder %s123, %s125
      %p129 = scmp.eq.s32.totalorder %s28, 0
      %p130 = por %p128, %p129
      %p131 = scmp.ne.s32.totalorder %s123, %s125
      %p132 = scmp.eq.s32.totalorder %s33, 1
      %p133 = por %p131, %p132
      %p134 = scmp.ne.s32.totalorder %s125, %s126
      %p135 = scmp.eq.s32.totalorder %s33, 0
      %p136 = por %p134, %p135
      %p137 = scmp.ne.s32.totalorder %s125, %s126
      %p138 = scmp.eq.s32.totalorder %s34, 1
      %p139 = por %p137, %p138
      %p141 = scmp.ne.s32.totalorder %s126, %s140
      %p142 = scmp.eq.s32.totalorder %s34, 0
      %p143 = por %p141, %p142
      %s145 = sadd.s32 %s144, 1
      %p148 = scmp.eq.s32.totalorder %s28, 1
      %p149 = scmp.ne.s32.totalorder %s144, %s146
      %p150 = scmp.eq.s32.totalorder %s28, 0
      %p151 = por %p149, %p150
      %p152 = scmp.ne.s32.totalorder %s144, %s146
      %p153 = scmp.eq.s32.totalorder %s33, 1
      %p154 = por %p152, %p153
      %p155 = scmp.ne.s32.totalorder %s146, %s147
      %p156 = scmp.eq.s32.totalorder %s33, 0
      %p157 = por %p155, %p156
      %p158 = scmp.ne.s32.totalorder %s146, %s147
      %p159 = scmp.eq.s32.totalorder %s34, 1
      %p160 = por %p158, %p159
      %p162 = scmp.ne.s32.totalorder %s147, %s161
      %p163 = scmp.eq.s32.totalorder %s34, 0
      %p164 = por %p162, %p163
      %s166 = sadd.s32 %s165, 1
      %p169 = scmp.eq.s32.totalorder %s28, 1
      %p170 = scmp.ne.s32.totalorder %s165, %s167
      %p171 = scmp.eq.s32.totalorder %s28, 0
      %p172 = por %p170, %p171
      %p173 = scmp.ne.s32.totalorder %s165, %s167
      %p174 = scmp.eq.s32.totalorder %s33, 1
      %p175 = por %p173, %p174
      %p176 = scmp.ne.s32.totalorder %s167, %s168
      %p177 = scmp.eq.s32.totalorder %s33, 0
      %p178 = por %p176, %p177
      %p179 = scmp.ne.s32.totalorder %s167, %s168
      %p180 = scmp.eq.s32.totalorder %s34, 1
      %p181 = por %p179, %p180
      %p183 = scmp.ne.s32.totalorder %s168, %s182
      %p184 = scmp.eq.s32.totalorder %s34, 0
      %p185 = por %p183, %p184
      %s187 = sadd.s32 %s186, 1
      %p190 = scmp.eq.s32.totalorder %s28, 1
      %p191 = scmp.ne.s32.totalorder %s186, %s188
      %p192 = scmp.eq.s32.totalorder %s28, 0
      %p193 = por %p191, %p192
      %p194 = scmp.ne.s32.totalorder %s186, %s188
      %p195 = scmp.eq.s32.totalorder %s33, 1
      %p196 = por %p194, %p195
      %p197 = scmp.ne.s32.totalorder %s188, %s189
      %p198 = scmp.eq.s32.totalorder %s33, 0
      %p199 = por %p197, %p198
      %p200 = scmp.ne.s32.totalorder %s188, %s189
      %p201 = scmp.eq.s32.totalorder %s34, 1
      %p202 = por %p200, %p201
      %p204 = scmp.ne.s32.totalorder %s189, %s203
      %p205 = scmp.eq.s32.totalorder %s34, 0
      %p206 = por %p204, %p205
      %s208 = sadd.s32 %s207, 1
      %p211 = scmp.eq.s32.totalorder %s28, 1
      %p212 = scmp.ne.s32.totalorder %s207, %s209
      %p213 = scmp.eq.s32.totalorder %s28, 0
      %p214 = por %p212, %p213
      %p215 = scmp.ne.s32.totalorder %s207, %s209
      %p216 = scmp.eq.s32.totalorder %s33, 1
      %p217 = por %p215, %p216
      %p218 = scmp.ne.s32.totalorder %s209, %s210
      %p219 = scmp.eq.s32.totalorder %s33, 0
      %p220 = por %p218, %p219
      %p221 = scmp.ne.s32.totalorder %s209, %s210
      %p222 = scmp.eq.s32.totalorder %s34, 1
      %p223 = por %p221, %p222
      %p225 = scmp.ne.s32.totalorder %s210, %s224
      %p226 = scmp.eq.s32.totalorder %s34, 0
      %p227 = por %p225, %p226
      %s229 = sadd.s32 %s228, 1
      %p232 = scmp.eq.s32.totalorder %s28, 1
      %p233 = scmp.ne.s32.totalorder %s228, %s230
      %p234 = scmp.eq.s32.totalorder %s28, 0
      %p235 = por %p233, %p234
      %p236 = scmp.ne.s32.totalorder %s228, %s230
      %p237 = scmp.eq.s32.totalorder %s33, 1
      %p238 = por %p236, %p237
      %p239 = scmp.ne.s32.totalorder %s230, %s231
      %p240 = scmp.eq.s32.totalorder %s33, 0
      %p241 = por %p239, %p240
      %p242 = scmp.ne.s32.totalorder %s230, %s231
      %p243 = scmp.eq.s32.totalorder %s34, 1
      %p244 = por %p242, %p243
      %p246 = scmp.ne.s32.totalorder %s231, %s245
      %p247 = scmp.eq.s32.totalorder %s34, 0
      %p248 = por %p246, %p247
      %s250 = sadd.s32 %s249, 1
      %p253 = scmp.eq.s32.totalorder %s28, 1
      %p254 = scmp.ne.s32.totalorder %s249, %s251
      %p255 = scmp.eq.s32.totalorder %s28, 0
      %p256 = por %p254, %p255
      %p257 = scmp.ne.s32.totalorder %s249, %s251
      %p258 = scmp.eq.s32.totalorder %s33, 1
      %p259 = por %p257, %p258
      %p260 = scmp.ne.s32.totalorder %s251, %s252
      %p261 = scmp.eq.s32.totalorder %s33, 0
      %p262 = por %p260, %p261
      %p263 = scmp.ne.s32.totalorder %s251, %s252
      %p264 = scmp.eq.s32.totalorder %s34, 1
      %p265 = por %p263, %p264
      %p267 = scmp.ne.s32.totalorder %s252, %s266
      %p268 = scmp.eq.s32.totalorder %s34, 0
      %p269 = por %p267, %p268
      %s271 = sadd.s32 %s270, 1
      %p274 = scmp.eq.s32.totalorder %s28, 1
      %p275 = scmp.ne.s32.totalorder %s270, %s272
      %p276 = scmp.eq.s32.totalorder %s28, 0
      %p277 = por %p275, %p276
      %p278 = scmp.ne.s32.totalorder %s270, %s272
      %p279 = scmp.eq.s32.totalorder %s33, 1
      %p280 = por %p278, %p279
      %p281 = scmp.ne.s32.totalorder %s272, %s273
      %p282 = scmp.eq.s32.totalorder %s33, 0
      %p283 = por %p281, %p282
      %p284 = scmp.ne.s32.totalorder %s272, %s273
      %p285 = scmp.eq.s32.totalorder %s34, 1
      %p286 = por %p284, %p285
      %p288 = scmp.ne.s32.totalorder %s273, %s287
      %p289 = scmp.eq.s32.totalorder %s34, 0
      %p290 = por %p288, %p289
      %s292 = sadd.s32 %s291, 1
      %p295 = scmp.eq.s32.totalorder %s28, 1
      %p296 = scmp.ne.s32.totalorder %s291, %s293
      %p297 = scmp.eq.s32.totalorder %s28, 0
      %p298 = por %p296, %p297
      %p299 = scmp.ne.s32.totalorder %s291, %s293
      %p300 = scmp.eq.s32.totalorder %s33, 1
      %p301 = por %p299, %p300
      %p302 = scmp.ne.s32.totalorder %s293, %s294
      %p303 = scmp.eq.s32.totalorder %s33, 0
      %p304 = por %p302, %p303
      %p305 = scmp.ne.s32.totalorder %s293, %s294
      %p306 = scmp.eq.s32.totalorder %s34, 1
      %p307 = por %p305, %p306
      %p309 = scmp.ne.s32.totalorder %s294, %s308
      %p310 = scmp.eq.s32.totalorder %s34, 0
      %p311 = por %p309, %p310
      %s313 = sadd.s32 %s312, 1
      %p316 = scmp.eq.s32.totalorder %s28, 1
      %p317 = scmp.ne.s32.totalorder %s312, %s314
      %p318 = scmp.eq.s32.totalorder %s28, 0
      %p319 = por %p317, %p318
      %p320 = scmp.ne.s32.totalorder %s312, %s314
      %p321 = scmp.eq.s32.totalorder %s33, 1
      %p322 = por %p320, %p321
      %p323 = scmp.ne.s32.totalorder %s314, %s315
      %p324 = scmp.eq.s32.totalorder %s33, 0
      %p325 = por %p323, %p324
      %p326 = scmp.ne.s32.totalorder %s314, %s315
      %p327 = scmp.eq.s32.totalorder %s34, 1
      %p328 = por %p326, %p327
      %p330 = scmp.ne.s32.totalorder %s315, %s329
      %p331 = scmp.eq.s32.totalorder %s34, 0
      %p332 = por %p330, %p331
      %s334 = sadd.s32 %s333, 1
      %p337 = scmp.eq.s32.totalorder %s28, 1
      %p338 = scmp.ne.s32.totalorder %s333, %s335
      %p339 = scmp.eq.s32.totalorder %s28, 0
      %p340 = por %p338, %p339
      %p341 = scmp.ne.s32.totalorder %s333, %s335
      %p342 = scmp.eq.s32.totalorder %s33, 1
      %p343 = por %p341, %p342
      %p344 = scmp.ne.s32.totalorder %s335, %s336
      %p345 = scmp.eq.s32.totalorder %s33, 0
      %p346 = por %p344, %p345
      %p347 = scmp.ne.s32.totalorder %s335, %s336
      %p348 = scmp.eq.s32.totalorder %s34, 1
      %p349 = por %p347, %p348
      %p351 = scmp.ne.s32.totalorder %s336, %s350
      %p352 = scmp.eq.s32.totalorder %s34, 0
      %p353 = por %p351, %p352
      %s355 = sadd.s32 %s354, 1
      %p358 = scmp.eq.s32.totalorder %s28, 1
      %p359 = scmp.ne.s32.totalorder %s354, %s356
      %p360 = scmp.eq.s32.totalorder %s28, 0
      %p361 = por %p359, %p360
      %p362 = scmp.ne.s32.totalorder %s354, %s356
      %p363 = scmp.eq.s32.totalorder %s33, 1
      %p364 = por %p362, %p363
      %p365 = scmp.ne.s32.totalorder %s356, %s357
      %p366 = scmp.eq.s32.totalorder %s33, 0
      %p367 = por %p365, %p366
      %p368 = scmp.ne.s32.totalorder %s356, %s357
      %p369 = scmp.eq.s32.totalorder %s34, 1
      %p370 = por %p368, %p369
      %p372 = scmp.ne.s32.totalorder %s357, %s371
      %p373 = scmp.eq.s32.totalorder %s34, 0
      %p374 = por %p372, %p373
      %s376 = sadd.s32 %s375, 1
      %p379 = scmp.eq.s32.totalorder %s28, 1
      %p380 = scmp.ne.s32.totalorder %s375, %s377
      %p381 = scmp.eq.s32.totalorder %s28, 0
      %p382 = por %p380, %p381
      %p383 = scmp.ne.s32.totalorder %s375, %s377
      %p384 = scmp.eq.s32.totalorder %s33, 1
      %p385 = por %p383, %p384
      %p386 = scmp.ne.s32.totalorder %s377, %s378
      %p387 = scmp.eq.s32.totalorder %s33, 0
      %p388 = por %p386, %p387
      %p389 = scmp.ne.s32.totalorder %s377, %s378
      %p390 = scmp.eq.s32.totalorder %s34, 1
      %p391 = por %p389, %p390
      %p393 = scmp.ne.s32.totalorder %s378, %s392
      %p394 = scmp.eq.s32.totalorder %s34, 0
      %p395 = por %p393, %p394
      %s397 = sadd.s32 %s396, 1
      %p400 = scmp.eq.s32.totalorder %s28, 1
      %p401 = scmp.ne.s32.totalorder %s396, %s398
      %p402 = scmp.eq.s32.totalorder %s28, 0
      %p403 = por %p401, %p402
      %p404 = scmp.ne.s32.totalorder %s396, %s398
      %p405 = scmp.eq.s32.totalorder %s33, 1
      %p406 = por %p404, %p405
      %p407 = scmp.ne.s32.totalorder %s398, %s399
      %p408 = scmp.eq.s32.totalorder %s33, 0
      %p409 = por %p407, %p408
      %p410 = scmp.ne.s32.totalorder %s398, %s399
      %p411 = scmp.eq.s32.totalorder %s34, 1
      %p412 = por %p410, %p411
      %p414 = scmp.ne.s32.totalorder %s399, %s413
      %p415 = scmp.eq.s32.totalorder %s34, 0
      %p416 = por %p414, %p415
      %s418 = sadd.s32 %s417, 1
      %p421 = scmp.eq.s32.totalorder %s28, 1
      %p422 = scmp.ne.s32.totalorder %s417, %s419
      %p423 = scmp.eq.s32.totalorder %s28, 0
      %p424 = por %p422, %p423
      %p425 = scmp.ne.s32.totalorder %s417, %s419
      %p426 = scmp.eq.s32.totalorder %s33, 1
      %p427 = por %p425, %p426
      %p428 = scmp.ne.s32.totalorder %s419, %s420
      %p429 = scmp.eq.s32.totalorder %s33, 0
      %p430 = por %p428, %p429
      %p431 = scmp.ne.s32.totalorder %s419, %s420
      %p432 = scmp.eq.s32.totalorder %s34, 1
      %p433 = por %p431, %p432
      %p435 = scmp.ne.s32.totalorder %s420, %s434
      %p436 = scmp.eq.s32.totalorder %s34, 0
      %p437 = por %p435, %p436
      %s438 = ssub.s32 %s35, %s47
      %s439 = ssub.s32 %s36, %s43
      %s440 = sor.u32 %s438, %s439
      %p441 = scmp.eq.s32.totalorder %s440, 0
      %s443 = sadd.s32 %s442, 1
      %s444 = scalar_select %p441, %s442, %s443
      %p447 = pneg %p441
      %p448 = scmp.eq.s32.totalorder %s28, 1
      %p449 = por %p447, %p448
      %p450 = scmp.ne.s32.totalorder %s442, %s445
      %p451 = scmp.eq.s32.totalorder %s28, 0
      %p452 = por %p450, %p451
      %p453 = scmp.ne.s32.totalorder %s442, %s445
      %p454 = scmp.eq.s32.totalorder %s33, 1
      %p455 = por %p453, %p454
      %p456 = scmp.ne.s32.totalorder %s445, %s446
      %p457 = scmp.eq.s32.totalorder %s33, 0
      %p458 = por %p456, %p457
      %p459 = scmp.ne.s32.totalorder %s445, %s446
      %p460 = scmp.eq.s32.totalorder %s34, 1
      %p461 = por %p459, %p460
      %p463 = scmp.ne.s32.totalorder %s446, %s462
      %p464 = scmp.eq.s32.totalorder %s34, 0
      %p465 = por %p463, %p464
      %p466 = scmp.le.s32.totalorder 1, %s28
      %p467 = scmp.lt.s32.totalorder %s28, 3
      %p468 = pnand %p466, %p467
      %p469 = pneg %p468
      // Predicated region
      $region9: #{transformer_forward.7} parent=5 // pred_check
        _
      $region10: #{transformer_forward.7} parent=5 // pred_check_branch
        %471 = sbr.rel (%p468) target = $region12
      $region11: #{transformer_forward.7} parent=5 // pred_region
        %s472 = ssub.s32 %s28, 1
        // Predicated region
        $region13: #{transformer_forward.7} parent=11 // pred_check
          %p473 = pneg %p115
        $region14: #{transformer_forward.7} parent=11 // pred_check_branch
          %475 = sbr.rel (%p473) target = $region16
        $region15: #{transformer_forward.7} parent=11 // pred_region
          _
        $region16: #{transformer_forward.7} parent=11 // pred_fallthru
          _
        // Predicated region
        $region17: #{transformer_forward.7} parent=11 // pred_check
          %p476 = pneg %p136
        $region18: #{transformer_forward.7} parent=11 // pred_check_branch
          %478 = sbr.rel (%p476) target = $region20
        $region19: #{transformer_forward.7} parent=11 // pred_region
          _
        $region20: #{transformer_forward.7} parent=11 // pred_fallthru
          _
        // Predicated region
        $region21: #{transformer_forward.7} parent=11 // pred_check
          %p479 = pneg %p157
        $region22: #{transformer_forward.7} parent=11 // pred_check_branch
          %481 = sbr.rel (%p479) target = $region24
        $region23: #{transformer_forward.7} parent=11 // pred_region
          _
        $region24: #{transformer_forward.7} parent=11 // pred_fallthru
          _
        // Predicated region
        $region25: #{transformer_forward.7} parent=11 // pred_check
          %p482 = pneg %p178
        $region26: #{transformer_forward.7} parent=11 // pred_check_branch
          %484 = sbr.rel (%p482) target = $region28
        $region27: #{transformer_forward.7} parent=11 // pred_region
          _
        $region28: #{transformer_forward.7} parent=11 // pred_fallthru
          _
        // Predicated region
        $region29: #{transformer_forward.7} parent=11 // pred_check
          %p485 = pneg %p199
        $region30: #{transformer_forward.7} parent=11 // pred_check_branch
          %487 = sbr.rel (%p485) target = $region32
        $region31: #{transformer_forward.7} parent=11 // pred_region
          _
        $region32: #{transformer_forward.7} parent=11 // pred_fallthru
          _
        // Predicated region
        $region33: #{transformer_forward.7} parent=11 // pred_check
          %p488 = pneg %p220
        $region34: #{transformer_forward.7} parent=11 // pred_check_branch
          %490 = sbr.rel (%p488) target = $region36
        $region35: #{transformer_forward.7} parent=11 // pred_region
          _
        $region36: #{transformer_forward.7} parent=11 // pred_fallthru
          _
        // Predicated region
        $region37: #{transformer_forward.7} parent=11 // pred_check
          %p491 = pneg %p241
        $region38: #{transformer_forward.7} parent=11 // pred_check_branch
          %493 = sbr.rel (%p491) target = $region40
        $region39: #{transformer_forward.7} parent=11 // pred_region
          %495 = vsyncadd [#allocation3], 0
          %s496 = sshll.u32 %s8, 4
          %s497 = int_to_ptr.hbm [resolvable:$true] %s496
          %s498 = sshll.u32 [#allocation2], 4
          %s499 = int_to_ptr.vmem [resolvable:$true] %s498
          %504 = dma.hbm_to_vmem [thread:$0]  %s497, 256, %s499, [#allocation3], 64, 64, 4
        $region40: #{transformer_forward.7} parent=11 // pred_fallthru
          _
        // Predicated region
        $region41: #{transformer_forward.7} parent=11 // pred_check
          %p505 = pneg %p262
        $region42: #{transformer_forward.7} parent=11 // pred_check_branch
          %507 = sbr.rel (%p505) target = $region44
        $region43: #{transformer_forward.7} parent=11 // pred_region
          _
        $region44: #{transformer_forward.7} parent=11 // pred_fallthru
          _
        // Predicated region
        $region45: #{transformer_forward.7} parent=11 // pred_check
          %p508 = pneg %p283
        $region46: #{transformer_forward.7} parent=11 // pred_check_branch
          %510 = sbr.rel (%p508) target = $region48
        $region47: #{transformer_forward.7} parent=11 // pred_region
          _
        $region48: #{transformer_forward.7} parent=11 // pred_fallthru
          _
        // Predicated region
        $region49: #{transformer_forward.7} parent=11 // pred_check
          %p511 = pneg %p304
        $region50: #{transformer_forward.7} parent=11 // pred_check_branch
          %513 = sbr.rel (%p511) target = $region52
        $region51: #{transformer_forward.7} parent=11 // pred_region
          _
        $region52: #{transformer_forward.7} parent=11 // pred_fallthru
          _
        // Predicated region
        $region53: #{transformer_forward.7} parent=11 // pred_check
          %p514 = pneg %p325
        $region54: #{transformer_forward.7} parent=11 // pred_check_branch
          %516 = sbr.rel (%p514) target = $region56
        $region55: #{transformer_forward.7} parent=11 // pred_region
          %518 = vsyncadd [#allocation5], 0
          %s519 = sshll.u32 %s12, 4
          %s520 = int_to_ptr.hbm [resolvable:$true] %s519
          %s521 = sshll.u32 [#allocation4], 4
          %s522 = int_to_ptr.vmem [resolvable:$true] %s521
          %527 = dma.hbm_to_vmem [thread:$0]  %s520, 256, %s522, [#allocation5], 64, 64, 4
        $region56: #{transformer_forward.7} parent=11 // pred_fallthru
          _
        // Predicated region
        $region57: #{transformer_forward.7} parent=11 // pred_check
          %p528 = pneg %p346
        $region58: #{transformer_forward.7} parent=11 // pred_check_branch
          %530 = sbr.rel (%p528) target = $region60
        $region59: #{transformer_forward.7} parent=11 // pred_region
          %532 = vsyncadd [#allocation5], 0
          %s534 = sshll.u32 %s13, 4
          %s535 = int_to_ptr.hbm [resolvable:$true] %s534
          %s536 = sshll.u32 [#allocation6], 4
          %s537 = int_to_ptr.vmem [resolvable:$true] %s536
          %539 = dma.hbm_to_vmem [thread:$0]  %s535, 16, %s537, [#allocation5]
        $region60: #{transformer_forward.7} parent=11 // pred_fallthru
          _
        // Predicated region
        $region61: #{transformer_forward.7} parent=11 // pred_check
          %p540 = pneg %p367
        $region62: #{transformer_forward.7} parent=11 // pred_check_branch
          %542 = sbr.rel (%p540) target = $region64
        $region63: #{transformer_forward.7} parent=11 // pred_region
          _
        $region64: #{transformer_forward.7} parent=11 // pred_fallthru
          _
        // Predicated region
        $region65: #{transformer_forward.7} parent=11 // pred_check
          %p543 = pneg %p388
        $region66: #{transformer_forward.7} parent=11 // pred_check_branch
          %545 = sbr.rel (%p543) target = $region68
        $region67: #{transformer_forward.7} parent=11 // pred_region
          %547 = vsyncadd [#allocation8], 0
          %s549 = sshll.u32 %s15, 4
          %s550 = int_to_ptr.hbm [resolvable:$true] %s549
          %s551 = sshll.u32 [#allocation7], 4
          %s552 = int_to_ptr.vmem [resolvable:$true] %s551
          %554 = dma.hbm_to_vmem [thread:$0]  %s550, 16, %s552, [#allocation8]
        $region68: #{transformer_forward.7} parent=11 // pred_fallthru
          _
        // Predicated region
        $region69: #{transformer_forward.7} parent=11 // pred_check
          %p555 = pneg %p409
        $region70: #{transformer_forward.7} parent=11 // pred_check_branch
          %557 = sbr.rel (%p555) target = $region72
        $region71: #{transformer_forward.7} parent=11 // pred_region
          %559 = vsyncadd [#allocation8], 0
          %s561 = sshll.u32 %s16, 4
          %s562 = int_to_ptr.hbm [resolvable:$true] %s561
          %s563 = sshll.u32 [#allocation9], 4
          %s564 = int_to_ptr.vmem [resolvable:$true] %s563
          %566 = dma.hbm_to_vmem [thread:$0]  %s562, 16, %s564, [#allocation8]
        $region72: #{transformer_forward.7} parent=11 // pred_fallthru
          _
        // Predicated region
        $region73: #{transformer_forward.7} parent=11 // pred_check
          %p567 = pneg %p430
        $region74: #{transformer_forward.7} parent=11 // pred_check_branch
          %569 = sbr.rel (%p567) target = $region76
        $region75: #{transformer_forward.7} parent=11 // pred_region
          %571 = vsyncadd [#allocation11], 0
          %s573 = sshll.u32 %s17, 4
          %s574 = int_to_ptr.hbm [resolvable:$true] %s573
          %s575 = sshll.u32 [#allocation10], 4
          %s576 = int_to_ptr.vmem [resolvable:$true] %s575
          %578 = dma.hbm_to_vmem [thread:$0]  %s574, 16, %s576, [#allocation11]
        $region76: #{transformer_forward.7} parent=11 // pred_fallthru
          _
      $region12: #{transformer_forward.7} parent=5 // pred_fallthru
        _
      %p579 = scmp.lt.s32.totalorder %s28, 2
      // Predicated region
      $region77: #{transformer_forward.7} parent=5 // pred_check
        %p580 = pneg %p579
      $region78: #{transformer_forward.7} parent=5 // pred_check_branch
        %582 = sbr.rel (%p580) target = $region80
      $region79: #{transformer_forward.7} parent=5 // pred_region
        // Predicated region
        $region81: #{transformer_forward.7} parent=79 // pred_check
          %p583 = pneg %p62
        $region82: #{transformer_forward.7} parent=79 // pred_check_branch
          %585 = sbr.rel (%p583) target = $region84
        $region83: #{transformer_forward.7} parent=79 // pred_region
          %p586 = scmp.lt.s32.totalorder %s35, 1
          %s587 = scalar_select %p586, %s35, 1
          %p588 = scmp.lt.s32.totalorder %s36, 0
          %s589 = scalar_select %p588, %s36, 0
          %s590 = sadd.s32 %s589, %s587
          %s591 = smul.addr %s590, 4
          %s592 = scalar_lea.vmem %s0, %s591
        $region84: #{transformer_forward.7} parent=79 // pred_fallthru
          _
        // Predicated region
        $region85: #{transformer_forward.7} parent=79 // pred_check
          %p593 = pneg %p88
        $region86: #{transformer_forward.7} parent=79 // pred_check_branch
          %595 = sbr.rel (%p593) target = $region88
        $region87: #{transformer_forward.7} parent=79 // pred_region
          %p596 = scmp.lt.s32.totalorder %s35, 1
          %s597 = scalar_select %p596, %s35, 1
          %s598 = smul.addr %s597, 4
          %s599 = scalar_lea.vmem %s1, %s598
        $region88: #{transformer_forward.7} parent=79 // pred_fallthru
          _
      $region80: #{transformer_forward.7} parent=5 // pred_fallthru
        _
      %p600 = scmp.le.s32.totalorder 1, %s28
      %p601 = scmp.lt.s32.totalorder %s28, 3
      %p602 = pnand %p600, %p601
      %p603 = pneg %p602
      // Predicated region
      $region89: #{transformer_forward.7} parent=5 // pred_check
        _
      $region90: #{transformer_forward.7} parent=5 // pred_check_branch
        %605 = sbr.rel (%p602) target = $region92
      $region91: #{transformer_forward.7} parent=5 // pred_region
        %s606 = ssub.s32 %s28, 1
        // Predicated region
        $region93: #{transformer_forward.7} parent=91 // pred_check
          %p607 = pneg %p241
        $region94: #{transformer_forward.7} parent=91 // pred_check_branch
          %609 = sbr.rel (%p607) target = $region96
        $region95: #{transformer_forward.7} parent=91 // pred_region
          %611 = dma.done [#allocation3], 256
        $region96: #{transformer_forward.7} parent=91 // pred_fallthru
          _
        // Predicated region
        $region97: #{transformer_forward.7} parent=91 // pred_check
          %p612 = pneg %p325
        $region98: #{transformer_forward.7} parent=91 // pred_check_branch
          %614 = sbr.rel (%p612) target = $region100
        $region99: #{transformer_forward.7} parent=91 // pred_region
          %616 = dma.done [#allocation5], 256
        $region100: #{transformer_forward.7} parent=91 // pred_fallthru
          _
        // Predicated region
        $region101: #{transformer_forward.7} parent=91 // pred_check
          %p617 = pneg %p346
        $region102: #{transformer_forward.7} parent=91 // pred_check_branch
          %619 = sbr.rel (%p617) target = $region104
        $region103: #{transformer_forward.7} parent=91 // pred_region
          %621 = dma.done [#allocation5], 16
        $region104: #{transformer_forward.7} parent=91 // pred_fallthru
          _
        // Predicated region
        $region105: #{transformer_forward.7} parent=91 // pred_check
          %p622 = pneg %p388
        $region106: #{transformer_forward.7} parent=91 // pred_check_branch
          %624 = sbr.rel (%p622) target = $region108
        $region107: #{transformer_forward.7} parent=91 // pred_region
          %626 = dma.done [#allocation8], 16
        $region108: #{transformer_forward.7} parent=91 // pred_fallthru
          _
        // Predicated region
        $region109: #{transformer_forward.7} parent=91 // pred_check
          %p627 = pneg %p409
        $region110: #{transformer_forward.7} parent=91 // pred_check_branch
          %629 = sbr.rel (%p627) target = $region112
        $region111: #{transformer_forward.7} parent=91 // pred_region
          %631 = dma.done [#allocation8], 16
        $region112: #{transformer_forward.7} parent=91 // pred_fallthru
          _
        // Predicated region
        $region113: #{transformer_forward.7} parent=91 // pred_check
          %p632 = pneg %p430
        $region114: #{transformer_forward.7} parent=91 // pred_check_branch
          %634 = sbr.rel (%p632) target = $region116
        $region115: #{transformer_forward.7} parent=91 // pred_region
          %636 = dma.done [#allocation11], 16
        $region116: #{transformer_forward.7} parent=91 // pred_fallthru
          _
        %p637 = scmp.lt.s32.totalorder %s37, 1
        %s638 = scalar_select %p637, %s37, 1
        %p639 = scmp.lt.s32.totalorder %s38, 0
        %s640 = scalar_select %p639, %s38, 0
        %s641 = sadd.s32 %s640, %s638
        %s642 = smul.addr %s641, 4
        %s643 = scalar_lea.vmem %s0, %s642
        %p644 = pneg %p68
        %p645 = pneg %p65
        %p646 = scmp.lt.s32.totalorder %s37, 1
        %s647 = scalar_select %p646, %s37, 1
        %s648 = smul.addr %s647, 4
        %s649 = scalar_lea.vmem %s1, %s648
        %p650 = pneg %p94
        %p651 = pneg %p91
        %p652 = pneg %p115
        %p653 = pneg %p112
        %p654 = pneg %p136
        %p655 = pneg %p133
        %p656 = pneg %p157
        %p657 = pneg %p154
        %p658 = pneg %p178
        %p659 = pneg %p175
        %p660 = pneg %p199
        %p661 = pneg %p196
        %p662 = pneg %p220
        %p663 = pneg %p217
        %p664 = pneg %p241
        %p665 = pneg %p238
        %p666 = pneg %p262
        %p667 = pneg %p259
        %p668 = pneg %p283
        %p669 = pneg %p280
        %p670 = pneg %p304
        %p671 = pneg %p301
        %p672 = pneg %p325
        %p673 = pneg %p322
        %p674 = pneg %p346
        %p675 = pneg %p343
        %p676 = pneg %p367
        %p677 = pneg %p364
        %p678 = pneg %p388
        %p679 = pneg %p385
        %p680 = pneg %p409
        %p681 = pneg %p406
        %p682 = pneg %p430
        %p683 = pneg %p427
        %p684 = pneg %p458
        %p685 = pneg %p455
        %p686 = scmp.lt.s32.totalorder %s37, 1
        %s687 = scalar_select %p686, %s37, 1
        %p688 = scmp.lt.s32.totalorder %s38, 0
        %s689 = scalar_select %p688, %s38, 0
        %s690 = sadd.s32 %s689, %s687
        %s691 = smul.addr %s690, 4
        %s692 = scalar_lea.vmem %s18, %s691
        %p693 = scmp.lt.s32.totalorder %s37, 1
        %s694 = scalar_select %p693, %s37, 1
        %p695 = scmp.lt.s32.totalorder %s38, 0
        %s696 = scalar_select %p695, %s38, 0
        %s697 = sadd.s32 %s696, %s694
        %s698 = smul.addr %s697, 4
        %s699 = scalar_lea.vmem %s0, %s698
        %p700 = scmp.lt.s32.totalorder %s37, 1
        %s701 = scalar_select %p700, %s37, 1
        %s702 = smul.addr %s701, 4
        %s703 = scalar_lea.vmem %s1, %s702
        %p704 = scmp.lt.s32.totalorder %s37, 1
        %s705 = scalar_select %p704, %s37, 1
        %p706 = scmp.lt.s32.totalorder %s38, 0
        %s707 = scalar_select %p706, %s38, 0
        %s708 = sadd.s32 %s707, %s705
        %s709 = smul.addr %s708, 4
        %s710 = scalar_lea.vmem %s18, %s709
        %v712 = vld [vmem:[%s699] sm:$0xf]
        %v713 = vld [vmem:[%s703] sm:$0xf]
        %v714 = vld [vmem:[%s2] sm:$0xf]
        %v715 = vld [vmem:[%s2 + $0x4] sm:$0xf]
        %v716 = vld [vmem:[%s2 + $0x8] sm:$0xf]
        %v717 = vld [vmem:[%s2 + $0xc] sm:$0xf]
        %v718 = vld [vmem:[%s3] sm:$0x1]
        %v720 = vperm.slane %v718, 0
        %v726 = vunpack.c.l.b16 %v714
        %v727 = vunpack.c.l.b16 %v715
        %v728 = vunpack.c.l.b16 %v716
        %v729 = vunpack.c.l.b16 %v717
        %v730 = vpack.c.b16 %v727, %v726
        %v731 = vpack.c.b16 %v729, %v728
        %vm734 = vcmask 261120
        %v736 = vsel %vm734, %v712, 0
        %738 = vmatpush.bf16.msra.mxu0 0
        %739 = vmatpush.bf16.msra.mxu0 0
        %740 = vmatpush.bf16.msra.mxu0 0
        %741 = vmatpush.bf16.msra.mxu0 0
        %742 = vmatpush.bf16.msra.mxu0 0
        %743 = vmatpush.bf16.msra.mxu0 0
        %744 = vmatpush.bf16.msra.mxu0 %v731
        %745 = vmatpush.bf16.msra.mxu0 %v730
        %746 = vmatmul.bf16.gmra.mxu0 %v736
        %v747 = vpop.f32.mrf.mxu0
        %v748 = vadd.f32 %v720, %v747
        %v749 = vpop.f32.mrf.mxu0
        %750 = vdwg.mxu0
        %v751 = vld [vmem:[%s4] sm:$0xf]
        %v752 = vld [vmem:[%s4 + $0x4] sm:$0xf]
        %v753 = vld [vmem:[%s4 + $0x8] sm:$0xf]
        %v754 = vld [vmem:[%s4 + $0xc] sm:$0xf]
        %v755 = vld [vmem:[%s5] sm:$0x1]
        %v757 = vperm.slane %v755, 0
        %v763 = vunpack.c.l.b16 %v751
        %v764 = vunpack.c.l.b16 %v752
        %v765 = vunpack.c.l.b16 %v753
        %v766 = vunpack.c.l.b16 %v754
        %v767 = vpack.c.b16 %v764, %v763
        %v768 = vpack.c.b16 %v766, %v765
        %v772 = vsel %vm734, %v713, 0
        %774 = vmatpush.bf16.msra.mxu0 0
        %775 = vmatpush.bf16.msra.mxu0 0
        %776 = vmatpush.bf16.msra.mxu0 0
        %777 = vmatpush.bf16.msra.mxu0 0
        %778 = vmatpush.bf16.msra.mxu0 0
        %779 = vmatpush.bf16.msra.mxu0 0
        %780 = vmatpush.bf16.msra.mxu0 %v768
        %781 = vmatpush.bf16.msra.mxu0 %v767
        %782 = vmatmul.bf16.gmra.mxu0 %v772
        %v783 = vpop.f32.mrf.mxu0
        %v784 = vadd.f32 %v757, %v783
        %v785 = vpop.f32.mrf.mxu0
        %786 = vdwg.mxu0
        %v787 = vld [vmem:[%s6] sm:$0xf]
        %v788 = vld [vmem:[%s6 + $0x4] sm:$0xf]
        %v789 = vld [vmem:[%s6 + $0x8] sm:$0xf]
        %v790 = vld [vmem:[%s6 + $0xc] sm:$0xf]
        %v791 = vld [vmem:[%s7] sm:$0x1]
        %v793 = vperm.slane %v791, 0
        %v799 = vunpack.c.l.b16 %v787
        %v800 = vunpack.c.l.b16 %v788
        %v801 = vunpack.c.l.b16 %v789
        %v802 = vunpack.c.l.b16 %v790
        %v803 = vpack.c.b16 %v800, %v799
        %v804 = vpack.c.b16 %v802, %v801
        %807 = vmatpush.bf16.msra.mxu0 0
        %808 = vmatpush.bf16.msra.mxu0 0
        %809 = vmatpush.bf16.msra.mxu0 0
        %810 = vmatpush.bf16.msra.mxu0 0
        %811 = vmatpush.bf16.msra.mxu0 0
        %812 = vmatpush.bf16.msra.mxu0 0
        %813 = vmatpush.bf16.msra.mxu0 %v804
        %814 = vmatpush.bf16.msra.mxu0 %v803
        %815 = vmatmul.bf16.gmra.mxu0 %v772
        %v816 = vpop.f32.mrf.mxu0
        %v817 = vadd.f32 %v793, %v816
        %v818 = vpop.f32.mrf.mxu0
        %819 = vdwg.mxu0
        %v820 = vpack.c.bf16 %v748, %v748
        %v821 = vpack.c.bf16 %v784, %v784
        %v822 = vpack.c.bf16 %v817, %v817
        %vm823 = vcmask 64512
        %v825 = vsel %vm823, %v820, 0
        %v828 = vsel %vm823, %v821, 0
        %830 = vmatpush.bf16.xpose.msra.mxu0 0
        %831 = vmatpush.bf16.xpose.msra.mxu0 0
        %832 = vmatpush.bf16.xpose.msra.mxu0 0
        %833 = vmatpush.bf16.xpose.msra.mxu0 0
        %834 = vmatpush.bf16.xpose.msra.mxu0 0
        %835 = vmatpush.bf16.xpose.msra.mxu0 0
        %836 = vmatpush.bf16.xpose.msra.mxu0 0
        %837 = vmatpush.bf16.xpose.msra.mxu0 %v828
        %838 = vmatmul.bf16.gmra.mxu0 %v825
        %v839 = vpop.f32.mrf.mxu0
        %v840 = vadd.f32 0.0, %v839
        %v841 = vpop.f32.mrf.mxu0
        %842 = vdwg.mxu0
        %v843 = vsel %vm823, %v840, -inf
        %844 = vmax.xlane.f32.xlu0 %v843
        %v845 = vpop.xlane.xlu0 %844
        %v846 = vsub.f32 %v840, %v845
        %v847 = vmul.f32 %v846, 1.442695
        %v848 = vpow.pop %v847
        %v849 = vsel %vm823, %v848, 0.0
        %850 = vadd.xlane.f32.xlu0 %v849
        %v851 = vpop.xlane.xlu0 %850
        %v852 = vpack.c.bf16 %v848, %v848
        %v854 = vsel %vm823, %v852, 0
        %vm856 = vcmask 1043456
        %v858 = vsel %vm856, %v822, 0
        %860 = vmatpush.bf16.msra.mxu0 0
        %861 = vmatpush.bf16.msra.mxu0 0
        %862 = vmatpush.bf16.msra.mxu0 0
        %863 = vmatpush.bf16.msra.mxu0 0
        %864 = vmatpush.bf16.msra.mxu0 0
        %865 = vmatpush.bf16.msra.mxu0 0
        %866 = vmatpush.bf16.msra.mxu0 0
        %867 = vmatpush.bf16.msra.mxu0 %v858
        %868 = vmatmul.bf16.gmra.mxu0 %v854
        %v869 = vpop.f32.mrf.mxu0
        %v870 = vadd.f32 0.0, %v869
        %v871 = vpop.f32.mrf.mxu0
        %872 = vdwg.mxu0
        %v873 = vrcp.pop %v851
        %v874 = vmul.f32 %v851, %v873
        %v875 = vsub.f32 1.0, %v874
        %v876 = vmul.f32 %v873, %v875
        %v877 = vadd.f32 %v873, %v876
        %vm878 = vweird.f32 %v851
        %vm879 = vweird.f32 %v873
        %vm880 = vmor %vm878, %vm879
        %v881 = vsel %vm880, %v873, %v877
        %v882 = vand.u32 2147483647, %v851
        %vm883 = vcmp.eq.f32.partialorder %v882, 8.507059e+37
        %v884 = vand.u32 %v851, 2147483648
        %v885 = vor.u32 1.1754944e-38, %v884
        %v886 = vsel %vm883, %v885, %v881
        %v887 = vmul.f32 %v870, %v886
        %v889 = vunpack.c.l.b16 %v820
        %v890 = vpack.c.b16 %v889, %v889
        %891 = vrot.lane.b32.xlu0 %v890, 120
        %v892 = vpop.permute.xlu0 %891
        %v894 = vunpack.c.l.b16 %v821
        %v895 = vpack.c.b16 %v894, %v894
        %896 = vrot.lane.b32.xlu0 %v895, 120
        %v897 = vpop.permute.xlu0 %896
        %v899 = vsel %vm823, %v892, 0
        %v902 = vsel %vm823, %v897, 0
        %904 = vmatpush.bf16.xpose.msra.mxu0 0
        %905 = vmatpush.bf16.xpose.msra.mxu0 0
        %906 = vmatpush.bf16.xpose.msra.mxu0 0
        %907 = vmatpush.bf16.xpose.msra.mxu0 0
        %908 = vmatpush.bf16.xpose.msra.mxu0 0
        %909 = vmatpush.bf16.xpose.msra.mxu0 0
        %910 = vmatpush.bf16.xpose.msra.mxu0 0
        %911 = vmatpush.bf16.xpose.msra.mxu0 %v902
        %912 = vmatmul.bf16.gmra.mxu0 %v899
        %v913 = vpop.f32.mrf.mxu0
        %v914 = vadd.f32 0.0, %v913
        %v915 = vpop.f32.mrf.mxu0
        %916 = vdwg.mxu0
        %v917 = vsel %vm823, %v914, -inf
        %918 = vmax.xlane.f32.xlu0 %v917
        %v919 = vpop.xlane.xlu0 %918
        %v920 = vsub.f32 %v914, %v919
        %v921 = vmul.f32 %v920, 1.442695
        %v922 = vpow.pop %v921
        %v923 = vsel %vm823, %v922, 0.0
        %924 = vadd.xlane.f32.xlu0 %v923
        %v925 = vpop.xlane.xlu0 %924
        %v926 = vpack.c.bf16 %v922, %v922
        %v928 = vunpack.c.l.b16 %v822
        %v929 = vpack.c.b16 %v928, %v928
        %930 = vrot.lane.b32.xlu0 %v929, 120
        %v931 = vpop.permute.xlu0 %930
        %v933 = vsel %vm823, %v926, 0
        %v936 = vsel %vm856, %v931, 0
        %938 = vmatpush.bf16.msra.mxu0 0
        %939 = vmatpush.bf16.msra.mxu0 0
        %940 = vmatpush.bf16.msra.mxu0 0
        %941 = vmatpush.bf16.msra.mxu0 0
        %942 = vmatpush.bf16.msra.mxu0 0
        %943 = vmatpush.bf16.msra.mxu0 0
        %944 = vmatpush.bf16.msra.mxu0 0
        %945 = vmatpush.bf16.msra.mxu0 %v936
        %946 = vmatmul.bf16.gmra.mxu0 %v933
        %v947 = vpop.f32.mrf.mxu0
        %v948 = vadd.f32 0.0, %v947
        %v949 = vpop.f32.mrf.mxu0
        %950 = vdwg.mxu0
        %v951 = vrcp.pop %v925
        %v952 = vmul.f32 %v925, %v951
        %v953 = vsub.f32 1.0, %v952
        %v954 = vmul.f32 %v951, %v953
        %v955 = vadd.f32 %v951, %v954
        %vm956 = vweird.f32 %v925
        %vm957 = vweird.f32 %v951
        %vm958 = vmor %vm956, %vm957
        %v959 = vsel %vm958, %v951, %v955
        %v960 = vand.u32 2147483647, %v925
        %vm961 = vcmp.eq.f32.partialorder %v960, 8.507059e+37
        %v962 = vand.u32 %v925, 2147483648
        %v963 = vor.u32 1.1754944e-38, %v962
        %v964 = vsel %vm961, %v963, %v959
        %v965 = vmul.f32 %v948, %v964
        %966 = vrot.lane.b32.xlu0 %v890, 112
        %v967 = vpop.permute.xlu0 %966
        %968 = vrot.lane.b32.xlu0 %v895, 112
        %v969 = vpop.permute.xlu0 %968
        %v971 = vsel %vm823, %v967, 0
        %v974 = vsel %vm823, %v969, 0
        %976 = vmatpush.bf16.xpose.msra.mxu0 0
        %977 = vmatpush.bf16.xpose.msra.mxu0 0
        %978 = vmatpush.bf16.xpose.msra.mxu0 0
        %979 = vmatpush.bf16.xpose.msra.mxu0 0
        %980 = vmatpush.bf16.xpose.msra.mxu0 0
        %981 = vmatpush.bf16.xpose.msra.mxu0 0
        %982 = vmatpush.bf16.xpose.msra.mxu0 0
        %983 = vmatpush.bf16.xpose.msra.mxu0 %v974
        %984 = vmatmul.bf16.gmra.mxu0 %v971
        %v985 = vpop.f32.mrf.mxu0
        %v986 = vadd.f32 0.0, %v985
        %v987 = vpop.f32.mrf.mxu0
        %988 = vdwg.mxu0
        %v989 = vsel %vm823, %v986, -inf
        %990 = vmax.xlane.f32.xlu0 %v989
        %v991 = vpop.xlane.xlu0 %990
        %v992 = vsub.f32 %v986, %v991
        %v993 = vmul.f32 %v992, 1.442695
        %v994 = vpow.pop %v993
        %v995 = vsel %vm823, %v994, 0.0
        %996 = vadd.xlane.f32.xlu0 %v995
        %v997 = vpop.xlane.xlu0 %996
        %v998 = vpack.c.bf16 %v994, %v994
        %999 = vrot.lane.b32.xlu0 %v929, 112
        %v1000 = vpop.permute.xlu0 %999
        %v1002 = vsel %vm823, %v998, 0
        %v1005 = vsel %vm856, %v1000, 0
        %1007 = vmatpush.bf16.msra.mxu0 0
        %1008 = vmatpush.bf16.msra.mxu0 0
        %1009 = vmatpush.bf16.msra.mxu0 0
        %1010 = vmatpush.bf16.msra.mxu0 0
        %1011 = vmatpush.bf16.msra.mxu0 0
        %1012 = vmatpush.bf16.msra.mxu0 0
        %1013 = vmatpush.bf16.msra.mxu0 0
        %1014 = vmatpush.bf16.msra.mxu0 %v1005
        %1015 = vmatmul.bf16.gmra.mxu0 %v1002
        %v1016 = vpop.f32.mrf.mxu0
        %v1017 = vadd.f32 0.0, %v1016
        %v1018 = vpop.f32.mrf.mxu0
        %1019 = vdwg.mxu0
        %v1020 = vrcp.pop %v997
        %v1021 = vmul.f32 %v997, %v1020
        %v1022 = vsub.f32 1.0, %v1021
        %v1023 = vmul.f32 %v1020, %v1022
        %v1024 = vadd.f32 %v1020, %v1023
        %vm1025 = vweird.f32 %v997
        %vm1026 = vweird.f32 %v1020
        %vm1027 = vmor %vm1025, %vm1026
        %v1028 = vsel %vm1027, %v1020, %v1024
        %v1029 = vand.u32 2147483647, %v997
        %vm1030 = vcmp.eq.f32.partialorder %v1029, 8.507059e+37
        %v1031 = vand.u32 %v997, 2147483648
        %v1032 = vor.u32 1.1754944e-38, %v1031
        %v1033 = vsel %vm1030, %v1032, %v1028
        %v1034 = vmul.f32 %v1017, %v1033
        %1035 = vrot.lane.b32.xlu0 %v890, 104
        %v1036 = vpop.permute.xlu0 %1035
        %1037 = vrot.lane.b32.xlu0 %v895, 104
        %v1038 = vpop.permute.xlu0 %1037
        %v1040 = vsel %vm823, %v1036, 0
        %v1043 = vsel %vm823, %v1038, 0
        %1045 = vmatpush.bf16.xpose.msra.mxu0 0
        %1046 = vmatpush.bf16.xpose.msra.mxu0 0
        %1047 = vmatpush.bf16.xpose.msra.mxu0 0
        %1048 = vmatpush.bf16.xpose.msra.mxu0 0
        %1049 = vmatpush.bf16.xpose.msra.mxu0 0
        %1050 = vmatpush.bf16.xpose.msra.mxu0 0
        %1051 = vmatpush.bf16.xpose.msra.mxu0 0
        %1052 = vmatpush.bf16.xpose.msra.mxu0 %v1043
        %1053 = vmatmul.bf16.gmra.mxu0 %v1040
        %v1054 = vpop.f32.mrf.mxu0
        %v1055 = vadd.f32 0.0, %v1054
        %v1056 = vpop.f32.mrf.mxu0
        %1057 = vdwg.mxu0
        %v1058 = vsel %vm823, %v1055, -inf
        %1059 = vmax.xlane.f32.xlu0 %v1058
        %v1060 = vpop.xlane.xlu0 %1059
        %v1061 = vsub.f32 %v1055, %v1060
        %v1062 = vmul.f32 %v1061, 1.442695
        %v1063 = vpow.pop %v1062
        %v1064 = vsel %vm823, %v1063, 0.0
        %1065 = vadd.xlane.f32.xlu0 %v1064
        %v1066 = vpop.xlane.xlu0 %1065
        %v1067 = vpack.c.bf16 %v1063, %v1063
        %1068 = vrot.lane.b32.xlu0 %v929, 104
        %v1069 = vpop.permute.xlu0 %1068
        %v1071 = vsel %vm823, %v1067, 0
        %v1074 = vsel %vm856, %v1069, 0
        %1076 = vmatpush.bf16.msra.mxu0 0
        %1077 = vmatpush.bf16.msra.mxu0 0
        %1078 = vmatpush.bf16.msra.mxu0 0
        %1079 = vmatpush.bf16.msra.mxu0 0
        %1080 = vmatpush.bf16.msra.mxu0 0
        %1081 = vmatpush.bf16.msra.mxu0 0
        %1082 = vmatpush.bf16.msra.mxu0 0
        %1083 = vmatpush.bf16.msra.mxu0 %v1074
        %1084 = vmatmul.bf16.gmra.mxu0 %v1071
        %v1085 = vpop.f32.mrf.mxu0
        %v1086 = vadd.f32 0.0, %v1085
        %v1087 = vpop.f32.mrf.mxu0
        %1088 = vdwg.mxu0
        %v1089 = vrcp.pop %v1066
        %v1090 = vmul.f32 %v1066, %v1089
        %v1091 = vsub.f32 1.0, %v1090
        %v1092 = vmul.f32 %v1089, %v1091
        %v1093 = vadd.f32 %v1089, %v1092
        %vm1094 = vweird.f32 %v1066
        %vm1095 = vweird.f32 %v1089
        %vm1096 = vmor %vm1094, %vm1095
        %v1097 = vsel %vm1096, %v1089, %v1093
        %v1098 = vand.u32 2147483647, %v1066
        %vm1099 = vcmp.eq.f32.partialorder %v1098, 8.507059e+37
        %v1100 = vand.u32 %v1066, 2147483648
        %v1101 = vor.u32 1.1754944e-38, %v1100
        %v1102 = vsel %vm1099, %v1101, %v1097
        %v1103 = vmul.f32 %v1086, %v1102
        %1105 = vrot.lane.b32.xlu0 %v965, 8
        %v1106 = vpop.permute.xlu0 %1105
        %1109 = vrot.lane.b32.xlu0 %v1034, 16
        %v1110 = vpop.permute.xlu0 %1109
        %1113 = vrot.lane.b32.xlu0 %v1103, 24
        %v1114 = vpop.permute.xlu0 %1113
        %v1116 = vsel %vm823, %v887, %v1106
        %vm1117 = vcmask 130048
        %v1118 = vsel %vm1117, %v1116, %v1110
        %vm1119 = vcmask 195584
        %v1120 = vsel %vm1119, %v1118, %v1114
        %v1121 = vpack.c.bf16 %v1120, %v1120
        %v1122 = vld [vmem:[#allocation2] sm:$0xf]
        %v1123 = vld [vmem:[#allocation2 + $0x4] sm:$0xf]
        %v1124 = vld [vmem:[#allocation2 + $0x8] sm:$0xf]
        %v1125 = vld [vmem:[#allocation2 + $0xc] sm:$0xf]
        %v1126 = vld [vmem:[%s9] sm:$0x1]
        %v1128 = vperm.slane %v1126, 0
        %v1134 = vunpack.c.l.b16 %v1122
        %v1135 = vunpack.c.l.b16 %v1123
        %v1136 = vunpack.c.l.b16 %v1124
        %v1137 = vunpack.c.l.b16 %v1125
        %v1138 = vpack.c.b16 %v1135, %v1134
        %v1139 = vpack.c.b16 %v1137, %v1136
        %v1143 = vsel %vm734, %v1121, 0
        %1145 = vmatpush.bf16.msra.mxu0 0
        %1146 = vmatpush.bf16.msra.mxu0 0
        %1147 = vmatpush.bf16.msra.mxu0 0
        %1148 = vmatpush.bf16.msra.mxu0 0
        %1149 = vmatpush.bf16.msra.mxu0 0
        %1150 = vmatpush.bf16.msra.mxu0 0
        %1151 = vmatpush.bf16.msra.mxu0 %v1139
        %1152 = vmatpush.bf16.msra.mxu0 %v1138
        %1153 = vmatmul.bf16.gmra.mxu0 %v1143
        %v1154 = vpop.f32.mrf.mxu0
        %v1155 = vadd.f32 %v1128, %v1154
        %v1156 = vpop.f32.mrf.mxu0
        %1157 = vdwg.mxu0
        %v1158 = vunpack.c.l.bf16 %v712
        %v1159 = vadd.f32 %v1155, %v1158
        %v1160 = vsel %vm734, %v1159, 0.0
        %1161 = vadd.xlane.f32.xlu0 %v1160
        %v1162 = vpop.xlane.xlu0 %1161
        %v1163 = vrcp.pop 32.0
        %v1164 = vmul.f32 32.0, %v1163
        %v1165 = vsub.f32 1.0, %v1164
        %v1166 = vmul.f32 %v1163, %v1165
        %v1167 = vadd.f32 %v1163, %v1166
        %vm1168 = vweird.f32 %v1163
        %v1169 = vsel %vm1168, %v1163, %v1167
        %v1170 = vmul.f32 %v1162, %v1169
        %v1171 = vsub.f32 %v1159, %v1170
        %v1172 = vmul.f32 %v1171, %v1171
        %v1173 = vsel %vm734, %v1172, 0.0
        %1174 = vadd.xlane.f32.xlu0 %v1173
        %v1175 = vpop.xlane.xlu0 %1174
        %v1176 = vmul.f32 %v1175, %v1169
        %v1177 = vadd.f32 %v1176, 1e-05
        %v1178 = vrsqrt.pop %v1177
        %v1179 = vmul.f32 %v1178, %v1177
        %v1180 = vmul.f32 %v1179, %v1178
        %v1181 = vmul.f32 0.5, %v1180
        %v1182 = vsub.f32 1.5, %v1181
        %v1183 = vmul.f32 %v1178, %v1182
        %vm1184 = vweird.f32 %v1177
        %vm1185 = vweird.f32 %v1178
        %vm1186 = vmor %vm1184, %vm1185
        %v1187 = vsel %vm1186, %v1178, %v1183
        %v1188 = vmul.f32 %v1171, %v1187
        %v1189 = vld [vmem:[%s10] sm:$0x1]
        %v1191 = vperm.slane %v1189, 0
        %v1193 = vmul.f32 %v1188, %v1191
        %v1194 = vld [vmem:[%s11] sm:$0x1]
        %v1196 = vperm.slane %v1194, 0
        %v1198 = vadd.f32 %v1193, %v1196
        %v1199 = vpack.c.bf16 %v1198, %v1198
        %v1200 = vld [vmem:[#allocation4] sm:$0xf]
        %v1201 = vld [vmem:[#allocation4 + $0x4] sm:$0xf]
        %v1202 = vld [vmem:[#allocation4 + $0x8] sm:$0xf]
        %v1203 = vld [vmem:[#allocation4 + $0xc] sm:$0xf]
        %v1204 = vld [vmem:[#allocation6] sm:$0x1]
        %v1206 = vperm.slane %v1204, 0
        %v1212 = vunpack.c.l.b16 %v1200
        %v1213 = vunpack.c.l.b16 %v1201
        %v1214 = vunpack.c.l.b16 %v1202
        %v1215 = vunpack.c.l.b16 %v1203
        %v1216 = vpack.c.b16 %v1213, %v1212
        %v1217 = vpack.c.b16 %v1215, %v1214
        %v1221 = vsel %vm734, %v1199, 0
        %1223 = vmatpush.bf16.msra.mxu0 0
        %1224 = vmatpush.bf16.msra.mxu0 0
        %1225 = vmatpush.bf16.msra.mxu0 0
        %1226 = vmatpush.bf16.msra.mxu0 0
        %1227 = vmatpush.bf16.msra.mxu0 0
        %1228 = vmatpush.bf16.msra.mxu0 0
        %1229 = vmatpush.bf16.msra.mxu0 %v1217
        %1230 = vmatpush.bf16.msra.mxu0 %v1216
        %1231 = vmatmul.bf16.gmra.mxu0 %v1221
        %v1232 = vpop.f32.mrf.mxu0
        %v1233 = vadd.f32 %v1206, %v1232
        %v1234 = vpop.f32.mrf.mxu0
        %1235 = vdwg.mxu0
        %v1236 = vmax.f32 %v1233, 0.0
        %v1237 = vpack.c.bf16 %v1236, %v1236
        %v1238 = vld [vmem:[%s14] sm:$0xf]
        %v1239 = vld [vmem:[%s14 + $0x4] sm:$0xf]
        %v1240 = vld [vmem:[%s14 + $0x8] sm:$0xf]
        %v1241 = vld [vmem:[%s14 + $0xc] sm:$0xf]
        %v1242 = vld [vmem:[%s14 + $0x10] sm:$0xf]
        %v1243 = vld [vmem:[%s14 + $0x14] sm:$0xf]
        %v1244 = vld [vmem:[%s14 + $0x18] sm:$0xf]
        %v1245 = vld [vmem:[%s14 + $0x1c] sm:$0xf]
        %v1246 = vld [vmem:[#allocation7] sm:$0x1]
        %v1248 = vperm.slane %v1246, 0
        %v1258 = vunpack.c.l.b16 %v1238
        %v1259 = vunpack.c.l.b16 %v1239
        %v1260 = vunpack.c.l.b16 %v1240
        %v1261 = vunpack.c.l.b16 %v1241
        %v1262 = vunpack.c.l.b16 %v1242
        %v1263 = vunpack.c.l.b16 %v1243
        %v1264 = vunpack.c.l.b16 %v1244
        %v1265 = vunpack.c.l.b16 %v1245
        %v1266 = vpack.c.b16 %v1259, %v1258
        %v1267 = vpack.c.b16 %v1261, %v1260
        %v1268 = vpack.c.b16 %v1263, %v1262
        %v1269 = vpack.c.b16 %v1265, %v1264
        %vm1274 = vcmask 523264
        %v1276 = vsel %vm1274, %v1237, 0
        %1278 = vmatpush.bf16.msra.mxu0 0
        %1279 = vmatpush.bf16.msra.mxu0 0
        %1280 = vmatpush.bf16.msra.mxu0 0
        %1281 = vmatpush.bf16.msra.mxu0 0
        %1282 = vmatpush.bf16.msra.mxu0 %v1269
        %1283 = vmatpush.bf16.msra.mxu0 %v1268
        %1284 = vmatpush.bf16.msra.mxu0 %v1267
        %1285 = vmatpush.bf16.msra.mxu0 %v1266
        %1286 = vmatmul.bf16.gmra.mxu0 %v1276
        %v1287 = vpop.f32.mrf.mxu0
        %v1288 = vadd.f32 %v1248, %v1287
        %v1289 = vpop.f32.mrf.mxu0
        %1290 = vdwg.mxu0
        %v1291 = vadd.f32 %v1288, %v1198
        %v1292 = vsel %vm734, %v1291, 0.0
        %1293 = vadd.xlane.f32.xlu0 %v1292
        %v1294 = vpop.xlane.xlu0 %1293
        %v1295 = vmul.f32 %v1294, %v1169
        %v1296 = vsub.f32 %v1291, %v1295
        %v1297 = vmul.f32 %v1296, %v1296
        %v1298 = vsel %vm734, %v1297, 0.0
        %1299 = vadd.xlane.f32.xlu0 %v1298
        %v1300 = vpop.xlane.xlu0 %1299
        %v1301 = vmul.f32 %v1300, %v1169
        %v1302 = vadd.f32 %v1301, 1e-05
        %v1303 = vrsqrt.pop %v1302
        %v1304 = vmul.f32 %v1303, %v1302
        %v1305 = vmul.f32 %v1304, %v1303
        %v1306 = vmul.f32 0.5, %v1305
        %v1307 = vsub.f32 1.5, %v1306
        %v1308 = vmul.f32 %v1303, %v1307
        %vm1309 = vweird.f32 %v1302
        %vm1310 = vweird.f32 %v1303
        %vm1311 = vmor %vm1309, %vm1310
        %v1312 = vsel %vm1311, %v1303, %v1308
        %v1313 = vmul.f32 %v1296, %v1312
        %v1314 = vld [vmem:[#allocation9] sm:$0x1]
        %v1316 = vperm.slane %v1314, 0
        %v1318 = vmul.f32 %v1313, %v1316
        %v1319 = vld [vmem:[#allocation10] sm:$0x1]
        %v1321 = vperm.slane %v1319, 0
        %v1323 = vadd.f32 %v1318, %v1321
        %v1324 = vpack.c.bf16 %v1323, %v1323
        %vm1325 = vcmask 257024
        %1326 = vst.msk [vmem:[%s710] sm:$0xf] %vm1325, %v1324
        %p1327 = scmp.lt.s32.totalorder %s37, 1
        %s1328 = scalar_select %p1327, %s37, 1
        %p1329 = scmp.lt.s32.totalorder %s38, 0
        %s1330 = scalar_select %p1329, %s38, 0
        %s1331 = sadd.s32 %s1330, %s1328
        %s1332 = smul.addr %s1331, 4
        %s1333 = scalar_lea.vmem %s18, %s1332
        // Predicated region
        $region117: #{transformer_forward.7} parent=91 // pred_check
          %p1334 = pneg %p455
        $region118: #{transformer_forward.7} parent=91 // pred_check_branch
          %1336 = sbr.rel (%p1334) target = $region120
        $region119: #{transformer_forward.7} parent=91 // pred_region
          _
        $region120: #{transformer_forward.7} parent=91 // pred_fallthru
          _
      $region92: #{transformer_forward.7} parent=5 // pred_fallthru
        _
      %p1337 = scmp.le.s32.totalorder 2, %s28
      // Predicated region
      $region121: #{transformer_forward.7} parent=5 // pred_check
        %p1338 = pneg %p1337
      $region122: #{transformer_forward.7} parent=5 // pred_check_branch
        %1340 = sbr.rel (%p1338) target = $region124
      $region123: #{transformer_forward.7} parent=5 // pred_region
        %s1341 = ssub.s32 %s28, 2
        // Predicated region
        $region125: #{transformer_forward.7} parent=123 // pred_check
          %p1342 = pneg %p461
        $region126: #{transformer_forward.7} parent=123 // pred_check_branch
          %1344 = sbr.rel (%p1342) target = $region128
        $region127: #{transformer_forward.7} parent=123 // pred_region
          %p1345 = scmp.lt.s32.totalorder %s39, 1
          %s1346 = scalar_select %p1345, %s39, 1
          %p1347 = scmp.lt.s32.totalorder %s40, 0
          %s1348 = scalar_select %p1347, %s40, 0
          %s1349 = sadd.s32 %s1348, %s1346
          %s1350 = smul.addr %s1349, 4
          %s1351 = scalar_lea.vmem %s18, %s1350
        $region128: #{transformer_forward.7} parent=123 // pred_fallthru
          _
      $region124: #{transformer_forward.7} parent=5 // pred_fallthru
        _
    $region6: #{transformer_forward.7} parent=1 // loop_footer
      %s32 = sadd.s32 1, %s28
    $region7: #{transformer_forward.7} parent=1 // loop_footer_branch
      %27 = sbr.rel target = $region3
    $region8: #{transformer_forward.7} parent=1 // loop_exit
      _
    %1352 = vsyncpa [#allocation3], 1
    %s1353 = scalar_lea.sflag [#allocation3], 1
    %1354 = vsyncpa %s1353, 1
    %1355 = vsyncpa [#allocation5], 1
    %1356 = vsyncpa [#allocation8], 1
    %1357 = vsyncpa [#allocation11], 1

// kernel: transformer_forward.9
$region0: #{transformer_forward.9}
  #allocation0 [shape = 'u32[]', space=smem, size = 0x4, offset = 0x4, fixed_abs, tag = 'smem constant byte address 0x4 - core index']
  #allocation1 [shape = 'u32[72,128]{1,0:T(1,128)}', space=vmem, size = 0x9000, scoped, tag = 'internal scratch']
  #allocation2 [shape = 'f32[2,64]{1,0:T(2,128)}', space=vmem, size = 0x400, scoped, tag = 'scratch operand']
  %s0 = inlined_call_operand.vmem [shape: bf16[2,256], index: 0, kind: input, shape index: {}]
  %s1 = inlined_call_operand.vmem [shape: bf16[256,64], index: 1, kind: input, shape index: {}]
  %s2 = inlined_call_operand.vmem [shape: f32[1,64], index: 2, kind: input, shape index: {}]
  %s3 = inlined_call_operand.vmem [shape: bf16[2,64], index: 3, kind: output, shape index: {}]
  %s4 = sld [smem:[#allocation0]]
  $region30: #{transformer_forward.9} parent=0
    _
  %s6 = ssub.s32 1, %s4
  %s7 = scalar_select 0, %s6, %s4
  // Predicated region
  $region2: #{transformer_forward.9} parent=0 // pred_check
    _
  $region3: #{transformer_forward.9} parent=0 // pred_check_branch
    %9 = sbr.rel (0) target = $region5
  $region4: #{transformer_forward.9} parent=0 // pred_region
    _
  $region5: #{transformer_forward.9} parent=0 // pred_fallthru
    _
  // Predicated region
  $region6: #{transformer_forward.9} parent=0 // pred_check
    _
  $region7: #{transformer_forward.9} parent=0 // pred_check_branch
    %11 = sbr.rel (0) target = $region9
  $region8: #{transformer_forward.9} parent=0 // pred_region
    _
  $region9: #{transformer_forward.9} parent=0 // pred_fallthru
    _
  // Predicated region
  $region10: #{transformer_forward.9} parent=0 // pred_check
    _
  $region11: #{transformer_forward.9} parent=0 // pred_check_branch
    %13 = sbr.rel (0) target = $region13
  $region12: #{transformer_forward.9} parent=0 // pred_region
    _
  $region13: #{transformer_forward.9} parent=0 // pred_fallthru
    _
  %p14 = scmp.eq.s32.totalorder 0, 0
  // Predicated region
  $region14: #{transformer_forward.9} parent=0 // pred_check
    %p15 = pneg %p14
  $region15: #{transformer_forward.9} parent=0 // pred_check_branch
    %17 = sbr.rel (%p15) target = $region17
  $region16: #{transformer_forward.9} parent=0 // pred_region
    %vm18 = vcmask 517120
    %19 = vst.msk [vmem:[#allocation2] sm:$0x3] %vm18, 0.0
  $region17: #{transformer_forward.9} parent=0 // pred_fallthru
    _
  %v20 = vld [vmem:[%s0] sm:$0x3]
  %v21 = vld [vmem:[#allocation2] sm:$0x3]
  %v22 = vld [vmem:[%s1] sm:$0xf]
  %v23 = vld [vmem:[%s1 + $0x4] sm:$0xf]
  %v24 = vld [vmem:[%s1 + $0x8] sm:$0xf]
  %v25 = vld [vmem:[%s1 + $0xc] sm:$0xf]
  %v26 = vld [vmem:[%s1 + $0x10] sm:$0xf]
  %v27 = vld [vmem:[%s1 + $0x14] sm:$0xf]
  %v28 = vld [vmem:[%s1 + $0x18] sm:$0xf]
  %v29 = vld [vmem:[%s1 + $0x1c] sm:$0xf]
  %v30 = vld [vmem:[%s1 + $0x20] sm:$0xf]
  %v31 = vld [vmem:[%s1 + $0x24] sm:$0xf]
  %v32 = vld [vmem:[%s1 + $0x28] sm:$0xf]
  %v33 = vld [vmem:[%s1 + $0x2c] sm:$0xf]
  %v34 = vld [vmem:[%s1 + $0x30] sm:$0xf]
  %v35 = vld [vmem:[%s1 + $0x34] sm:$0xf]
  %v36 = vld [vmem:[%s1 + $0x38] sm:$0xf]
  %v37 = vld [vmem:[%s1 + $0x3c] sm:$0xf]
  %v38 = vld [vmem:[%s1 + $0x40] sm:$0xf]
  %v39 = vld [vmem:[%s1 + $0x44] sm:$0xf]
  %v40 = vld [vmem:[%s1 + $0x48] sm:$0xf]
  %v41 = vld [vmem:[%s1 + $0x4c] sm:$0xf]
  %v42 = vld [vmem:[%s1 + $0x50] sm:$0xf]
  %v43 = vld [vmem:[%s1 + $0x54] sm:$0xf]
  %v44 = vld [vmem:[%s1 + $0x58] sm:$0xf]
  %v45 = vld [vmem:[%s1 + $0x5c] sm:$0xf]
  %v46 = vld [vmem:[%s1 + $0x60] sm:$0xf]
  %v47 = vld [vmem:[%s1 + $0x64] sm:$0xf]
  %v48 = vld [vmem:[%s1 + $0x68] sm:$0xf]
  %v49 = vld [vmem:[%s1 + $0x6c] sm:$0xf]
  %v50 = vld [vmem:[%s1 + $0x70] sm:$0xf]
  %v51 = vld [vmem:[%s1 + $0x74] sm:$0xf]
  %v52 = vld [vmem:[%s1 + $0x78] sm:$0xf]
  %v53 = vld [vmem:[%s1 + $0x7c] sm:$0xf]
  %55 = vst [vmem:[#allocation1] ss:$9 sm:$0xff] %v20
  %v56 = vld [vmem:[#allocation1] sm:$0xff]
  %v57 = vld [vmem:[#allocation1 + $0x9] sm:$0xff]
  %v92 = vunpack.c.l.b16 %v22
  %v93 = vunpack.c.l.b16 %v23
  %v94 = vunpack.c.l.b16 %v24
  %v95 = vunpack.c.l.b16 %v25
  %v96 = vunpack.c.l.b16 %v26
  %v97 = vunpack.c.l.b16 %v27
  %v98 = vunpack.c.l.b16 %v28
  %v99 = vunpack.c.l.b16 %v29
  %v100 = vunpack.c.l.b16 %v30
  %v101 = vunpack.c.l.b16 %v31
  %v102 = vunpack.c.l.b16 %v32
  %v103 = vunpack.c.l.b16 %v33
  %v104 = vunpack.c.l.b16 %v34
  %v105 = vunpack.c.l.b16 %v35
  %v106 = vunpack.c.l.b16 %v36
  %v107 = vunpack.c.l.b16 %v37
  %v108 = vunpack.c.l.b16 %v38
  %v109 = vunpack.c.l.b16 %v39
  %v110 = vunpack.c.l.b16 %v40
  %v111 = vunpack.c.l.b16 %v41
  %v112 = vunpack.c.l.b16 %v42
  %v113 = vunpack.c.l.b16 %v43
  %v114 = vunpack.c.l.b16 %v44
  %v115 = vunpack.c.l.b16 %v45
  %v116 = vunpack.c.l.b16 %v46
  %v117 = vunpack.c.l.b16 %v47
  %v118 = vunpack.c.l.b16 %v48
  %v119 = vunpack.c.l.b16 %v49
  %v120 = vunpack.c.l.b16 %v50
  %v121 = vunpack.c.l.b16 %v51
  %v122 = vunpack.c.l.b16 %v52
  %v123 = vunpack.c.l.b16 %v53
  %v124 = vpack.c.b16 %v93, %v92
  %v125 = vpack.c.b16 %v95, %v94
  %v126 = vpack.c.b16 %v97, %v96
  %v127 = vpack.c.b16 %v99, %v98
  %v128 = vpack.c.b16 %v101, %v100
  %v129 = vpack.c.b16 %v103, %v102
  %v130 = vpack.c.b16 %v105, %v104
  %v131 = vpack.c.b16 %v107, %v106
  %v132 = vpack.c.b16 %v109, %v108
  %v133 = vpack.c.b16 %v111, %v110
  %v134 = vpack.c.b16 %v113, %v112
  %v135 = vpack.c.b16 %v115, %v114
  %v136 = vpack.c.b16 %v117, %v116
  %v137 = vpack.c.b16 %v119, %v118
  %v138 = vpack.c.b16 %v121, %v120
  %v139 = vpack.c.b16 %v123, %v122
  %156 = vmatpush.bf16.msra.mxu0 %v131
  %157 = vmatpush.bf16.msra.mxu0 %v130
  %158 = vmatpush.bf16.msra.mxu0 %v129
  %159 = vmatpush.bf16.msra.mxu0 %v128
  %160 = vmatpush.bf16.msra.mxu0 %v127
  %161 = vmatpush.bf16.msra.mxu0 %v126
  %162 = vmatpush.bf16.msra.mxu0 %v125
  %163 = vmatpush.bf16.msra.mxu0 %v124
  %164 = vmatmul.bf16.gmra.mxu0 %v56
  %v165 = vpop.f32.mrf.mxu0
  %v166 = vadd.f32 0.0, %v165
  %v167 = vpop.f32.mrf.mxu0
  %168 = vdwg.mxu0
  %169 = vmatpush.bf16.msra.mxu0 %v139
  %170 = vmatpush.bf16.msra.mxu0 %v138
  %171 = vmatpush.bf16.msra.mxu0 %v137
  %172 = vmatpush.bf16.msra.mxu0 %v136
  %173 = vmatpush.bf16.msra.mxu0 %v135
  %174 = vmatpush.bf16.msra.mxu0 %v134
  %175 = vmatpush.bf16.msra.mxu0 %v133
  %176 = vmatpush.bf16.msra.mxu0 %v132
  %177 = vmatmul.bf16.gmra.mxu0 %v57
  %v178 = vpop.f32.mrf.mxu0
  %v179 = vadd.f32 %v166, %v178
  %v180 = vpop.f32.mrf.mxu0
  %181 = vdwg.mxu0
  %v182 = vadd.f32 %v21, %v179
  %vm183 = vcmask 517120
  %184 = vst.msk [vmem:[#allocation2] sm:$0x3] %vm183, %v182
  // Predicated region
  $region18: #{transformer_forward.9} parent=0 // pred_check
    %p185 = pneg %p14
  $region19: #{transformer_forward.9} parent=0 // pred_check_branch
    %187 = sbr.rel (%p185) target = $region21
  $region20: #{transformer_forward.9} parent=0 // pred_region
    %v188 = vld [vmem:[#allocation2] sm:$0x3]
    %v189 = vld [vmem:[%s2] sm:$0x1]
    %v191 = vperm.slane %v189, 0
    %v193 = vadd.f32 %v188, %v191
    %v194 = vmax.f32 %v193, 0.0
    %v195 = vpack.c.bf16 %v194, %v194
    %vm196 = vcmask 516096
    %197 = vst.msk [vmem:[%s3] sm:$0x1] %vm196, %v195
  $region21: #{transformer_forward.9} parent=0 // pred_fallthru
    _
  // Predicated region
  $region22: #{transformer_forward.9} parent=0 // pred_check
    _
  $region23: #{transformer_forward.9} parent=0 // pred_check_branch
    %199 = sbr.rel (0) target = $region25
  $region24: #{transformer_forward.9} parent=0 // pred_region
    _
  $region25: #{transformer_forward.9} parent=0 // pred_fallthru
    _
  // Predicated region
  $region26: #{transformer_forward.9} parent=0 // pred_check
    _
  $region27: #{transformer_forward.9} parent=0 // pred_check_branch
    %201 = sbr.rel (0) target = $region29
  $region28: #{transformer_forward.9} parent=0 // pred_region
    _
  $region29: #{transformer_forward.9} parent=0 // pred_fallthru
    _

// kernel: transformer_forward.10
$region0: #{transformer_forward.10}
  #allocation0 [shape = 'u32[]', space=smem, size = 0x4, offset = 0x4, fixed_abs, tag = 'smem constant byte address 0x4 - core index']
  #allocation1 [shape = 'u32[72,128]{1,0:T(1,128)}', space=vmem, size = 0x9000, scoped, tag = 'internal scratch']
  #allocation2 [shape = 'f32[2,32]{1,0:T(2,128)}', space=vmem, size = 0x400, scoped, tag = 'scratch operand']
  %s0 = inlined_call_operand.vmem [shape: bf16[2,64], index: 0, kind: input, shape index: {}]
  %s1 = inlined_call_operand.vmem [shape: bf16[64,32], index: 1, kind: input, shape index: {}]
  %s2 = inlined_call_operand.vmem [shape: f32[1,32], index: 2, kind: input, shape index: {}]
  %s3 = inlined_call_operand.vmem [shape: bf16[2,32], index: 3, kind: output, shape index: {}]
  %s4 = sld [smem:[#allocation0]]
  $region30: #{transformer_forward.10} parent=0
    _
  %s6 = ssub.s32 1, %s4
  %s7 = scalar_select 0, %s6, %s4
  // Predicated region
  $region2: #{transformer_forward.10} parent=0 // pred_check
    _
  $region3: #{transformer_forward.10} parent=0 // pred_check_branch
    %9 = sbr.rel (0) target = $region5
  $region4: #{transformer_forward.10} parent=0 // pred_region
    _
  $region5: #{transformer_forward.10} parent=0 // pred_fallthru
    _
  // Predicated region
  $region6: #{transformer_forward.10} parent=0 // pred_check
    _
  $region7: #{transformer_forward.10} parent=0 // pred_check_branch
    %11 = sbr.rel (0) target = $region9
  $region8: #{transformer_forward.10} parent=0 // pred_region
    _
  $region9: #{transformer_forward.10} parent=0 // pred_fallthru
    _
  // Predicated region
  $region10: #{transformer_forward.10} parent=0 // pred_check
    _
  $region11: #{transformer_forward.10} parent=0 // pred_check_branch
    %13 = sbr.rel (0) target = $region13
  $region12: #{transformer_forward.10} parent=0 // pred_region
    _
  $region13: #{transformer_forward.10} parent=0 // pred_fallthru
    _
  %p15 = scmp.eq.s32.totalorder 0, 0
  // Predicated region
  $region14: #{transformer_forward.10} parent=0 // pred_check
    %p16 = pneg %p15
  $region15: #{transformer_forward.10} parent=0 // pred_check_branch
    %18 = sbr.rel (%p16) target = $region17
  $region16: #{transformer_forward.10} parent=0 // pred_region
    %vm19 = vcmask 254976
    %20 = vst.msk [vmem:[#allocation2] sm:$0x3] %vm19, 0.0
  $region17: #{transformer_forward.10} parent=0 // pred_fallthru
    _
  %v21 = vld [vmem:[%s0] sm:$0x1]
  %v22 = vld [vmem:[#allocation2] sm:$0x3]
  %v23 = vld [vmem:[%s1] sm:$0xf]
  %v24 = vld [vmem:[%s1 + $0x4] sm:$0xf]
  %v25 = vld [vmem:[%s1 + $0x8] sm:$0xf]
  %v26 = vld [vmem:[%s1 + $0xc] sm:$0xf]
  %v27 = vld [vmem:[%s1 + $0x10] sm:$0xf]
  %v28 = vld [vmem:[%s1 + $0x14] sm:$0xf]
  %v29 = vld [vmem:[%s1 + $0x18] sm:$0xf]
  %v30 = vld [vmem:[%s1 + $0x1c] sm:$0xf]
  %v39 = vunpack.c.l.b16 %v23
  %v40 = vunpack.c.l.b16 %v24
  %v41 = vunpack.c.l.b16 %v25
  %v42 = vunpack.c.l.b16 %v26
  %v43 = vunpack.c.l.b16 %v27
  %v44 = vunpack.c.l.b16 %v28
  %v45 = vunpack.c.l.b16 %v29
  %v46 = vunpack.c.l.b16 %v30
  %v47 = vpack.c.b16 %v40, %v39
  %v48 = vpack.c.b16 %v42, %v41
  %v49 = vpack.c.b16 %v44, %v43
  %v50 = vpack.c.b16 %v46, %v45
  %vm55 = vcmask 523264
  %v57 = vsel %vm55, %v21, 0
  %59 = vmatpush.bf16.msra.mxu0 0
  %60 = vmatpush.bf16.msra.mxu0 0
  %61 = vmatpush.bf16.msra.mxu0 0
  %62 = vmatpush.bf16.msra.mxu0 0
  %63 = vmatpush.bf16.msra.mxu0 %v50
  %64 = vmatpush.bf16.msra.mxu0 %v49
  %65 = vmatpush.bf16.msra.mxu0 %v48
  %66 = vmatpush.bf16.msra.mxu0 %v47
  %67 = vmatmul.bf16.gmra.mxu0 %v57
  %v68 = vpop.f32.mrf.mxu0
  %v69 = vadd.f32 0.0, %v68
  %v70 = vpop.f32.mrf.mxu0
  %71 = vdwg.mxu0
  %v72 = vadd.f32 %v22, %v69
  %vm73 = vcmask 254976
  %74 = vst.msk [vmem:[#allocation2] sm:$0x3] %vm73, %v72
  // Predicated region
  $region18: #{transformer_forward.10} parent=0 // pred_check
    %p75 = pneg %p15
  $region19: #{transformer_forward.10} parent=0 // pred_check_branch
    %77 = sbr.rel (%p75) target = $region21
  $region20: #{transformer_forward.10} parent=0 // pred_region
    %v78 = vld [vmem:[#allocation2] sm:$0x3]
    %v79 = vld [vmem:[%s2] sm:$0x1]
    %v81 = vperm.slane %v79, 0
    %v83 = vadd.f32 %v78, %v81
    %v84 = vmax.f32 %v83, 0.0
    %v85 = vpack.c.bf16 %v84, %v84
    %vm86 = vcmask 253952
    %87 = vst.msk [vmem:[%s3] sm:$0x1] %vm86, %v85
  $region21: #{transformer_forward.10} parent=0 // pred_fallthru
    _
  // Predicated region
  $region22: #{transformer_forward.10} parent=0 // pred_check
    _
  $region23: #{transformer_forward.10} parent=0 // pred_check_branch
    %89 = sbr.rel (0) target = $region25
  $region24: #{transformer_forward.10} parent=0 // pred_region
    _
  $region25: #{transformer_forward.10} parent=0 // pred_fallthru
    _
  // Predicated region
  $region26: #{transformer_forward.10} parent=0 // pred_check
    _
  $region27: #{transformer_forward.10} parent=0 // pred_check_branch
    %91 = sbr.rel (0) target = $region29
  $region28: #{transformer_forward.10} parent=0 // pred_region
    _
  $region29: #{transformer_forward.10} parent=0 // pred_fallthru
    _

// kernel: transformer_forward.8
$region0: #{transformer_forward.8}
  #allocation0 [shape = 'u32[]', space=smem, size = 0x4, offset = 0x4, fixed_abs, tag = 'smem constant byte address 0x4 - core index']
  #allocation1 [shape = 'u32[72,128]{1,0:T(1,128)}', space=vmem, size = 0x9000, scoped, tag = 'internal scratch']
  %s0 = inlined_call_operand.vmem [shape: bf16[2,8,32], index: 0, kind: input, shape index: {}, may-alias: {0,1}]
  %s1 = inlined_call_operand.vmem [shape: bf16[2,8,32], index: 1, kind: input, shape index: {}, may-alias: {0,1}]
  %s2 = inlined_call_operand.hbm [shape: bf16[32,32], index: 2, kind: input, shape index: {}]
  %s3 = inlined_call_operand.hbm [shape: f32[1,32], index: 3, kind: input, shape index: {}]
  %s4 = inlined_call_operand.hbm [shape: bf16[32,32], index: 4, kind: input, shape index: {}]
  %s5 = inlined_call_operand.hbm [shape: f32[1,32], index: 5, kind: input, shape index: {}]
  %s6 = inlined_call_operand.hbm [shape: bf16[32,32], index: 6, kind: input, shape index: {}]
  %s7 = inlined_call_operand.hbm [shape: f32[1,32], index: 7, kind: input, shape index: {}]
  %s8 = inlined_call_operand.hbm [shape: bf16[32,32], index: 8, kind: input, shape index: {}]
  %s9 = inlined_call_operand.hbm [shape: f32[1,32], index: 9, kind: input, shape index: {}]
  %s10 = inlined_call_operand.hbm [shape: f32[1,32], index: 10, kind: input, shape index: {}]
  %s11 = inlined_call_operand.hbm [shape: f32[1,32], index: 11, kind: input, shape index: {}]
  %s12 = inlined_call_operand.hbm [shape: bf16[32,64], index: 12, kind: input, shape index: {}]
  %s13 = inlined_call_operand.hbm [shape: f32[1,64], index: 13, kind: input, shape index: {}]
  %s14 = inlined_call_operand.vmem [shape: bf16[64,32], index: 14, kind: input, shape index: {}]
  %s15 = inlined_call_operand.hbm [shape: f32[1,32], index: 15, kind: input, shape index: {}]
  %s16 = inlined_call_operand.hbm [shape: f32[1,32], index: 16, kind: input, shape index: {}]
  %s17 = inlined_call_operand.hbm [shape: f32[1,32], index: 17, kind: input, shape index: {}]
  %s18 = inlined_call_operand.vmem [shape: bf16[2,8,32], index: 18, kind: output, shape index: {}]
  %s19 = sld [smem:[#allocation0]]
  $region165: #{transformer_forward.8} parent=0
    _
  %s21 = ssub.s32 1, %s19
  %s22 = scalar_select 0, %s21, %s19
  $region1: #{transformer_forward.8} parent=0
    #allocation2 [shape = 'u8[8192]{0}', space=vmem, size = 0x2000, scoped, tag = 'input window, operand 2, single buffered']
    #allocation3 [shape = 's32[2]{0}', space=sflag, size = 0x8, scoped, tag = 'scoped memory for transformer_forward.8']
    #allocation4 [shape = 'u8[512]{0}', space=vmem, size = 0x400, scoped, tag = 'input window, operand 3, single buffered']
    #allocation5 [shape = 's32[1]{0}', space=sflag, size = 0x4, scoped, tag = 'scoped memory for transformer_forward.8']
    #allocation6 [shape = 'u8[8192]{0}', space=vmem, size = 0x2000, scoped, tag = 'input window, operand 4, single buffered']
    #allocation7 [shape = 'u8[512]{0}', space=vmem, size = 0x400, scoped, tag = 'input window, operand 5, single buffered']
    #allocation8 [shape = 's32[1]{0}', space=sflag, size = 0x4, scoped, tag = 'scoped memory for transformer_forward.8']
    #allocation9 [shape = 'u8[8192]{0}', space=vmem, size = 0x2000, scoped, tag = 'input window, operand 6, single buffered']
    #allocation10 [shape = 'u8[512]{0}', space=vmem, size = 0x400, scoped, tag = 'input window, operand 7, single buffered']
    #allocation11 [shape = 's32[1]{0}', space=sflag, size = 0x4, scoped, tag = 'scoped memory for transformer_forward.8']
    #allocation12 [shape = 'u8[8192]{0}', space=vmem, size = 0x2000, scoped, tag = 'input window, operand 8, single buffered']
    #allocation13 [shape = 'u8[512]{0}', space=vmem, size = 0x400, scoped, tag = 'input window, operand 9, single buffered']
    #allocation14 [shape = 's32[1]{0}', space=sflag, size = 0x4, scoped, tag = 'scoped memory for transformer_forward.8']
    #allocation15 [shape = 'u8[512]{0}', space=vmem, size = 0x400, scoped, tag = 'input window, operand 10, single buffered']
    #allocation16 [shape = 'u8[512]{0}', space=vmem, size = 0x400, scoped, tag = 'input window, operand 11, single buffered']
    #allocation17 [shape = 's32[1]{0}', space=sflag, size = 0x4, scoped, tag = 'scoped memory for transformer_forward.8']
    #allocation18 [shape = 'u8[8192]{0}', space=vmem, size = 0x2000, scoped, tag = 'input window, operand 12, single buffered']
    #allocation19 [shape = 'u8[512]{0}', space=vmem, size = 0x400, scoped, tag = 'input window, operand 13, single buffered']
    #allocation20 [shape = 's32[1]{0}', space=sflag, size = 0x4, scoped, tag = 'scoped memory for transformer_forward.8']
    #allocation21 [shape = 'u8[512]{0}', space=vmem, size = 0x400, scoped, tag = 'input window, operand 15, single buffered']
    #allocation22 [shape = 'u8[512]{0}', space=vmem, size = 0x400, scoped, tag = 'input window, operand 16, single buffered']
    #allocation23 [shape = 's32[1]{0}', space=sflag, size = 0x4, scoped, tag = 'scoped memory for transformer_forward.8']
    #allocation24 [shape = 'u8[512]{0}', space=vmem, size = 0x400, scoped, tag = 'input window, operand 17, single buffered']
    %23 = vsyncpa [#allocation3], 0
    %24 = vsyncpa [#allocation5], 0
    %25 = vsyncpa [#allocation8], 0
    %26 = vsyncpa [#allocation11], 0
    %27 = vsyncpa [#allocation14], 0
    %28 = vsyncpa [#allocation17], 0
    %29 = vsyncpa [#allocation20], 0
    %30 = vsyncpa [#allocation23], 0
    loop: start=0, step=1, limit=4
    $region2: #{transformer_forward.8} parent=1 // loop_pre_header
      _
    $region3: #{transformer_forward.8} parent=1 // loop_header
      %s32 = sphi 0, %s36
      %p33 = scmp.ge.s32.totalorder %s32, 4
      %s39 = sphi 0, %s51
      %s40 = sphi 0, %s47
      %s41 = sphi 0, %s39
      %s42 = sphi 0, %s40
      %s43 = sphi 0, %s41
      %s44 = sphi 0, %s42
      %s56 = sphi 0, %s58
      %s59 = sphi 0, %s56
      %s60 = sphi 0, %s59
      %s76 = sphi 0, %s60
      %s82 = sphi 0, %s84
      %s85 = sphi 0, %s82
      %s86 = sphi 0, %s85
      %s102 = sphi 0, %s86
      %s106 = sphi 0, %s106
      %s108 = sphi 0, %s106
      %s109 = sphi 0, %s108
      %s123 = sphi 0, %s109
      %s127 = sphi 0, %s127
      %s129 = sphi 0, %s127
      %s130 = sphi 0, %s129
      %s144 = sphi 0, %s130
      %s148 = sphi 0, %s148
      %s150 = sphi 0, %s148
      %s151 = sphi 0, %s150
      %s165 = sphi 0, %s151
      %s169 = sphi 0, %s169
      %s171 = sphi 0, %s169
      %s172 = sphi 0, %s171
      %s186 = sphi 0, %s172
      %s190 = sphi 0, %s190
      %s192 = sphi 0, %s190
      %s193 = sphi 0, %s192
      %s207 = sphi 0, %s193
      %s211 = sphi 0, %s211
      %s213 = sphi 0, %s211
      %s214 = sphi 0, %s213
      %s228 = sphi 0, %s214
      %s232 = sphi 0, %s232
      %s234 = sphi 0, %s232
      %s235 = sphi 0, %s234
      %s249 = sphi 0, %s235
      %s253 = sphi 0, %s253
      %s255 = sphi 0, %s253
      %s256 = sphi 0, %s255
      %s270 = sphi 0, %s256
      %s274 = sphi 0, %s274
      %s276 = sphi 0, %s274
      %s277 = sphi 0, %s276
      %s291 = sphi 0, %s277
      %s295 = sphi 0, %s295
      %s297 = sphi 0, %s295
      %s298 = sphi 0, %s297
      %s312 = sphi 0, %s298
      %s316 = sphi 0, %s316
      %s318 = sphi 0, %s316
      %s319 = sphi 0, %s318
      %s333 = sphi 0, %s319
      %s337 = sphi 0, %s337
      %s339 = sphi 0, %s337
      %s340 = sphi 0, %s339
      %s354 = sphi 0, %s340
      %s358 = sphi 0, %s358
      %s360 = sphi 0, %s358
      %s361 = sphi 0, %s360
      %s375 = sphi 0, %s361
      %s379 = sphi 0, %s379
      %s381 = sphi 0, %s379
      %s382 = sphi 0, %s381
      %s396 = sphi 0, %s382
      %s400 = sphi 0, %s400
      %s402 = sphi 0, %s400
      %s403 = sphi 0, %s402
      %s417 = sphi 0, %s403
      %s421 = sphi 0, %s421
      %s423 = sphi 0, %s421
      %s424 = sphi 0, %s423
      %s438 = sphi 0, %s424
      %s446 = sphi 0, %s448
      %s449 = sphi 0, %s446
      %s450 = sphi 0, %s449
      %s466 = sphi 0, %s450
    $region4: #{transformer_forward.8} parent=1 // loop_header_branch
      %35 = sbr.rel (%p33) target = $region8
    $region5: #{transformer_forward.8} parent=1 // loop_body
      %s37 = ssub.s32 %s32, 1
      %s38 = ssub.s32 %s32, 2
      %s45 = sadd.s32 1, %s40
      %p46 = scmp.ge.s32.totalorder %s45, 1
      %s47 = scalar_select %p46, 0, %s45
      %s48 = sadd.s32 1, %s39
      %s49 = scalar_select %p46, %s48, %s39
      %p50 = scmp.ge.s32.totalorder %s49, 2
      %s51 = scalar_select %p50, 0, %s49
      %s52 = ssub.s32 %s39, %s51
      %s53 = ssub.s32 %s40, %s47
      %s54 = sor.u32 %s52, %s53
      %p55 = scmp.eq.s32.totalorder %s54, 0
      %s57 = sadd.s32 %s56, 1
      %s58 = scalar_select %p55, %s56, %s57
      %p61 = pneg %p55
      %p62 = scmp.eq.s32.totalorder %s32, 1
      %p63 = por %p61, %p62
      %p64 = scmp.ne.s32.totalorder %s56, %s59
      %p65 = scmp.eq.s32.totalorder %s32, 0
      %p66 = por %p64, %p65
      %p67 = scmp.ne.s32.totalorder %s56, %s59
      %p68 = scmp.eq.s32.totalorder %s37, 1
      %p69 = por %p67, %p68
      %p70 = scmp.ne.s32.totalorder %s59, %s60
      %p71 = scmp.eq.s32.totalorder %s37, 0
      %p72 = por %p70, %p71
      %p73 = scmp.ne.s32.totalorder %s59, %s60
      %p74 = scmp.eq.s32.totalorder %s38, 1
      %p75 = por %p73, %p74
      %p77 = scmp.ne.s32.totalorder %s60, %s76
      %p78 = scmp.eq.s32.totalorder %s38, 0
      %p79 = por %p77, %p78
      %s80 = ssub.s32 %s39, %s51
      %p81 = scmp.eq.s32.totalorder %s80, 0
      %s83 = sadd.s32 %s82, 1
      %s84 = scalar_select %p81, %s82, %s83
      %p87 = pneg %p81
      %p88 = scmp.eq.s32.totalorder %s32, 1
      %p89 = por %p87, %p88
      %p90 = scmp.ne.s32.totalorder %s82, %s85
      %p91 = scmp.eq.s32.totalorder %s32, 0
      %p92 = por %p90, %p91
      %p93 = scmp.ne.s32.totalorder %s82, %s85
      %p94 = scmp.eq.s32.totalorder %s37, 1
      %p95 = por %p93, %p94
      %p96 = scmp.ne.s32.totalorder %s85, %s86
      %p97 = scmp.eq.s32.totalorder %s37, 0
      %p98 = por %p96, %p97
      %p99 = scmp.ne.s32.totalorder %s85, %s86
      %p100 = scmp.eq.s32.totalorder %s38, 1
      %p101 = por %p99, %p100
      %p103 = scmp.ne.s32.totalorder %s86, %s102
      %p104 = scmp.eq.s32.totalorder %s38, 0
      %p105 = por %p103, %p104
      %s107 = sadd.s32 %s106, 1
      %p110 = scmp.eq.s32.totalorder %s32, 1
      %p111 = scmp.ne.s32.totalorder %s106, %s108
      %p112 = scmp.eq.s32.totalorder %s32, 0
      %p113 = por %p111, %p112
      %p114 = scmp.ne.s32.totalorder %s106, %s108
      %p115 = scmp.eq.s32.totalorder %s37, 1
      %p116 = por %p114, %p115
      %p117 = scmp.ne.s32.totalorder %s108, %s109
      %p118 = scmp.eq.s32.totalorder %s37, 0
      %p119 = por %p117, %p118
      %p120 = scmp.ne.s32.totalorder %s108, %s109
      %p121 = scmp.eq.s32.totalorder %s38, 1
      %p122 = por %p120, %p121
      %p124 = scmp.ne.s32.totalorder %s109, %s123
      %p125 = scmp.eq.s32.totalorder %s38, 0
      %p126 = por %p124, %p125
      %s128 = sadd.s32 %s127, 1
      %p131 = scmp.eq.s32.totalorder %s32, 1
      %p132 = scmp.ne.s32.totalorder %s127, %s129
      %p133 = scmp.eq.s32.totalorder %s32, 0
      %p134 = por %p132, %p133
      %p135 = scmp.ne.s32.totalorder %s127, %s129
      %p136 = scmp.eq.s32.totalorder %s37, 1
      %p137 = por %p135, %p136
      %p138 = scmp.ne.s32.totalorder %s129, %s130
      %p139 = scmp.eq.s32.totalorder %s37, 0
      %p140 = por %p138, %p139
      %p141 = scmp.ne.s32.totalorder %s129, %s130
      %p142 = scmp.eq.s32.totalorder %s38, 1
      %p143 = por %p141, %p142
      %p145 = scmp.ne.s32.totalorder %s130, %s144
      %p146 = scmp.eq.s32.totalorder %s38, 0
      %p147 = por %p145, %p146
      %s149 = sadd.s32 %s148, 1
      %p152 = scmp.eq.s32.totalorder %s32, 1
      %p153 = scmp.ne.s32.totalorder %s148, %s150
      %p154 = scmp.eq.s32.totalorder %s32, 0
      %p155 = por %p153, %p154
      %p156 = scmp.ne.s32.totalorder %s148, %s150
      %p157 = scmp.eq.s32.totalorder %s37, 1
      %p158 = por %p156, %p157
      %p159 = scmp.ne.s32.totalorder %s150, %s151
      %p160 = scmp.eq.s32.totalorder %s37, 0
      %p161 = por %p159, %p160
      %p162 = scmp.ne.s32.totalorder %s150, %s151
      %p163 = scmp.eq.s32.totalorder %s38, 1
      %p164 = por %p162, %p163
      %p166 = scmp.ne.s32.totalorder %s151, %s165
      %p167 = scmp.eq.s32.totalorder %s38, 0
      %p168 = por %p166, %p167
      %s170 = sadd.s32 %s169, 1
      %p173 = scmp.eq.s32.totalorder %s32, 1
      %p174 = scmp.ne.s32.totalorder %s169, %s171
      %p175 = scmp.eq.s32.totalorder %s32, 0
      %p176 = por %p174, %p175
      %p177 = scmp.ne.s32.totalorder %s169, %s171
      %p178 = scmp.eq.s32.totalorder %s37, 1
      %p179 = por %p177, %p178
      %p180 = scmp.ne.s32.totalorder %s171, %s172
      %p181 = scmp.eq.s32.totalorder %s37, 0
      %p182 = por %p180, %p181
      %p183 = scmp.ne.s32.totalorder %s171, %s172
      %p184 = scmp.eq.s32.totalorder %s38, 1
      %p185 = por %p183, %p184
      %p187 = scmp.ne.s32.totalorder %s172, %s186
      %p188 = scmp.eq.s32.totalorder %s38, 0
      %p189 = por %p187, %p188
      %s191 = sadd.s32 %s190, 1
      %p194 = scmp.eq.s32.totalorder %s32, 1
      %p195 = scmp.ne.s32.totalorder %s190, %s192
      %p196 = scmp.eq.s32.totalorder %s32, 0
      %p197 = por %p195, %p196
      %p198 = scmp.ne.s32.totalorder %s190, %s192
      %p199 = scmp.eq.s32.totalorder %s37, 1
      %p200 = por %p198, %p199
      %p201 = scmp.ne.s32.totalorder %s192, %s193
      %p202 = scmp.eq.s32.totalorder %s37, 0
      %p203 = por %p201, %p202
      %p204 = scmp.ne.s32.totalorder %s192, %s193
      %p205 = scmp.eq.s32.totalorder %s38, 1
      %p206 = por %p204, %p205
      %p208 = scmp.ne.s32.totalorder %s193, %s207
      %p209 = scmp.eq.s32.totalorder %s38, 0
      %p210 = por %p208, %p209
      %s212 = sadd.s32 %s211, 1
      %p215 = scmp.eq.s32.totalorder %s32, 1
      %p216 = scmp.ne.s32.totalorder %s211, %s213
      %p217 = scmp.eq.s32.totalorder %s32, 0
      %p218 = por %p216, %p217
      %p219 = scmp.ne.s32.totalorder %s211, %s213
      %p220 = scmp.eq.s32.totalorder %s37, 1
      %p221 = por %p219, %p220
      %p222 = scmp.ne.s32.totalorder %s213, %s214
      %p223 = scmp.eq.s32.totalorder %s37, 0
      %p224 = por %p222, %p223
      %p225 = scmp.ne.s32.totalorder %s213, %s214
      %p226 = scmp.eq.s32.totalorder %s38, 1
      %p227 = por %p225, %p226
      %p229 = scmp.ne.s32.totalorder %s214, %s228
      %p230 = scmp.eq.s32.totalorder %s38, 0
      %p231 = por %p229, %p230
      %s233 = sadd.s32 %s232, 1
      %p236 = scmp.eq.s32.totalorder %s32, 1
      %p237 = scmp.ne.s32.totalorder %s232, %s234
      %p238 = scmp.eq.s32.totalorder %s32, 0
      %p239 = por %p237, %p238
      %p240 = scmp.ne.s32.totalorder %s232, %s234
      %p241 = scmp.eq.s32.totalorder %s37, 1
      %p242 = por %p240, %p241
      %p243 = scmp.ne.s32.totalorder %s234, %s235
      %p244 = scmp.eq.s32.totalorder %s37, 0
      %p245 = por %p243, %p244
      %p246 = scmp.ne.s32.totalorder %s234, %s235
      %p247 = scmp.eq.s32.totalorder %s38, 1
      %p248 = por %p246, %p247
      %p250 = scmp.ne.s32.totalorder %s235, %s249
      %p251 = scmp.eq.s32.totalorder %s38, 0
      %p252 = por %p250, %p251
      %s254 = sadd.s32 %s253, 1
      %p257 = scmp.eq.s32.totalorder %s32, 1
      %p258 = scmp.ne.s32.totalorder %s253, %s255
      %p259 = scmp.eq.s32.totalorder %s32, 0
      %p260 = por %p258, %p259
      %p261 = scmp.ne.s32.totalorder %s253, %s255
      %p262 = scmp.eq.s32.totalorder %s37, 1
      %p263 = por %p261, %p262
      %p264 = scmp.ne.s32.totalorder %s255, %s256
      %p265 = scmp.eq.s32.totalorder %s37, 0
      %p266 = por %p264, %p265
      %p267 = scmp.ne.s32.totalorder %s255, %s256
      %p268 = scmp.eq.s32.totalorder %s38, 1
      %p269 = por %p267, %p268
      %p271 = scmp.ne.s32.totalorder %s256, %s270
      %p272 = scmp.eq.s32.totalorder %s38, 0
      %p273 = por %p271, %p272
      %s275 = sadd.s32 %s274, 1
      %p278 = scmp.eq.s32.totalorder %s32, 1
      %p279 = scmp.ne.s32.totalorder %s274, %s276
      %p280 = scmp.eq.s32.totalorder %s32, 0
      %p281 = por %p279, %p280
      %p282 = scmp.ne.s32.totalorder %s274, %s276
      %p283 = scmp.eq.s32.totalorder %s37, 1
      %p284 = por %p282, %p283
      %p285 = scmp.ne.s32.totalorder %s276, %s277
      %p286 = scmp.eq.s32.totalorder %s37, 0
      %p287 = por %p285, %p286
      %p288 = scmp.ne.s32.totalorder %s276, %s277
      %p289 = scmp.eq.s32.totalorder %s38, 1
      %p290 = por %p288, %p289
      %p292 = scmp.ne.s32.totalorder %s277, %s291
      %p293 = scmp.eq.s32.totalorder %s38, 0
      %p294 = por %p292, %p293
      %s296 = sadd.s32 %s295, 1
      %p299 = scmp.eq.s32.totalorder %s32, 1
      %p300 = scmp.ne.s32.totalorder %s295, %s297
      %p301 = scmp.eq.s32.totalorder %s32, 0
      %p302 = por %p300, %p301
      %p303 = scmp.ne.s32.totalorder %s295, %s297
      %p304 = scmp.eq.s32.totalorder %s37, 1
      %p305 = por %p303, %p304
      %p306 = scmp.ne.s32.totalorder %s297, %s298
      %p307 = scmp.eq.s32.totalorder %s37, 0
      %p308 = por %p306, %p307
      %p309 = scmp.ne.s32.totalorder %s297, %s298
      %p310 = scmp.eq.s32.totalorder %s38, 1
      %p311 = por %p309, %p310
      %p313 = scmp.ne.s32.totalorder %s298, %s312
      %p314 = scmp.eq.s32.totalorder %s38, 0
      %p315 = por %p313, %p314
      %s317 = sadd.s32 %s316, 1
      %p320 = scmp.eq.s32.totalorder %s32, 1
      %p321 = scmp.ne.s32.totalorder %s316, %s318
      %p322 = scmp.eq.s32.totalorder %s32, 0
      %p323 = por %p321, %p322
      %p324 = scmp.ne.s32.totalorder %s316, %s318
      %p325 = scmp.eq.s32.totalorder %s37, 1
      %p326 = por %p324, %p325
      %p327 = scmp.ne.s32.totalorder %s318, %s319
      %p328 = scmp.eq.s32.totalorder %s37, 0
      %p329 = por %p327, %p328
      %p330 = scmp.ne.s32.totalorder %s318, %s319
      %p331 = scmp.eq.s32.totalorder %s38, 1
      %p332 = por %p330, %p331
      %p334 = scmp.ne.s32.totalorder %s319, %s333
      %p335 = scmp.eq.s32.totalorder %s38, 0
      %p336 = por %p334, %p335
      %s338 = sadd.s32 %s337, 1
      %p341 = scmp.eq.s32.totalorder %s32, 1
      %p342 = scmp.ne.s32.totalorder %s337, %s339
      %p343 = scmp.eq.s32.totalorder %s32, 0
      %p344 = por %p342, %p343
      %p345 = scmp.ne.s32.totalorder %s337, %s339
      %p346 = scmp.eq.s32.totalorder %s37, 1
      %p347 = por %p345, %p346
      %p348 = scmp.ne.s32.totalorder %s339, %s340
      %p349 = scmp.eq.s32.totalorder %s37, 0
      %p350 = por %p348, %p349
      %p351 = scmp.ne.s32.totalorder %s339, %s340
      %p352 = scmp.eq.s32.totalorder %s38, 1
      %p353 = por %p351, %p352
      %p355 = scmp.ne.s32.totalorder %s340, %s354
      %p356 = scmp.eq.s32.totalorder %s38, 0
      %p357 = por %p355, %p356
      %s359 = sadd.s32 %s358, 1
      %p362 = scmp.eq.s32.totalorder %s32, 1
      %p363 = scmp.ne.s32.totalorder %s358, %s360
      %p364 = scmp.eq.s32.totalorder %s32, 0
      %p365 = por %p363, %p364
      %p366 = scmp.ne.s32.totalorder %s358, %s360
      %p367 = scmp.eq.s32.totalorder %s37, 1
      %p368 = por %p366, %p367
      %p369 = scmp.ne.s32.totalorder %s360, %s361
      %p370 = scmp.eq.s32.totalorder %s37, 0
      %p371 = por %p369, %p370
      %p372 = scmp.ne.s32.totalorder %s360, %s361
      %p373 = scmp.eq.s32.totalorder %s38, 1
      %p374 = por %p372, %p373
      %p376 = scmp.ne.s32.totalorder %s361, %s375
      %p377 = scmp.eq.s32.totalorder %s38, 0
      %p378 = por %p376, %p377
      %s380 = sadd.s32 %s379, 1
      %p383 = scmp.eq.s32.totalorder %s32, 1
      %p384 = scmp.ne.s32.totalorder %s379, %s381
      %p385 = scmp.eq.s32.totalorder %s32, 0
      %p386 = por %p384, %p385
      %p387 = scmp.ne.s32.totalorder %s379, %s381
      %p388 = scmp.eq.s32.totalorder %s37, 1
      %p389 = por %p387, %p388
      %p390 = scmp.ne.s32.totalorder %s381, %s382
      %p391 = scmp.eq.s32.totalorder %s37, 0
      %p392 = por %p390, %p391
      %p393 = scmp.ne.s32.totalorder %s381, %s382
      %p394 = scmp.eq.s32.totalorder %s38, 1
      %p395 = por %p393, %p394
      %p397 = scmp.ne.s32.totalorder %s382, %s396
      %p398 = scmp.eq.s32.totalorder %s38, 0
      %p399 = por %p397, %p398
      %s401 = sadd.s32 %s400, 1
      %p404 = scmp.eq.s32.totalorder %s32, 1
      %p405 = scmp.ne.s32.totalorder %s400, %s402
      %p406 = scmp.eq.s32.totalorder %s32, 0
      %p407 = por %p405, %p406
      %p408 = scmp.ne.s32.totalorder %s400, %s402
      %p409 = scmp.eq.s32.totalorder %s37, 1
      %p410 = por %p408, %p409
      %p411 = scmp.ne.s32.totalorder %s402, %s403
      %p412 = scmp.eq.s32.totalorder %s37, 0
      %p413 = por %p411, %p412
      %p414 = scmp.ne.s32.totalorder %s402, %s403
      %p415 = scmp.eq.s32.totalorder %s38, 1
      %p416 = por %p414, %p415
      %p418 = scmp.ne.s32.totalorder %s403, %s417
      %p419 = scmp.eq.s32.totalorder %s38, 0
      %p420 = por %p418, %p419
      %s422 = sadd.s32 %s421, 1
      %p425 = scmp.eq.s32.totalorder %s32, 1
      %p426 = scmp.ne.s32.totalorder %s421, %s423
      %p427 = scmp.eq.s32.totalorder %s32, 0
      %p428 = por %p426, %p427
      %p429 = scmp.ne.s32.totalorder %s421, %s423
      %p430 = scmp.eq.s32.totalorder %s37, 1
      %p431 = por %p429, %p430
      %p432 = scmp.ne.s32.totalorder %s423, %s424
      %p433 = scmp.eq.s32.totalorder %s37, 0
      %p434 = por %p432, %p433
      %p435 = scmp.ne.s32.totalorder %s423, %s424
      %p436 = scmp.eq.s32.totalorder %s38, 1
      %p437 = por %p435, %p436
      %p439 = scmp.ne.s32.totalorder %s424, %s438
      %p440 = scmp.eq.s32.totalorder %s38, 0
      %p441 = por %p439, %p440
      %s442 = ssub.s32 %s39, %s51
      %s443 = ssub.s32 %s40, %s47
      %s444 = sor.u32 %s442, %s443
      %p445 = scmp.eq.s32.totalorder %s444, 0
      %s447 = sadd.s32 %s446, 1
      %s448 = scalar_select %p445, %s446, %s447
      %p451 = pneg %p445
      %p452 = scmp.eq.s32.totalorder %s32, 1
      %p453 = por %p451, %p452
      %p454 = scmp.ne.s32.totalorder %s446, %s449
      %p455 = scmp.eq.s32.totalorder %s32, 0
      %p456 = por %p454, %p455
      %p457 = scmp.ne.s32.totalorder %s446, %s449
      %p458 = scmp.eq.s32.totalorder %s37, 1
      %p459 = por %p457, %p458
      %p460 = scmp.ne.s32.totalorder %s449, %s450
      %p461 = scmp.eq.s32.totalorder %s37, 0
      %p462 = por %p460, %p461
      %p463 = scmp.ne.s32.totalorder %s449, %s450
      %p464 = scmp.eq.s32.totalorder %s38, 1
      %p465 = por %p463, %p464
      %p467 = scmp.ne.s32.totalorder %s450, %s466
      %p468 = scmp.eq.s32.totalorder %s38, 0
      %p469 = por %p467, %p468
      %p470 = scmp.le.s32.totalorder 1, %s32
      %p471 = scmp.lt.s32.totalorder %s32, 3
      %p472 = pnand %p470, %p471
      %p473 = pneg %p472
      // Predicated region
      $region9: #{transformer_forward.8} parent=5 // pred_check
        _
      $region10: #{transformer_forward.8} parent=5 // pred_check_branch
        %475 = sbr.rel (%p472) target = $region12
      $region11: #{transformer_forward.8} parent=5 // pred_region
        %s476 = ssub.s32 %s32, 1
        // Predicated region
        $region13: #{transformer_forward.8} parent=11 // pred_check
          %p477 = pneg %p119
        $region14: #{transformer_forward.8} parent=11 // pred_check_branch
          %479 = sbr.rel (%p477) target = $region16
        $region15: #{transformer_forward.8} parent=11 // pred_region
          %481 = vsyncadd [#allocation3], 0
          %s482 = sshll.u32 %s2, 4
          %s483 = int_to_ptr.hbm [resolvable:$true] %s482
          %s484 = sshll.u32 [#allocation2], 4
          %s485 = int_to_ptr.vmem [resolvable:$true] %s484
          %490 = dma.hbm_to_vmem [thread:$0]  %s483, 256, %s485, [#allocation3], 64, 64, 4
        $region16: #{transformer_forward.8} parent=11 // pred_fallthru
          _
        // Predicated region
        $region17: #{transformer_forward.8} parent=11 // pred_check
          %p491 = pneg %p140
        $region18: #{transformer_forward.8} parent=11 // pred_check_branch
          %493 = sbr.rel (%p491) target = $region20
        $region19: #{transformer_forward.8} parent=11 // pred_region
          %495 = vsyncadd [#allocation5], 0
          %s497 = sshll.u32 %s3, 4
          %s498 = int_to_ptr.hbm [resolvable:$true] %s497
          %s499 = sshll.u32 [#allocation4], 4
          %s500 = int_to_ptr.vmem [resolvable:$true] %s499
          %502 = dma.hbm_to_vmem [thread:$0]  %s498, 16, %s500, [#allocation5]
        $region20: #{transformer_forward.8} parent=11 // pred_fallthru
          _
        // Predicated region
        $region21: #{transformer_forward.8} parent=11 // pred_check
          %p503 = pneg %p161
        $region22: #{transformer_forward.8} parent=11 // pred_check_branch
          %505 = sbr.rel (%p503) target = $region24
        $region23: #{transformer_forward.8} parent=11 // pred_region
          %507 = vsyncadd [#allocation5], 0
          %s508 = sshll.u32 %s4, 4
          %s509 = int_to_ptr.hbm [resolvable:$true] %s508
          %s510 = sshll.u32 [#allocation6], 4
          %s511 = int_to_ptr.vmem [resolvable:$true] %s510
          %516 = dma.hbm_to_vmem [thread:$0]  %s509, 256, %s511, [#allocation5], 64, 64, 4
        $region24: #{transformer_forward.8} parent=11 // pred_fallthru
          _
        // Predicated region
        $region25: #{transformer_forward.8} parent=11 // pred_check
          %p517 = pneg %p182
        $region26: #{transformer_forward.8} parent=11 // pred_check_branch
          %519 = sbr.rel (%p517) target = $region28
        $region27: #{transformer_forward.8} parent=11 // pred_region
          %521 = vsyncadd [#allocation8], 0
          %s523 = sshll.u32 %s5, 4
          %s524 = int_to_ptr.hbm [resolvable:$true] %s523
          %s525 = sshll.u32 [#allocation7], 4
          %s526 = int_to_ptr.vmem [resolvable:$true] %s525
          %528 = dma.hbm_to_vmem [thread:$0]  %s524, 16, %s526, [#allocation8]
        $region28: #{transformer_forward.8} parent=11 // pred_fallthru
          _
        // Predicated region
        $region29: #{transformer_forward.8} parent=11 // pred_check
          %p529 = pneg %p203
        $region30: #{transformer_forward.8} parent=11 // pred_check_branch
          %531 = sbr.rel (%p529) target = $region32
        $region31: #{transformer_forward.8} parent=11 // pred_region
          %533 = vsyncadd [#allocation8], 0
          %s534 = sshll.u32 %s6, 4
          %s535 = int_to_ptr.hbm [resolvable:$true] %s534
          %s536 = sshll.u32 [#allocation9], 4
          %s537 = int_to_ptr.vmem [resolvable:$true] %s536
          %542 = dma.hbm_to_vmem [thread:$0]  %s535, 256, %s537, [#allocation8], 64, 64, 4
        $region32: #{transformer_forward.8} parent=11 // pred_fallthru
          _
        // Predicated region
        $region33: #{transformer_forward.8} parent=11 // pred_check
          %p543 = pneg %p224
        $region34: #{transformer_forward.8} parent=11 // pred_check_branch
          %545 = sbr.rel (%p543) target = $region36
        $region35: #{transformer_forward.8} parent=11 // pred_region
          %547 = vsyncadd [#allocation11], 0
          %s549 = sshll.u32 %s7, 4
          %s550 = int_to_ptr.hbm [resolvable:$true] %s549
          %s551 = sshll.u32 [#allocation10], 4
          %s552 = int_to_ptr.vmem [resolvable:$true] %s551
          %554 = dma.hbm_to_vmem [thread:$0]  %s550, 16, %s552, [#allocation11]
        $region36: #{transformer_forward.8} parent=11 // pred_fallthru
          _
        // Predicated region
        $region37: #{transformer_forward.8} parent=11 // pred_check
          %p555 = pneg %p245
        $region38: #{transformer_forward.8} parent=11 // pred_check_branch
          %557 = sbr.rel (%p555) target = $region40
        $region39: #{transformer_forward.8} parent=11 // pred_region
          %559 = vsyncadd [#allocation11], 0
          %s560 = sshll.u32 %s8, 4
          %s561 = int_to_ptr.hbm [resolvable:$true] %s560
          %s562 = sshll.u32 [#allocation12], 4
          %s563 = int_to_ptr.vmem [resolvable:$true] %s562
          %568 = dma.hbm_to_vmem [thread:$0]  %s561, 256, %s563, [#allocation11], 64, 64, 4
        $region40: #{transformer_forward.8} parent=11 // pred_fallthru
          _
        // Predicated region
        $region41: #{transformer_forward.8} parent=11 // pred_check
          %p569 = pneg %p266
        $region42: #{transformer_forward.8} parent=11 // pred_check_branch
          %571 = sbr.rel (%p569) target = $region44
        $region43: #{transformer_forward.8} parent=11 // pred_region
          %573 = vsyncadd [#allocation14], 0
          %s575 = sshll.u32 %s9, 4
          %s576 = int_to_ptr.hbm [resolvable:$true] %s575
          %s577 = sshll.u32 [#allocation13], 4
          %s578 = int_to_ptr.vmem [resolvable:$true] %s577
          %580 = dma.hbm_to_vmem [thread:$0]  %s576, 16, %s578, [#allocation14]
        $region44: #{transformer_forward.8} parent=11 // pred_fallthru
          _
        // Predicated region
        $region45: #{transformer_forward.8} parent=11 // pred_check
          %p581 = pneg %p287
        $region46: #{transformer_forward.8} parent=11 // pred_check_branch
          %583 = sbr.rel (%p581) target = $region48
        $region47: #{transformer_forward.8} parent=11 // pred_region
          %585 = vsyncadd [#allocation14], 0
          %s587 = sshll.u32 %s10, 4
          %s588 = int_to_ptr.hbm [resolvable:$true] %s587
          %s589 = sshll.u32 [#allocation15], 4
          %s590 = int_to_ptr.vmem [resolvable:$true] %s589
          %592 = dma.hbm_to_vmem [thread:$0]  %s588, 16, %s590, [#allocation14]
        $region48: #{transformer_forward.8} parent=11 // pred_fallthru
          _
        // Predicated region
        $region49: #{transformer_forward.8} parent=11 // pred_check
          %p593 = pneg %p308
        $region50: #{transformer_forward.8} parent=11 // pred_check_branch
          %595 = sbr.rel (%p593) target = $region52
        $region51: #{transformer_forward.8} parent=11 // pred_region
          %597 = vsyncadd [#allocation17], 0
          %s599 = sshll.u32 %s11, 4
          %s600 = int_to_ptr.hbm [resolvable:$true] %s599
          %s601 = sshll.u32 [#allocation16], 4
          %s602 = int_to_ptr.vmem [resolvable:$true] %s601
          %604 = dma.hbm_to_vmem [thread:$0]  %s600, 16, %s602, [#allocation17]
        $region52: #{transformer_forward.8} parent=11 // pred_fallthru
          _
        // Predicated region
        $region53: #{transformer_forward.8} parent=11 // pred_check
          %p605 = pneg %p329
        $region54: #{transformer_forward.8} parent=11 // pred_check_branch
          %607 = sbr.rel (%p605) target = $region56
        $region55: #{transformer_forward.8} parent=11 // pred_region
          %609 = vsyncadd [#allocation17], 0
          %s610 = sshll.u32 %s12, 4
          %s611 = int_to_ptr.hbm [resolvable:$true] %s610
          %s612 = sshll.u32 [#allocation18], 4
          %s613 = int_to_ptr.vmem [resolvable:$true] %s612
          %618 = dma.hbm_to_vmem [thread:$0]  %s611, 256, %s613, [#allocation17], 64, 64, 4
        $region56: #{transformer_forward.8} parent=11 // pred_fallthru
          _
        // Predicated region
        $region57: #{transformer_forward.8} parent=11 // pred_check
          %p619 = pneg %p350
        $region58: #{transformer_forward.8} parent=11 // pred_check_branch
          %621 = sbr.rel (%p619) target = $region60
        $region59: #{transformer_forward.8} parent=11 // pred_region
          %623 = vsyncadd [#allocation20], 0
          %s625 = sshll.u32 %s13, 4
          %s626 = int_to_ptr.hbm [resolvable:$true] %s625
          %s627 = sshll.u32 [#allocation19], 4
          %s628 = int_to_ptr.vmem [resolvable:$true] %s627
          %630 = dma.hbm_to_vmem [thread:$0]  %s626, 16, %s628, [#allocation20]
        $region60: #{transformer_forward.8} parent=11 // pred_fallthru
          _
        // Predicated region
        $region61: #{transformer_forward.8} parent=11 // pred_check
          %p631 = pneg %p371
        $region62: #{transformer_forward.8} parent=11 // pred_check_branch
          %633 = sbr.rel (%p631) target = $region64
        $region63: #{transformer_forward.8} parent=11 // pred_region
          _
        $region64: #{transformer_forward.8} parent=11 // pred_fallthru
          _
        // Predicated region
        $region65: #{transformer_forward.8} parent=11 // pred_check
          %p634 = pneg %p392
        $region66: #{transformer_forward.8} parent=11 // pred_check_branch
          %636 = sbr.rel (%p634) target = $region68
        $region67: #{transformer_forward.8} parent=11 // pred_region
          %638 = vsyncadd [#allocation20], 0
          %s640 = sshll.u32 %s15, 4
          %s641 = int_to_ptr.hbm [resolvable:$true] %s640
          %s642 = sshll.u32 [#allocation21], 4
          %s643 = int_to_ptr.vmem [resolvable:$true] %s642
          %645 = dma.hbm_to_vmem [thread:$0]  %s641, 16, %s643, [#allocation20]
        $region68: #{transformer_forward.8} parent=11 // pred_fallthru
          _
        // Predicated region
        $region69: #{transformer_forward.8} parent=11 // pred_check
          %p646 = pneg %p413
        $region70: #{transformer_forward.8} parent=11 // pred_check_branch
          %648 = sbr.rel (%p646) target = $region72
        $region71: #{transformer_forward.8} parent=11 // pred_region
          %650 = vsyncadd [#allocation23], 0
          %s652 = sshll.u32 %s16, 4
          %s653 = int_to_ptr.hbm [resolvable:$true] %s652
          %s654 = sshll.u32 [#allocation22], 4
          %s655 = int_to_ptr.vmem [resolvable:$true] %s654
          %657 = dma.hbm_to_vmem [thread:$0]  %s653, 16, %s655, [#allocation23]
        $region72: #{transformer_forward.8} parent=11 // pred_fallthru
          _
        // Predicated region
        $region73: #{transformer_forward.8} parent=11 // pred_check
          %p658 = pneg %p434
        $region74: #{transformer_forward.8} parent=11 // pred_check_branch
          %660 = sbr.rel (%p658) target = $region76
        $region75: #{transformer_forward.8} parent=11 // pred_region
          %662 = vsyncadd [#allocation23], 0
          %s664 = sshll.u32 %s17, 4
          %s665 = int_to_ptr.hbm [resolvable:$true] %s664
          %s666 = sshll.u32 [#allocation24], 4
          %s667 = int_to_ptr.vmem [resolvable:$true] %s666
          %669 = dma.hbm_to_vmem [thread:$0]  %s665, 16, %s667, [#allocation23]
        $region76: #{transformer_forward.8} parent=11 // pred_fallthru
          _
      $region12: #{transformer_forward.8} parent=5 // pred_fallthru
        _
      %p670 = scmp.lt.s32.totalorder %s32, 2
      // Predicated region
      $region77: #{transformer_forward.8} parent=5 // pred_check
        %p671 = pneg %p670
      $region78: #{transformer_forward.8} parent=5 // pred_check_branch
        %673 = sbr.rel (%p671) target = $region80
      $region79: #{transformer_forward.8} parent=5 // pred_region
        // Predicated region
        $region81: #{transformer_forward.8} parent=79 // pred_check
          %p674 = pneg %p66
        $region82: #{transformer_forward.8} parent=79 // pred_check_branch
          %676 = sbr.rel (%p674) target = $region84
        $region83: #{transformer_forward.8} parent=79 // pred_region
          %p677 = scmp.lt.s32.totalorder %s39, 1
          %s678 = scalar_select %p677, %s39, 1
          %p679 = scmp.lt.s32.totalorder %s40, 0
          %s680 = scalar_select %p679, %s40, 0
          %s681 = sadd.s32 %s680, %s678
          %s682 = smul.addr %s681, 4
          %s683 = scalar_lea.vmem %s0, %s682
        $region84: #{transformer_forward.8} parent=79 // pred_fallthru
          _
        // Predicated region
        $region85: #{transformer_forward.8} parent=79 // pred_check
          %p684 = pneg %p92
        $region86: #{transformer_forward.8} parent=79 // pred_check_branch
          %686 = sbr.rel (%p684) target = $region88
        $region87: #{transformer_forward.8} parent=79 // pred_region
          %p687 = scmp.lt.s32.totalorder %s39, 1
          %s688 = scalar_select %p687, %s39, 1
          %s689 = smul.addr %s688, 4
          %s690 = scalar_lea.vmem %s1, %s689
        $region88: #{transformer_forward.8} parent=79 // pred_fallthru
          _
      $region80: #{transformer_forward.8} parent=5 // pred_fallthru
        _
      %p691 = scmp.le.s32.totalorder 1, %s32
      %p692 = scmp.lt.s32.totalorder %s32, 3
      %p693 = pnand %p691, %p692
      %p694 = pneg %p693
      // Predicated region
      $region89: #{transformer_forward.8} parent=5 // pred_check
        _
      $region90: #{transformer_forward.8} parent=5 // pred_check_branch
        %696 = sbr.rel (%p693) target = $region92
      $region91: #{transformer_forward.8} parent=5 // pred_region
        %s697 = ssub.s32 %s32, 1
        // Predicated region
        $region93: #{transformer_forward.8} parent=91 // pred_check
          %p698 = pneg %p119
        $region94: #{transformer_forward.8} parent=91 // pred_check_branch
          %700 = sbr.rel (%p698) target = $region96
        $region95: #{transformer_forward.8} parent=91 // pred_region
          %702 = dma.done [#allocation3], 256
        $region96: #{transformer_forward.8} parent=91 // pred_fallthru
          _
        // Predicated region
        $region97: #{transformer_forward.8} parent=91 // pred_check
          %p703 = pneg %p140
        $region98: #{transformer_forward.8} parent=91 // pred_check_branch
          %705 = sbr.rel (%p703) target = $region100
        $region99: #{transformer_forward.8} parent=91 // pred_region
          %707 = dma.done [#allocation5], 16
        $region100: #{transformer_forward.8} parent=91 // pred_fallthru
          _
        // Predicated region
        $region101: #{transformer_forward.8} parent=91 // pred_check
          %p708 = pneg %p161
        $region102: #{transformer_forward.8} parent=91 // pred_check_branch
          %710 = sbr.rel (%p708) target = $region104
        $region103: #{transformer_forward.8} parent=91 // pred_region
          %712 = dma.done [#allocation5], 256
        $region104: #{transformer_forward.8} parent=91 // pred_fallthru
          _
        // Predicated region
        $region105: #{transformer_forward.8} parent=91 // pred_check
          %p713 = pneg %p182
        $region106: #{transformer_forward.8} parent=91 // pred_check_branch
          %715 = sbr.rel (%p713) target = $region108
        $region107: #{transformer_forward.8} parent=91 // pred_region
          %717 = dma.done [#allocation8], 16
        $region108: #{transformer_forward.8} parent=91 // pred_fallthru
          _
        // Predicated region
        $region109: #{transformer_forward.8} parent=91 // pred_check
          %p718 = pneg %p203
        $region110: #{transformer_forward.8} parent=91 // pred_check_branch
          %720 = sbr.rel (%p718) target = $region112
        $region111: #{transformer_forward.8} parent=91 // pred_region
          %722 = dma.done [#allocation8], 256
        $region112: #{transformer_forward.8} parent=91 // pred_fallthru
          _
        // Predicated region
        $region113: #{transformer_forward.8} parent=91 // pred_check
          %p723 = pneg %p224
        $region114: #{transformer_forward.8} parent=91 // pred_check_branch
          %725 = sbr.rel (%p723) target = $region116
        $region115: #{transformer_forward.8} parent=91 // pred_region
          %727 = dma.done [#allocation11], 16
        $region116: #{transformer_forward.8} parent=91 // pred_fallthru
          _
        // Predicated region
        $region117: #{transformer_forward.8} parent=91 // pred_check
          %p728 = pneg %p245
        $region118: #{transformer_forward.8} parent=91 // pred_check_branch
          %730 = sbr.rel (%p728) target = $region120
        $region119: #{transformer_forward.8} parent=91 // pred_region
          %732 = dma.done [#allocation11], 256
        $region120: #{transformer_forward.8} parent=91 // pred_fallthru
          _
        // Predicated region
        $region121: #{transformer_forward.8} parent=91 // pred_check
          %p733 = pneg %p266
        $region122: #{transformer_forward.8} parent=91 // pred_check_branch
          %735 = sbr.rel (%p733) target = $region124
        $region123: #{transformer_forward.8} parent=91 // pred_region
          %737 = dma.done [#allocation14], 16
        $region124: #{transformer_forward.8} parent=91 // pred_fallthru
          _
        // Predicated region
        $region125: #{transformer_forward.8} parent=91 // pred_check
          %p738 = pneg %p287
        $region126: #{transformer_forward.8} parent=91 // pred_check_branch
          %740 = sbr.rel (%p738) target = $region128
        $region127: #{transformer_forward.8} parent=91 // pred_region
          %742 = dma.done [#allocation14], 16
        $region128: #{transformer_forward.8} parent=91 // pred_fallthru
          _
        // Predicated region
        $region129: #{transformer_forward.8} parent=91 // pred_check
          %p743 = pneg %p308
        $region130: #{transformer_forward.8} parent=91 // pred_check_branch
          %745 = sbr.rel (%p743) target = $region132
        $region131: #{transformer_forward.8} parent=91 // pred_region
          %747 = dma.done [#allocation17], 16
        $region132: #{transformer_forward.8} parent=91 // pred_fallthru
          _
        // Predicated region
        $region133: #{transformer_forward.8} parent=91 // pred_check
          %p748 = pneg %p329
        $region134: #{transformer_forward.8} parent=91 // pred_check_branch
          %750 = sbr.rel (%p748) target = $region136
        $region135: #{transformer_forward.8} parent=91 // pred_region
          %752 = dma.done [#allocation17], 256
        $region136: #{transformer_forward.8} parent=91 // pred_fallthru
          _
        // Predicated region
        $region137: #{transformer_forward.8} parent=91 // pred_check
          %p753 = pneg %p350
        $region138: #{transformer_forward.8} parent=91 // pred_check_branch
          %755 = sbr.rel (%p753) target = $region140
        $region139: #{transformer_forward.8} parent=91 // pred_region
          %757 = dma.done [#allocation20], 16
        $region140: #{transformer_forward.8} parent=91 // pred_fallthru
          _
        // Predicated region
        $region141: #{transformer_forward.8} parent=91 // pred_check
          %p758 = pneg %p392
        $region142: #{transformer_forward.8} parent=91 // pred_check_branch
          %760 = sbr.rel (%p758) target = $region144
        $region143: #{transformer_forward.8} parent=91 // pred_region
          %762 = dma.done [#allocation20], 16
        $region144: #{transformer_forward.8} parent=91 // pred_fallthru
          _
        // Predicated region
        $region145: #{transformer_forward.8} parent=91 // pred_check
          %p763 = pneg %p413
        $region146: #{transformer_forward.8} parent=91 // pred_check_branch
          %765 = sbr.rel (%p763) target = $region148
        $region147: #{transformer_forward.8} parent=91 // pred_region
          %767 = dma.done [#allocation23], 16
        $region148: #{transformer_forward.8} parent=91 // pred_fallthru
          _
        // Predicated region
        $region149: #{transformer_forward.8} parent=91 // pred_check
          %p768 = pneg %p434
        $region150: #{transformer_forward.8} parent=91 // pred_check_branch
          %770 = sbr.rel (%p768) target = $region152
        $region151: #{transformer_forward.8} parent=91 // pred_region
          %772 = dma.done [#allocation23], 16
        $region152: #{transformer_forward.8} parent=91 // pred_fallthru
          _
        %p773 = scmp.lt.s32.totalorder %s41, 1
        %s774 = scalar_select %p773, %s41, 1
        %p775 = scmp.lt.s32.totalorder %s42, 0
        %s776 = scalar_select %p775, %s42, 0
        %s777 = sadd.s32 %s776, %s774
        %s778 = smul.addr %s777, 4
        %s779 = scalar_lea.vmem %s0, %s778
        %p780 = pneg %p72
        %p781 = pneg %p69
        %p782 = scmp.lt.s32.totalorder %s41, 1
        %s783 = scalar_select %p782, %s41, 1
        %s784 = smul.addr %s783, 4
        %s785 = scalar_lea.vmem %s1, %s784
        %p786 = pneg %p98
        %p787 = pneg %p95
        %p788 = pneg %p119
        %p789 = pneg %p116
        %p790 = pneg %p140
        %p791 = pneg %p137
        %p792 = pneg %p161
        %p793 = pneg %p158
        %p794 = pneg %p182
        %p795 = pneg %p179
        %p796 = pneg %p203
        %p797 = pneg %p200
        %p798 = pneg %p224
        %p799 = pneg %p221
        %p800 = pneg %p245
        %p801 = pneg %p242
        %p802 = pneg %p266
        %p803 = pneg %p263
        %p804 = pneg %p287
        %p805 = pneg %p284
        %p806 = pneg %p308
        %p807 = pneg %p305
        %p808 = pneg %p329
        %p809 = pneg %p326
        %p810 = pneg %p350
        %p811 = pneg %p347
        %p812 = pneg %p371
        %p813 = pneg %p368
        %p814 = pneg %p392
        %p815 = pneg %p389
        %p816 = pneg %p413
        %p817 = pneg %p410
        %p818 = pneg %p434
        %p819 = pneg %p431
        %p820 = pneg %p462
        %p821 = pneg %p459
        %p822 = scmp.lt.s32.totalorder %s41, 1
        %s823 = scalar_select %p822, %s41, 1
        %p824 = scmp.lt.s32.totalorder %s42, 0
        %s825 = scalar_select %p824, %s42, 0
        %s826 = sadd.s32 %s825, %s823
        %s827 = smul.addr %s826, 4
        %s828 = scalar_lea.vmem %s18, %s827
        %p829 = scmp.lt.s32.totalorder %s41, 1
        %s830 = scalar_select %p829, %s41, 1
        %p831 = scmp.lt.s32.totalorder %s42, 0
        %s832 = scalar_select %p831, %s42, 0
        %s833 = sadd.s32 %s832, %s830
        %s834 = smul.addr %s833, 4
        %s835 = scalar_lea.vmem %s0, %s834
        %p836 = scmp.lt.s32.totalorder %s41, 1
        %s837 = scalar_select %p836, %s41, 1
        %s838 = smul.addr %s837, 4
        %s839 = scalar_lea.vmem %s1, %s838
        %p840 = scmp.lt.s32.totalorder %s41, 1
        %s841 = scalar_select %p840, %s41, 1
        %p842 = scmp.lt.s32.totalorder %s42, 0
        %s843 = scalar_select %p842, %s42, 0
        %s844 = sadd.s32 %s843, %s841
        %s845 = smul.addr %s844, 4
        %s846 = scalar_lea.vmem %s18, %s845
        %v848 = vld [vmem:[%s835] sm:$0xf]
        %v849 = vld [vmem:[%s839] sm:$0xf]
        %v850 = vld [vmem:[#allocation2] sm:$0xf]
        %v851 = vld [vmem:[#allocation2 + $0x4] sm:$0xf]
        %v852 = vld [vmem:[#allocation2 + $0x8] sm:$0xf]
        %v853 = vld [vmem:[#allocation2 + $0xc] sm:$0xf]
        %v854 = vld [vmem:[#allocation4] sm:$0x1]
        %v856 = vperm.slane %v854, 0
        %v862 = vunpack.c.l.b16 %v850
        %v863 = vunpack.c.l.b16 %v851
        %v864 = vunpack.c.l.b16 %v852
        %v865 = vunpack.c.l.b16 %v853
        %v866 = vpack.c.b16 %v863, %v862
        %v867 = vpack.c.b16 %v865, %v864
        %vm870 = vcmask 261120
        %v872 = vsel %vm870, %v848, 0
        %874 = vmatpush.bf16.msra.mxu0 0
        %875 = vmatpush.bf16.msra.mxu0 0
        %876 = vmatpush.bf16.msra.mxu0 0
        %877 = vmatpush.bf16.msra.mxu0 0
        %878 = vmatpush.bf16.msra.mxu0 0
        %879 = vmatpush.bf16.msra.mxu0 0
        %880 = vmatpush.bf16.msra.mxu0 %v867
        %881 = vmatpush.bf16.msra.mxu0 %v866
        %882 = vmatmul.bf16.gmra.mxu0 %v872
        %v883 = vpop.f32.mrf.mxu0
        %v884 = vadd.f32 %v856, %v883
        %v885 = vpop.f32.mrf.mxu0
        %886 = vdwg.mxu0
        %v887 = vld [vmem:[#allocation6] sm:$0xf]
        %v888 = vld [vmem:[#allocation6 + $0x4] sm:$0xf]
        %v889 = vld [vmem:[#allocation6 + $0x8] sm:$0xf]
        %v890 = vld [vmem:[#allocation6 + $0xc] sm:$0xf]
        %v891 = vld [vmem:[#allocation7] sm:$0x1]
        %v893 = vperm.slane %v891, 0
        %v899 = vunpack.c.l.b16 %v887
        %v900 = vunpack.c.l.b16 %v888
        %v901 = vunpack.c.l.b16 %v889
        %v902 = vunpack.c.l.b16 %v890
        %v903 = vpack.c.b16 %v900, %v899
        %v904 = vpack.c.b16 %v902, %v901
        %v908 = vsel %vm870, %v849, 0
        %910 = vmatpush.bf16.msra.mxu0 0
        %911 = vmatpush.bf16.msra.mxu0 0
        %912 = vmatpush.bf16.msra.mxu0 0
        %913 = vmatpush.bf16.msra.mxu0 0
        %914 = vmatpush.bf16.msra.mxu0 0
        %915 = vmatpush.bf16.msra.mxu0 0
        %916 = vmatpush.bf16.msra.mxu0 %v904
        %917 = vmatpush.bf16.msra.mxu0 %v903
        %918 = vmatmul.bf16.gmra.mxu0 %v908
        %v919 = vpop.f32.mrf.mxu0
        %v920 = vadd.f32 %v893, %v919
        %v921 = vpop.f32.mrf.mxu0
        %922 = vdwg.mxu0
        %v923 = vld [vmem:[#allocation9] sm:$0xf]
        %v924 = vld [vmem:[#allocation9 + $0x4] sm:$0xf]
        %v925 = vld [vmem:[#allocation9 + $0x8] sm:$0xf]
        %v926 = vld [vmem:[#allocation9 + $0xc] sm:$0xf]
        %v927 = vld [vmem:[#allocation10] sm:$0x1]
        %v929 = vperm.slane %v927, 0
        %v935 = vunpack.c.l.b16 %v923
        %v936 = vunpack.c.l.b16 %v924
        %v937 = vunpack.c.l.b16 %v925
        %v938 = vunpack.c.l.b16 %v926
        %v939 = vpack.c.b16 %v936, %v935
        %v940 = vpack.c.b16 %v938, %v937
        %943 = vmatpush.bf16.msra.mxu0 0
        %944 = vmatpush.bf16.msra.mxu0 0
        %945 = vmatpush.bf16.msra.mxu0 0
        %946 = vmatpush.bf16.msra.mxu0 0
        %947 = vmatpush.bf16.msra.mxu0 0
        %948 = vmatpush.bf16.msra.mxu0 0
        %949 = vmatpush.bf16.msra.mxu0 %v940
        %950 = vmatpush.bf16.msra.mxu0 %v939
        %951 = vmatmul.bf16.gmra.mxu0 %v908
        %v952 = vpop.f32.mrf.mxu0
        %v953 = vadd.f32 %v929, %v952
        %v954 = vpop.f32.mrf.mxu0
        %955 = vdwg.mxu0
        %v956 = vpack.c.bf16 %v884, %v884
        %v957 = vpack.c.bf16 %v920, %v920
        %v958 = vpack.c.bf16 %v953, %v953
        %vm959 = vcmask 64512
        %v961 = vsel %vm959, %v956, 0
        %v964 = vsel %vm959, %v957, 0
        %966 = vmatpush.bf16.xpose.msra.mxu0 0
        %967 = vmatpush.bf16.xpose.msra.mxu0 0
        %968 = vmatpush.bf16.xpose.msra.mxu0 0
        %969 = vmatpush.bf16.xpose.msra.mxu0 0
        %970 = vmatpush.bf16.xpose.msra.mxu0 0
        %971 = vmatpush.bf16.xpose.msra.mxu0 0
        %972 = vmatpush.bf16.xpose.msra.mxu0 0
        %973 = vmatpush.bf16.xpose.msra.mxu0 %v964
        %974 = vmatmul.bf16.gmra.mxu0 %v961
        %v975 = vpop.f32.mrf.mxu0
        %v976 = vadd.f32 0.0, %v975
        %v977 = vpop.f32.mrf.mxu0
        %978 = vdwg.mxu0
        %v979 = vsel %vm959, %v976, -inf
        %980 = vmax.xlane.f32.xlu0 %v979
        %v981 = vpop.xlane.xlu0 %980
        %v982 = vsub.f32 %v976, %v981
        %v983 = vmul.f32 %v982, 1.442695
        %v984 = vpow.pop %v983
        %v985 = vsel %vm959, %v984, 0.0
        %986 = vadd.xlane.f32.xlu0 %v985
        %v987 = vpop.xlane.xlu0 %986
        %v988 = vpack.c.bf16 %v984, %v984
        %v990 = vsel %vm959, %v988, 0
        %vm992 = vcmask 1043456
        %v994 = vsel %vm992, %v958, 0
        %996 = vmatpush.bf16.msra.mxu0 0
        %997 = vmatpush.bf16.msra.mxu0 0
        %998 = vmatpush.bf16.msra.mxu0 0
        %999 = vmatpush.bf16.msra.mxu0 0
        %1000 = vmatpush.bf16.msra.mxu0 0
        %1001 = vmatpush.bf16.msra.mxu0 0
        %1002 = vmatpush.bf16.msra.mxu0 0
        %1003 = vmatpush.bf16.msra.mxu0 %v994
        %1004 = vmatmul.bf16.gmra.mxu0 %v990
        %v1005 = vpop.f32.mrf.mxu0
        %v1006 = vadd.f32 0.0, %v1005
        %v1007 = vpop.f32.mrf.mxu0
        %1008 = vdwg.mxu0
        %v1009 = vrcp.pop %v987
        %v1010 = vmul.f32 %v987, %v1009
        %v1011 = vsub.f32 1.0, %v1010
        %v1012 = vmul.f32 %v1009, %v1011
        %v1013 = vadd.f32 %v1009, %v1012
        %vm1014 = vweird.f32 %v987
        %vm1015 = vweird.f32 %v1009
        %vm1016 = vmor %vm1014, %vm1015
        %v1017 = vsel %vm1016, %v1009, %v1013
        %v1018 = vand.u32 2147483647, %v987
        %vm1019 = vcmp.eq.f32.partialorder %v1018, 8.507059e+37
        %v1020 = vand.u32 %v987, 2147483648
        %v1021 = vor.u32 1.1754944e-38, %v1020
        %v1022 = vsel %vm1019, %v1021, %v1017
        %v1023 = vmul.f32 %v1006, %v1022
        %v1025 = vunpack.c.l.b16 %v956
        %v1026 = vpack.c.b16 %v1025, %v1025
        %1027 = vrot.lane.b32.xlu0 %v1026, 120
        %v1028 = vpop.permute.xlu0 %1027
        %v1030 = vunpack.c.l.b16 %v957
        %v1031 = vpack.c.b16 %v1030, %v1030
        %1032 = vrot.lane.b32.xlu0 %v1031, 120
        %v1033 = vpop.permute.xlu0 %1032
        %v1035 = vsel %vm959, %v1028, 0
        %v1038 = vsel %vm959, %v1033, 0
        %1040 = vmatpush.bf16.xpose.msra.mxu0 0
        %1041 = vmatpush.bf16.xpose.msra.mxu0 0
        %1042 = vmatpush.bf16.xpose.msra.mxu0 0
        %1043 = vmatpush.bf16.xpose.msra.mxu0 0
        %1044 = vmatpush.bf16.xpose.msra.mxu0 0
        %1045 = vmatpush.bf16.xpose.msra.mxu0 0
        %1046 = vmatpush.bf16.xpose.msra.mxu0 0
        %1047 = vmatpush.bf16.xpose.msra.mxu0 %v1038
        %1048 = vmatmul.bf16.gmra.mxu0 %v1035
        %v1049 = vpop.f32.mrf.mxu0
        %v1050 = vadd.f32 0.0, %v1049
        %v1051 = vpop.f32.mrf.mxu0
        %1052 = vdwg.mxu0
        %v1053 = vsel %vm959, %v1050, -inf
        %1054 = vmax.xlane.f32.xlu0 %v1053
        %v1055 = vpop.xlane.xlu0 %1054
        %v1056 = vsub.f32 %v1050, %v1055
        %v1057 = vmul.f32 %v1056, 1.442695
        %v1058 = vpow.pop %v1057
        %v1059 = vsel %vm959, %v1058, 0.0
        %1060 = vadd.xlane.f32.xlu0 %v1059
        %v1061 = vpop.xlane.xlu0 %1060
        %v1062 = vpack.c.bf16 %v1058, %v1058
        %v1064 = vunpack.c.l.b16 %v958
        %v1065 = vpack.c.b16 %v1064, %v1064
        %1066 = vrot.lane.b32.xlu0 %v1065, 120
        %v1067 = vpop.permute.xlu0 %1066
        %v1069 = vsel %vm959, %v1062, 0
        %v1072 = vsel %vm992, %v1067, 0
        %1074 = vmatpush.bf16.msra.mxu0 0
        %1075 = vmatpush.bf16.msra.mxu0 0
        %1076 = vmatpush.bf16.msra.mxu0 0
        %1077 = vmatpush.bf16.msra.mxu0 0
        %1078 = vmatpush.bf16.msra.mxu0 0
        %1079 = vmatpush.bf16.msra.mxu0 0
        %1080 = vmatpush.bf16.msra.mxu0 0
        %1081 = vmatpush.bf16.msra.mxu0 %v1072
        %1082 = vmatmul.bf16.gmra.mxu0 %v1069
        %v1083 = vpop.f32.mrf.mxu0
        %v1084 = vadd.f32 0.0, %v1083
        %v1085 = vpop.f32.mrf.mxu0
        %1086 = vdwg.mxu0
        %v1087 = vrcp.pop %v1061
        %v1088 = vmul.f32 %v1061, %v1087
        %v1089 = vsub.f32 1.0, %v1088
        %v1090 = vmul.f32 %v1087, %v1089
        %v1091 = vadd.f32 %v1087, %v1090
        %vm1092 = vweird.f32 %v1061
        %vm1093 = vweird.f32 %v1087
        %vm1094 = vmor %vm1092, %vm1093
        %v1095 = vsel %vm1094, %v1087, %v1091
        %v1096 = vand.u32 2147483647, %v1061
        %vm1097 = vcmp.eq.f32.partialorder %v1096, 8.507059e+37
        %v1098 = vand.u32 %v1061, 2147483648
        %v1099 = vor.u32 1.1754944e-38, %v1098
        %v1100 = vsel %vm1097, %v1099, %v1095
        %v1101 = vmul.f32 %v1084, %v1100
        %1102 = vrot.lane.b32.xlu0 %v1026, 112
        %v1103 = vpop.permute.xlu0 %1102
        %1104 = vrot.lane.b32.xlu0 %v1031, 112
        %v1105 = vpop.permute.xlu0 %1104
        %v1107 = vsel %vm959, %v1103, 0
        %v1110 = vsel %vm959, %v1105, 0
        %1112 = vmatpush.bf16.xpose.msra.mxu0 0
        %1113 = vmatpush.bf16.xpose.msra.mxu0 0
        %1114 = vmatpush.bf16.xpose.msra.mxu0 0
        %1115 = vmatpush.bf16.xpose.msra.mxu0 0
        %1116 = vmatpush.bf16.xpose.msra.mxu0 0
        %1117 = vmatpush.bf16.xpose.msra.mxu0 0
        %1118 = vmatpush.bf16.xpose.msra.mxu0 0
        %1119 = vmatpush.bf16.xpose.msra.mxu0 %v1110
        %1120 = vmatmul.bf16.gmra.mxu0 %v1107
        %v1121 = vpop.f32.mrf.mxu0
        %v1122 = vadd.f32 0.0, %v1121
        %v1123 = vpop.f32.mrf.mxu0
        %1124 = vdwg.mxu0
        %v1125 = vsel %vm959, %v1122, -inf
        %1126 = vmax.xlane.f32.xlu0 %v1125
        %v1127 = vpop.xlane.xlu0 %1126
        %v1128 = vsub.f32 %v1122, %v1127
        %v1129 = vmul.f32 %v1128, 1.442695
        %v1130 = vpow.pop %v1129
        %v1131 = vsel %vm959, %v1130, 0.0
        %1132 = vadd.xlane.f32.xlu0 %v1131
        %v1133 = vpop.xlane.xlu0 %1132
        %v1134 = vpack.c.bf16 %v1130, %v1130
        %1135 = vrot.lane.b32.xlu0 %v1065, 112
        %v1136 = vpop.permute.xlu0 %1135
        %v1138 = vsel %vm959, %v1134, 0
        %v1141 = vsel %vm992, %v1136, 0
        %1143 = vmatpush.bf16.msra.mxu0 0
        %1144 = vmatpush.bf16.msra.mxu0 0
        %1145 = vmatpush.bf16.msra.mxu0 0
        %1146 = vmatpush.bf16.msra.mxu0 0
        %1147 = vmatpush.bf16.msra.mxu0 0
        %1148 = vmatpush.bf16.msra.mxu0 0
        %1149 = vmatpush.bf16.msra.mxu0 0
        %1150 = vmatpush.bf16.msra.mxu0 %v1141
        %1151 = vmatmul.bf16.gmra.mxu0 %v1138
        %v1152 = vpop.f32.mrf.mxu0
        %v1153 = vadd.f32 0.0, %v1152
        %v1154 = vpop.f32.mrf.mxu0
        %1155 = vdwg.mxu0
        %v1156 = vrcp.pop %v1133
        %v1157 = vmul.f32 %v1133, %v1156
        %v1158 = vsub.f32 1.0, %v1157
        %v1159 = vmul.f32 %v1156, %v1158
        %v1160 = vadd.f32 %v1156, %v1159
        %vm1161 = vweird.f32 %v1133
        %vm1162 = vweird.f32 %v1156
        %vm1163 = vmor %vm1161, %vm1162
        %v1164 = vsel %vm1163, %v1156, %v1160
        %v1165 = vand.u32 2147483647, %v1133
        %vm1166 = vcmp.eq.f32.partialorder %v1165, 8.507059e+37
        %v1167 = vand.u32 %v1133, 2147483648
        %v1168 = vor.u32 1.1754944e-38, %v1167
        %v1169 = vsel %vm1166, %v1168, %v1164
        %v1170 = vmul.f32 %v1153, %v1169
        %1171 = vrot.lane.b32.xlu0 %v1026, 104
        %v1172 = vpop.permute.xlu0 %1171
        %1173 = vrot.lane.b32.xlu0 %v1031, 104
        %v1174 = vpop.permute.xlu0 %1173
        %v1176 = vsel %vm959, %v1172, 0
        %v1179 = vsel %vm959, %v1174, 0
        %1181 = vmatpush.bf16.xpose.msra.mxu0 0
        %1182 = vmatpush.bf16.xpose.msra.mxu0 0
        %1183 = vmatpush.bf16.xpose.msra.mxu0 0
        %1184 = vmatpush.bf16.xpose.msra.mxu0 0
        %1185 = vmatpush.bf16.xpose.msra.mxu0 0
        %1186 = vmatpush.bf16.xpose.msra.mxu0 0
        %1187 = vmatpush.bf16.xpose.msra.mxu0 0
        %1188 = vmatpush.bf16.xpose.msra.mxu0 %v1179
        %1189 = vmatmul.bf16.gmra.mxu0 %v1176
        %v1190 = vpop.f32.mrf.mxu0
        %v1191 = vadd.f32 0.0, %v1190
        %v1192 = vpop.f32.mrf.mxu0
        %1193 = vdwg.mxu0
        %v1194 = vsel %vm959, %v1191, -inf
        %1195 = vmax.xlane.f32.xlu0 %v1194
        %v1196 = vpop.xlane.xlu0 %1195
        %v1197 = vsub.f32 %v1191, %v1196
        %v1198 = vmul.f32 %v1197, 1.442695
        %v1199 = vpow.pop %v1198
        %v1200 = vsel %vm959, %v1199, 0.0
        %1201 = vadd.xlane.f32.xlu0 %v1200
        %v1202 = vpop.xlane.xlu0 %1201
        %v1203 = vpack.c.bf16 %v1199, %v1199
        %1204 = vrot.lane.b32.xlu0 %v1065, 104
        %v1205 = vpop.permute.xlu0 %1204
        %v1207 = vsel %vm959, %v1203, 0
        %v1210 = vsel %vm992, %v1205, 0
        %1212 = vmatpush.bf16.msra.mxu0 0
        %1213 = vmatpush.bf16.msra.mxu0 0
        %1214 = vmatpush.bf16.msra.mxu0 0
        %1215 = vmatpush.bf16.msra.mxu0 0
        %1216 = vmatpush.bf16.msra.mxu0 0
        %1217 = vmatpush.bf16.msra.mxu0 0
        %1218 = vmatpush.bf16.msra.mxu0 0
        %1219 = vmatpush.bf16.msra.mxu0 %v1210
        %1220 = vmatmul.bf16.gmra.mxu0 %v1207
        %v1221 = vpop.f32.mrf.mxu0
        %v1222 = vadd.f32 0.0, %v1221
        %v1223 = vpop.f32.mrf.mxu0
        %1224 = vdwg.mxu0
        %v1225 = vrcp.pop %v1202
        %v1226 = vmul.f32 %v1202, %v1225
        %v1227 = vsub.f32 1.0, %v1226
        %v1228 = vmul.f32 %v1225, %v1227
        %v1229 = vadd.f32 %v1225, %v1228
        %vm1230 = vweird.f32 %v1202
        %vm1231 = vweird.f32 %v1225
        %vm1232 = vmor %vm1230, %vm1231
        %v1233 = vsel %vm1232, %v1225, %v1229
        %v1234 = vand.u32 2147483647, %v1202
        %vm1235 = vcmp.eq.f32.partialorder %v1234, 8.507059e+37
        %v1236 = vand.u32 %v1202, 2147483648
        %v1237 = vor.u32 1.1754944e-38, %v1236
        %v1238 = vsel %vm1235, %v1237, %v1233
        %v1239 = vmul.f32 %v1222, %v1238
        %1241 = vrot.lane.b32.xlu0 %v1101, 8
        %v1242 = vpop.permute.xlu0 %1241
        %1245 = vrot.lane.b32.xlu0 %v1170, 16
        %v1246 = vpop.permute.xlu0 %1245
        %1249 = vrot.lane.b32.xlu0 %v1239, 24
        %v1250 = vpop.permute.xlu0 %1249
        %v1252 = vsel %vm959, %v1023, %v1242
        %vm1253 = vcmask 130048
        %v1254 = vsel %vm1253, %v1252, %v1246
        %vm1255 = vcmask 195584
        %v1256 = vsel %vm1255, %v1254, %v1250
        %v1257 = vpack.c.bf16 %v1256, %v1256
        %v1258 = vld [vmem:[#allocation12] sm:$0xf]
        %v1259 = vld [vmem:[#allocation12 + $0x4] sm:$0xf]
        %v1260 = vld [vmem:[#allocation12 + $0x8] sm:$0xf]
        %v1261 = vld [vmem:[#allocation12 + $0xc] sm:$0xf]
        %v1262 = vld [vmem:[#allocation13] sm:$0x1]
        %v1264 = vperm.slane %v1262, 0
        %v1270 = vunpack.c.l.b16 %v1258
        %v1271 = vunpack.c.l.b16 %v1259
        %v1272 = vunpack.c.l.b16 %v1260
        %v1273 = vunpack.c.l.b16 %v1261
        %v1274 = vpack.c.b16 %v1271, %v1270
        %v1275 = vpack.c.b16 %v1273, %v1272
        %v1279 = vsel %vm870, %v1257, 0
        %1281 = vmatpush.bf16.msra.mxu0 0
        %1282 = vmatpush.bf16.msra.mxu0 0
        %1283 = vmatpush.bf16.msra.mxu0 0
        %1284 = vmatpush.bf16.msra.mxu0 0
        %1285 = vmatpush.bf16.msra.mxu0 0
        %1286 = vmatpush.bf16.msra.mxu0 0
        %1287 = vmatpush.bf16.msra.mxu0 %v1275
        %1288 = vmatpush.bf16.msra.mxu0 %v1274
        %1289 = vmatmul.bf16.gmra.mxu0 %v1279
        %v1290 = vpop.f32.mrf.mxu0
        %v1291 = vadd.f32 %v1264, %v1290
        %v1292 = vpop.f32.mrf.mxu0
        %1293 = vdwg.mxu0
        %v1294 = vunpack.c.l.bf16 %v848
        %v1295 = vadd.f32 %v1291, %v1294
        %v1296 = vsel %vm870, %v1295, 0.0
        %1297 = vadd.xlane.f32.xlu0 %v1296
        %v1298 = vpop.xlane.xlu0 %1297
        %v1299 = vrcp.pop 32.0
        %v1300 = vmul.f32 32.0, %v1299
        %v1301 = vsub.f32 1.0, %v1300
        %v1302 = vmul.f32 %v1299, %v1301
        %v1303 = vadd.f32 %v1299, %v1302
        %vm1304 = vweird.f32 %v1299
        %v1305 = vsel %vm1304, %v1299, %v1303
        %v1306 = vmul.f32 %v1298, %v1305
        %v1307 = vsub.f32 %v1295, %v1306
        %v1308 = vmul.f32 %v1307, %v1307
        %v1309 = vsel %vm870, %v1308, 0.0
        %1310 = vadd.xlane.f32.xlu0 %v1309
        %v1311 = vpop.xlane.xlu0 %1310
        %v1312 = vmul.f32 %v1311, %v1305
        %v1313 = vadd.f32 %v1312, 1e-05
        %v1314 = vrsqrt.pop %v1313
        %v1315 = vmul.f32 %v1314, %v1313
        %v1316 = vmul.f32 %v1315, %v1314
        %v1317 = vmul.f32 0.5, %v1316
        %v1318 = vsub.f32 1.5, %v1317
        %v1319 = vmul.f32 %v1314, %v1318
        %vm1320 = vweird.f32 %v1313
        %vm1321 = vweird.f32 %v1314
        %vm1322 = vmor %vm1320, %vm1321
        %v1323 = vsel %vm1322, %v1314, %v1319
        %v1324 = vmul.f32 %v1307, %v1323
        %v1325 = vld [vmem:[#allocation15] sm:$0x1]
        %v1327 = vperm.slane %v1325, 0
        %v1329 = vmul.f32 %v1324, %v1327
        %v1330 = vld [vmem:[#allocation16] sm:$0x1]
        %v1332 = vperm.slane %v1330, 0
        %v1334 = vadd.f32 %v1329, %v1332
        %v1335 = vpack.c.bf16 %v1334, %v1334
        %v1336 = vld [vmem:[#allocation18] sm:$0xf]
        %v1337 = vld [vmem:[#allocation18 + $0x4] sm:$0xf]
        %v1338 = vld [vmem:[#allocation18 + $0x8] sm:$0xf]
        %v1339 = vld [vmem:[#allocation18 + $0xc] sm:$0xf]
        %v1340 = vld [vmem:[#allocation19] sm:$0x1]
        %v1342 = vperm.slane %v1340, 0
        %v1348 = vunpack.c.l.b16 %v1336
        %v1349 = vunpack.c.l.b16 %v1337
        %v1350 = vunpack.c.l.b16 %v1338
        %v1351 = vunpack.c.l.b16 %v1339
        %v1352 = vpack.c.b16 %v1349, %v1348
        %v1353 = vpack.c.b16 %v1351, %v1350
        %v1357 = vsel %vm870, %v1335, 0
        %1359 = vmatpush.bf16.msra.mxu0 0
        %1360 = vmatpush.bf16.msra.mxu0 0
        %1361 = vmatpush.bf16.msra.mxu0 0
        %1362 = vmatpush.bf16.msra.mxu0 0
        %1363 = vmatpush.bf16.msra.mxu0 0
        %1364 = vmatpush.bf16.msra.mxu0 0
        %1365 = vmatpush.bf16.msra.mxu0 %v1353
        %1366 = vmatpush.bf16.msra.mxu0 %v1352
        %1367 = vmatmul.bf16.gmra.mxu0 %v1357
        %v1368 = vpop.f32.mrf.mxu0
        %v1369 = vadd.f32 %v1342, %v1368
        %v1370 = vpop.f32.mrf.mxu0
        %1371 = vdwg.mxu0
        %v1372 = vmax.f32 %v1369, 0.0
        %v1373 = vpack.c.bf16 %v1372, %v1372
        %v1374 = vld [vmem:[%s14] sm:$0xf]
        %v1375 = vld [vmem:[%s14 + $0x4] sm:$0xf]
        %v1376 = vld [vmem:[%s14 + $0x8] sm:$0xf]
        %v1377 = vld [vmem:[%s14 + $0xc] sm:$0xf]
        %v1378 = vld [vmem:[%s14 + $0x10] sm:$0xf]
        %v1379 = vld [vmem:[%s14 + $0x14] sm:$0xf]
        %v1380 = vld [vmem:[%s14 + $0x18] sm:$0xf]
        %v1381 = vld [vmem:[%s14 + $0x1c] sm:$0xf]
        %v1382 = vld [vmem:[#allocation21] sm:$0x1]
        %v1384 = vperm.slane %v1382, 0
        %v1394 = vunpack.c.l.b16 %v1374
        %v1395 = vunpack.c.l.b16 %v1375
        %v1396 = vunpack.c.l.b16 %v1376
        %v1397 = vunpack.c.l.b16 %v1377
        %v1398 = vunpack.c.l.b16 %v1378
        %v1399 = vunpack.c.l.b16 %v1379
        %v1400 = vunpack.c.l.b16 %v1380
        %v1401 = vunpack.c.l.b16 %v1381
        %v1402 = vpack.c.b16 %v1395, %v1394
        %v1403 = vpack.c.b16 %v1397, %v1396
        %v1404 = vpack.c.b16 %v1399, %v1398
        %v1405 = vpack.c.b16 %v1401, %v1400
        %vm1410 = vcmask 523264
        %v1412 = vsel %vm1410, %v1373, 0
        %1414 = vmatpush.bf16.msra.mxu0 0
        %1415 = vmatpush.bf16.msra.mxu0 0
        %1416 = vmatpush.bf16.msra.mxu0 0
        %1417 = vmatpush.bf16.msra.mxu0 0
        %1418 = vmatpush.bf16.msra.mxu0 %v1405
        %1419 = vmatpush.bf16.msra.mxu0 %v1404
        %1420 = vmatpush.bf16.msra.mxu0 %v1403
        %1421 = vmatpush.bf16.msra.mxu0 %v1402
        %1422 = vmatmul.bf16.gmra.mxu0 %v1412
        %v1423 = vpop.f32.mrf.mxu0
        %v1424 = vadd.f32 %v1384, %v1423
        %v1425 = vpop.f32.mrf.mxu0
        %1426 = vdwg.mxu0
        %v1427 = vadd.f32 %v1424, %v1334
        %v1428 = vsel %vm870, %v1427, 0.0
        %1429 = vadd.xlane.f32.xlu0 %v1428
        %v1430 = vpop.xlane.xlu0 %1429
        %v1431 = vmul.f32 %v1430, %v1305
        %v1432 = vsub.f32 %v1427, %v1431
        %v1433 = vmul.f32 %v1432, %v1432
        %v1434 = vsel %vm870, %v1433, 0.0
        %1435 = vadd.xlane.f32.xlu0 %v1434
        %v1436 = vpop.xlane.xlu0 %1435
        %v1437 = vmul.f32 %v1436, %v1305
        %v1438 = vadd.f32 %v1437, 1e-05
        %v1439 = vrsqrt.pop %v1438
        %v1440 = vmul.f32 %v1439, %v1438
        %v1441 = vmul.f32 %v1440, %v1439
        %v1442 = vmul.f32 0.5, %v1441
        %v1443 = vsub.f32 1.5, %v1442
        %v1444 = vmul.f32 %v1439, %v1443
        %vm1445 = vweird.f32 %v1438
        %vm1446 = vweird.f32 %v1439
        %vm1447 = vmor %vm1445, %vm1446
        %v1448 = vsel %vm1447, %v1439, %v1444
        %v1449 = vmul.f32 %v1432, %v1448
        %v1450 = vld [vmem:[#allocation22] sm:$0x1]
        %v1452 = vperm.slane %v1450, 0
        %v1454 = vmul.f32 %v1449, %v1452
        %v1455 = vld [vmem:[#allocation24] sm:$0x1]
        %v1457 = vperm.slane %v1455, 0
        %v1459 = vadd.f32 %v1454, %v1457
        %v1460 = vpack.c.bf16 %v1459, %v1459
        %vm1461 = vcmask 257024
        %1462 = vst.msk [vmem:[%s846] sm:$0xf] %vm1461, %v1460
        %p1463 = scmp.lt.s32.totalorder %s41, 1
        %s1464 = scalar_select %p1463, %s41, 1
        %p1465 = scmp.lt.s32.totalorder %s42, 0
        %s1466 = scalar_select %p1465, %s42, 0
        %s1467 = sadd.s32 %s1466, %s1464
        %s1468 = smul.addr %s1467, 4
        %s1469 = scalar_lea.vmem %s18, %s1468
        // Predicated region
        $region153: #{transformer_forward.8} parent=91 // pred_check
          %p1470 = pneg %p459
        $region154: #{transformer_forward.8} parent=91 // pred_check_branch
          %1472 = sbr.rel (%p1470) target = $region156
        $region155: #{transformer_forward.8} parent=91 // pred_region
          _
        $region156: #{transformer_forward.8} parent=91 // pred_fallthru
          _
      $region92: #{transformer_forward.8} parent=5 // pred_fallthru
        _
      %p1473 = scmp.le.s32.totalorder 2, %s32
      // Predicated region
      $region157: #{transformer_forward.8} parent=5 // pred_check
        %p1474 = pneg %p1473
      $region158: #{transformer_forward.8} parent=5 // pred_check_branch
        %1476 = sbr.rel (%p1474) target = $region160
      $region159: #{transformer_forward.8} parent=5 // pred_region
        %s1477 = ssub.s32 %s32, 2
        // Predicated region
        $region161: #{transformer_forward.8} parent=159 // pred_check
          %p1478 = pneg %p465
        $region162: #{transformer_forward.8} parent=159 // pred_check_branch
          %1480 = sbr.rel (%p1478) target = $region164
        $region163: #{transformer_forward.8} parent=159 // pred_region
          %p1481 = scmp.lt.s32.totalorder %s43, 1
          %s1482 = scalar_select %p1481, %s43, 1
          %p1483 = scmp.lt.s32.totalorder %s44, 0
          %s1484 = scalar_select %p1483, %s44, 0
          %s1485 = sadd.s32 %s1484, %s1482
          %s1486 = smul.addr %s1485, 4
          %s1487 = scalar_lea.vmem %s18, %s1486
        $region164: #{transformer_forward.8} parent=159 // pred_fallthru
          _
      $region160: #{transformer_forward.8} parent=5 // pred_fallthru
        _
    $region6: #{transformer_forward.8} parent=1 // loop_footer
      %s36 = sadd.s32 1, %s32
    $region7: #{transformer_forward.8} parent=1 // loop_footer_branch
      %31 = sbr.rel target = $region3
    $region8: #{transformer_forward.8} parent=1 // loop_exit
      _
    %1488 = vsyncpa [#allocation3], 1
    %s1489 = scalar_lea.sflag [#allocation3], 1
    %1490 = vsyncpa %s1489, 1
    %1491 = vsyncpa [#allocation5], 1
    %1492 = vsyncpa [#allocation8], 1
    %1493 = vsyncpa [#allocation11], 1
    %1494 = vsyncpa [#allocation14], 1
    %1495 = vsyncpa [#allocation17], 1
    %1496 = vsyncpa [#allocation20], 1
    %1497 = vsyncpa [#allocation23], 1

// kernel: transformer_forward.11
$region0: #{transformer_forward.11}
  #allocation0 [shape = 'u32[]', space=smem, size = 0x4, offset = 0x4, fixed_abs, tag = 'smem constant byte address 0x4 - core index']
  #allocation1 [shape = 'u32[72,128]{1,0:T(1,128)}', space=vmem, size = 0x9000, scoped, tag = 'internal scratch']
  #allocation2 [shape = 'f32[2,10]{1,0:T(2,128)}', space=vmem, size = 0x400, scoped, tag = 'scratch operand']
  %s0 = inlined_call_operand.vmem [shape: bf16[2,32], index: 0, kind: input, shape index: {}]
  %s1 = inlined_call_operand.vmem [shape: bf16[32,10], index: 1, kind: input, shape index: {}]
  %s2 = inlined_call_operand.vmem [shape: f32[1,10], index: 2, kind: input, shape index: {}]
  %s3 = inlined_call_operand.hbm [shape: f32[2,10], index: 3, kind: output, shape index: {}]
  %s4 = sld [smem:[#allocation0]]
  $region30: #{transformer_forward.11} parent=0
    _
  %s6 = ssub.s32 1, %s4
  %s7 = scalar_select 0, %s6, %s4
  $region1: #{transformer_forward.11} parent=0
    #allocation3 [shape = 'u8[1024]{0}', space=vmem, size = 0x400, scoped, tag = 'output window, operand 0, single buffered']
    #allocation4 [shape = 's32[1]{0}', space=sflag, size = 0x4, scoped, tag = 'scoped memory for transformer_forward.11']
    %8 = vsyncpa [#allocation4], 0
    // Predicated region
    $region2: #{transformer_forward.11} parent=1 // pred_check
      _
    $region3: #{transformer_forward.11} parent=1 // pred_check_branch
      %10 = sbr.rel (0) target = $region5
    $region4: #{transformer_forward.11} parent=1 // pred_region
      _
    $region5: #{transformer_forward.11} parent=1 // pred_fallthru
      _
    // Predicated region
    $region6: #{transformer_forward.11} parent=1 // pred_check
      _
    $region7: #{transformer_forward.11} parent=1 // pred_check_branch
      %12 = sbr.rel (0) target = $region9
    $region8: #{transformer_forward.11} parent=1 // pred_region
      _
    $region9: #{transformer_forward.11} parent=1 // pred_fallthru
      _
    // Predicated region
    $region10: #{transformer_forward.11} parent=1 // pred_check
      _
    $region11: #{transformer_forward.11} parent=1 // pred_check_branch
      %14 = sbr.rel (0) target = $region13
    $region12: #{transformer_forward.11} parent=1 // pred_region
      _
    $region13: #{transformer_forward.11} parent=1 // pred_fallthru
      _
    %p16 = scmp.eq.s32.totalorder 0, 0
    // Predicated region
    $region14: #{transformer_forward.11} parent=1 // pred_check
      %p17 = pneg %p16
    $region15: #{transformer_forward.11} parent=1 // pred_check_branch
      %19 = sbr.rel (%p17) target = $region17
    $region16: #{transformer_forward.11} parent=1 // pred_region
      %vm20 = vcmask 74752
      %21 = vst.msk [vmem:[#allocation2] sm:$0x3] %vm20, 0.0
    $region17: #{transformer_forward.11} parent=1 // pred_fallthru
      _
    %v22 = vld [vmem:[%s0] sm:$0x1]
    %v23 = vld [vmem:[#allocation2] sm:$0x3]
    %v24 = vld [vmem:[%s1] sm:$0xf]
    %v25 = vld [vmem:[%s1 + $0x4] sm:$0xf]
    %v26 = vld [vmem:[%s1 + $0x8] sm:$0xf]
    %v27 = vld [vmem:[%s1 + $0xc] sm:$0xf]
    %v32 = vunpack.c.l.b16 %v24
    %v33 = vunpack.c.l.b16 %v25
    %v34 = vunpack.c.l.b16 %v26
    %v35 = vunpack.c.l.b16 %v27
    %v36 = vpack.c.b16 %v33, %v32
    %v37 = vpack.c.b16 %v35, %v34
    %vm40 = vcmask 261120
    %v42 = vsel %vm40, %v22, 0
    %44 = vmatpush.bf16.msra.mxu0 0
    %45 = vmatpush.bf16.msra.mxu0 0
    %46 = vmatpush.bf16.msra.mxu0 0
    %47 = vmatpush.bf16.msra.mxu0 0
    %48 = vmatpush.bf16.msra.mxu0 0
    %49 = vmatpush.bf16.msra.mxu0 0
    %50 = vmatpush.bf16.msra.mxu0 %v37
    %51 = vmatpush.bf16.msra.mxu0 %v36
    %52 = vmatmul.bf16.gmra.mxu0 %v42
    %v53 = vpop.f32.mrf.mxu0
    %v54 = vadd.f32 0.0, %v53
    %v55 = vpop.f32.mrf.mxu0
    %56 = vdwg.mxu0
    %v57 = vadd.f32 %v23, %v54
    %vm58 = vcmask 74752
    %59 = vst.msk [vmem:[#allocation2] sm:$0x3] %vm58, %v57
    // Predicated region
    $region18: #{transformer_forward.11} parent=1 // pred_check
      %p60 = pneg %p16
    $region19: #{transformer_forward.11} parent=1 // pred_check_branch
      %62 = sbr.rel (%p60) target = $region21
    $region20: #{transformer_forward.11} parent=1 // pred_region
      %v63 = vld [vmem:[#allocation2] sm:$0x3]
      %v64 = vld [vmem:[%s2] sm:$0x1]
      %v66 = vperm.slane %v64, 0
      %v68 = vadd.f32 %v63, %v66
      %v69 = vsel %vm58, %v68, -inf
      %70 = vmax.xlane.f32.xlu0 %v69
      %v71 = vpop.xlane.xlu0 %70
      %v72 = vsub.f32 %v68, %v71
      %v73 = vmul.f32 %v72, 1.442695
      %v74 = vpow.pop %v73
      %v75 = vsel %vm58, %v74, 0.0
      %76 = vadd.xlane.f32.xlu0 %v75
      %v77 = vpop.xlane.xlu0 %76
      %v78 = vrcp.pop %v77
      %v79 = vmul.f32 %v77, %v78
      %v80 = vsub.f32 1.0, %v79
      %v81 = vmul.f32 %v78, %v80
      %v82 = vadd.f32 %v78, %v81
      %vm83 = vweird.f32 %v77
      %vm84 = vweird.f32 %v78
      %vm85 = vmor %vm83, %vm84
      %v86 = vsel %vm85, %v78, %v82
      %v87 = vand.u32 2147483647, %v77
      %vm88 = vcmp.eq.f32.partialorder %v87, 8.507059e+37
      %v89 = vand.u32 %v77, 2147483648
      %v90 = vor.u32 1.1754944e-38, %v89
      %v91 = vsel %vm88, %v90, %v86
      %v92 = vmul.f32 %v74, %v91
      %93 = vst.msk [vmem:[#allocation3] sm:$0x3] %vm58, %v92
    $region21: #{transformer_forward.11} parent=1 // pred_fallthru
      _
    // Predicated region
    $region22: #{transformer_forward.11} parent=1 // pred_check
      _
    $region23: #{transformer_forward.11} parent=1 // pred_check_branch
      %95 = sbr.rel (0) target = $region25
    $region24: #{transformer_forward.11} parent=1 // pred_region
      %97 = vsyncadd [#allocation4], 0
      %s99 = sshll.u32 [#allocation3], 4
      %s100 = int_to_ptr.vmem [resolvable:$true] %s99
      %s101 = sshll.u32 %s3, 4
      %s102 = int_to_ptr.hbm [resolvable:$true] %s101
      %104 = dma.vmem_to_hbm [thread:$0]  %s100, 32, %s102, [#allocation4]
    $region25: #{transformer_forward.11} parent=1 // pred_fallthru
      _
    // Predicated region
    $region26: #{transformer_forward.11} parent=1 // pred_check
      _
    $region27: #{transformer_forward.11} parent=1 // pred_check_branch
      %106 = sbr.rel (0) target = $region29
    $region28: #{transformer_forward.11} parent=1 // pred_region
      %108 = dma.done [#allocation4], 32
    $region29: #{transformer_forward.11} parent=1 // pred_fallthru
      _
    %109 = vsyncpa [#allocation4], 1

</llo_original>
